<compile_context>
chip_gen: v7x
topology: tpu7x:2x2x1
jax: 0.10.0
libtpu: 0.0.40
codegen_flags: <defaults>
</compile_context>

<pallas_src>
import functools
import math

import jax
import jax.numpy as jnp
from jax.experimental import pallas as pl
from jax.experimental.pallas import tpu as pltpu


# ----------------------------- in-kernel helpers -----------------------------

def _layernorm(x, eps=1e-5):
    # LayerNorm without affine params (elementwise_affine=False), PyTorch eps.
    mu = jnp.mean(x, axis=-1, keepdims=True)
    var = jnp.mean(jnp.square(x - mu), axis=-1, keepdims=True)
    return (x - mu) * jax.lax.rsqrt(var + eps)


def _vmem_limit_bytes():
    # Spend most of physical VMEM (128 MiB on v5e/v6e, 64 MiB on v7x) on tiles,
    # leaving headroom for compiler scratch.
    try:
        cap = pltpu.get_tpu_info().vmem_capacity_bytes
    except Exception:
        cap = 128 * 1024 * 1024
    return int(cap * 3 // 4)


# ------------------------------ Pallas kernels -------------------------------

def input_embedding_kernel(x_ref, p_ref, w_ref, b_ref, *rest):
    # x_ref: (1, N, T_in) f32, p_ref: (1, N, P) int32, w_ref: (T_in, D) bf16,
    # b_ref: (1, D) f32, rest = per-dim position tables (M_i, D) f32 + o_ref.
    *table_refs, o_ref = rest
    x = x_ref[0]                                   # (N, T_in)
    p = p_ref[0]                                   # (N, P) int32
    n = x.shape[0]
    emb = (jnp.dot(x.astype(jnp.bfloat16), w_ref[...],
                   preferred_element_type=jnp.float32) + b_ref[...])
    # Exact positional gather via one-hot f32 matmul (tables are tiny, stay VMEM
    # resident); avoids materializing a (B, N, D) pos tensor in HBM.
    for i, tref in enumerate(table_refs):
        table = tref[...]                          # (M_i, D) f32
        m_i = table.shape[0]
        onehot = (jax.lax.broadcasted_iota(jnp.int32, (n, m_i), 1)
                  == p[:, i:i + 1]).astype(jnp.float32)
        emb = emb + jnp.dot(onehot, table, preferred_element_type=jnp.float32)
    o_ref[0] = emb


def timestep_mlp_kernel(te_ref, w1_ref, b1_ref, w2_ref, b2_ref, o_ref):
    # te_ref: (B, F) sinusoidal features -> (B, D)
    h = jnp.dot(te_ref[...].astype(jnp.bfloat16), w1_ref[...],
                preferred_element_type=jnp.float32) + b1_ref[...]
    h = jax.nn.silu(h)
    o_ref[...] = jnp.dot(h.astype(jnp.bfloat16), w2_ref[...],
                         preferred_element_type=jnp.float32) + b2_ref[...]


def adaln_mod_kernel(c_ref, w_ref, b_ref, o_ref):
    # adaLN modulation for ALL layers at once:  SiLU(c) @ W + b.
    # c_ref: (B, D) f32, w_ref: (D, L*6D) bf16, b_ref: (1, L*6D) f32,
    # o_ref: (B, L*6D) f32  (reshaped to (B, L, 6, D) outside -- free).
    cs = jax.nn.silu(c_ref[...])
    o_ref[...] = jnp.dot(cs.astype(jnp.bfloat16), w_ref[...],
                         preferred_element_type=jnp.float32) + b_ref[...]


def dit_blocks_kernel(x_ref, mod_ref,
                      qkv_w_ref, qkv_b_ref,
                      proj_w_ref, proj_b_ref,
                      w1_ref, b1_ref, w2_ref, b2_ref,
                      o_ref, x_acc, *, num_heads):
    # All DiffusionTransformerBlocks fused: grid = (batch_tiles, layer).
    # Activations stay resident in the VMEM scratch across the layer axis; each
    # layer's weights are streamed from HBM once per layer per batch tile.
    layer = pl.program_id(1)
    n_layers = pl.num_programs(1)

    @pl.when(layer == 0)
    def _():
        x_acc[...] = x_ref[...]

    x = x_acc[...]                                  # (Bt, N, D) f32
    Bt, N, D = x.shape
    H = num_heads
    dh = D // H
    BN = Bt * N

    # Precomputed modulation for this (batch tile, layer): (Bt, 6, D).
    # Sublane-row selects only -- no lane slicing.
    mod = mod_ref[...][:, 0]
    shift_msa = mod[:, 0:1, :]
    scale_msa = mod[:, 1:2, :]
    gate_msa = mod[:, 2:3, :]
    shift_mlp = mod[:, 3:4, :]
    scale_mlp = mod[:, 4:5, :]
    gate_mlp = mod[:, 5:6, :]

    def split_heads(m):                             # (Bt, N, D) -> (Bt*H, N, dh)
        m = m.reshape(Bt, N, H, dh)
        m = jnp.transpose(m, (0, 2, 1, 3))
        return m.reshape(Bt * H, N, dh)

    # ---- multi-head self-attention branch (attention_dropout = 0.0 -> no-op) ----
    h = _layernorm(x) * (1.0 + scale_msa) + shift_msa
    qkv = jnp.dot(h.reshape(BN, D).astype(jnp.bfloat16), qkv_w_ref[0],
                  preferred_element_type=jnp.float32) + qkv_b_ref[0]   # (BN, 3D)
    qkv = qkv.reshape(Bt, N, 3 * D)
    q = split_heads(qkv[..., 0 * D:1 * D]).astype(jnp.bfloat16)
    k = split_heads(qkv[..., 1 * D:2 * D]).astype(jnp.bfloat16)
    v = split_heads(qkv[..., 2 * D:3 * D]).astype(jnp.bfloat16)

    # TODO(synk): for production sequence lengths the dense (Bt*H, N, N) score
    # tensor should be replaced by a flash-style online-softmax loop over K
    # tiles (required on v7x's 64 MiB VMEM).
    s = jnp.einsum('bqd,bkd->bqk', q, k,
                   preferred_element_type=jnp.float32) * (1.0 / math.sqrt(dh))
    s = s - jnp.max(s, axis=-1, keepdims=True)
    e = jnp.exp(s)
    attn = e * pl.reciprocal(jnp.sum(e, axis=-1, keepdims=True), approx=True)
    ctx = jnp.einsum('bqk,bkd->bqd', attn.astype(jnp.bfloat16), v,
                     preferred_element_type=jnp.float32)               # (Bt*H, N, dh)
    ctx = jnp.transpose(ctx.reshape(Bt, H, N, dh), (0, 2, 1, 3)).reshape(BN, D)
    attn_out = jnp.dot(ctx.astype(jnp.bfloat16), proj_w_ref[0],
                       preferred_element_type=jnp.float32) + proj_b_ref[0]
    x = x + gate_msa * attn_out.reshape(Bt, N, D)

    # ---- feed-forward branch (ffnn_dropout = 0.0 -> no-op) ----
    h2 = (_layernorm(x) * (1.0 + scale_mlp) + shift_mlp).reshape(BN, D)
    h2 = jnp.dot(h2.astype(jnp.bfloat16), w1_ref[0],
                 preferred_element_type=jnp.float32) + b1_ref[0]
    # TODO(synk): PyTorch nn.GELU default is exact erf GELU; tanh approximation here.
    h2 = jax.nn.gelu(h2, approximate=True)
    h2 = jnp.dot(h2.astype(jnp.bfloat16), w2_ref[0],
                 preferred_element_type=jnp.float32) + b2_ref[0]
    x = x + gate_mlp * h2.reshape(Bt, N, D)

    x_acc[...] = x

    @pl.when(layer == n_layers - 1)
    def _():
        o_ref[...] = x


def output_layer_kernel(x_ref, c_ref, aw_ref, ab_ref, lw_ref, lb_ref, o_ref):
    # Final adaLN (shift/scale only) + linear projection (lane-padded output).
    x = x_ref[0]                 # (N, D) f32
    c = c_ref[0]                 # (1, D) f32
    D = x.shape[-1]
    mod = jnp.dot(jax.nn.silu(c).astype(jnp.bfloat16), aw_ref[...],
                  preferred_element_type=jnp.float32) + ab_ref[...]   # (1, 2D)
    shift = mod[:, :D]
    scale = mod[:, D:]
    h = _layernorm(x) * (1.0 + scale) + shift
    o_ref[0] = jnp.dot(h.astype(jnp.bfloat16), lw_ref[...],
                       preferred_element_type=jnp.float32) + lb_ref[...]


# ------------------------------ Python wrappers -------------------------------

def input_embedding_call(x, p, w, b, tables):
    B, N, T_in = x.shape
    P = p.shape[-1]
    D = w.shape[1]
    table_specs = [pl.BlockSpec(tbl.shape, lambda i: (0, 0)) for tbl in tables]
    return pl.pallas_call(
        input_embedding_kernel,
        out_shape=jax.ShapeDtypeStruct((B, N, D), jnp.float32),
        grid=(B,),
        in_specs=[
            pl.BlockSpec((1, N, T_in), lambda i: (i, 0, 0)),
            pl.BlockSpec((1, N, P), lambda i: (i, 0, 0)),
            pl.BlockSpec(w.shape, lambda i: (0, 0)),
            pl.BlockSpec(b.shape, lambda i: (0, 0)),
        ] + table_specs,
        out_specs=pl.BlockSpec((1, N, D), lambda i: (i, 0, 0)),
        compiler_params=pltpu.CompilerParams(dimension_semantics=("parallel",)),
    )(x, p, w, b, *tables)


def timestep_mlp_call(te, w1, b1, w2, b2):
    B = te.shape[0]
    D = w2.shape[1]
    return pl.pallas_call(
        timestep_mlp_kernel,
        out_shape=jax.ShapeDtypeStruct((B, D), jnp.float32),
    )(te, w1, b1, w2, b2)


def adaln_mod_call(c, aw, ab):
    # c: (B, D) f32;  aw: (D, L*6D) bf16;  ab: (1, L*6D) f32  ->  (B, L*6D) f32
    B = c.shape[0]
    cols = aw.shape[1]
    return pl.pallas_call(
        adaln_mod_kernel,
        out_shape=jax.ShapeDtypeStruct((B, cols), jnp.float32),
    )(c, aw, ab)


def dit_blocks_call(x, mods, params, num_heads, *, block_b=None):
    # x: (B, N, D) f32;  mods: (B, L, 6, D) f32;  stacked per-layer weights.
    B, N, D = x.shape
    L = params["qkv_w"].shape[0]
    if block_b is None:
        block_b = B          # stream each layer's weights once, not once per sample
    assert B % block_b == 0
    nb = B // block_b

    def wspec(arr):
        nd = arr.ndim
        return pl.BlockSpec((1,) + arr.shape[1:],
                            lambda bt, l, _nd=nd: (l,) + (0,) * (_nd - 1))

    weights = [params["qkv_w"], params["qkv_b"], params["proj_w"], params["proj_b"],
               params["mlp_w1"], params["mlp_b1"], params["mlp_w2"], params["mlp_b2"]]

    # TODO(synk): for production D (e.g. 1152) on v7x (64 MiB VMEM) split each
    # layer into attention / MLP weight phases (extra grid axis) so the
    # double-buffered weight working set fits; v5e/v6e can hold a full layer.
    return pl.pallas_call(
        functools.partial(dit_blocks_kernel, num_heads=num_heads),
        out_shape=jax.ShapeDtypeStruct((B, N, D), jnp.float32),
        grid=(nb, L),
        in_specs=[pl.BlockSpec((block_b, N, D), lambda bt, l: (bt, 0, 0)),
                  pl.BlockSpec((block_b, 1, 6, D), lambda bt, l: (bt, l, 0, 0))]
                 + [wspec(w) for w in weights],
        out_specs=pl.BlockSpec((block_b, N, D), lambda bt, l: (bt, 0, 0)),
        scratch_shapes=[pltpu.VMEM((block_b, N, D), jnp.float32)],
        input_output_aliases={0: 0},
        compiler_params=pltpu.CompilerParams(
            dimension_semantics=("parallel", "arbitrary"),
            vmem_limit_bytes=_vmem_limit_bytes()),
    )(x, mods, *weights)


def output_layer_call(x, c, aw, ab, lw, lb):
    B, N, D = x.shape
    t_out = lw.shape[1]
    t_pad = ((t_out + 127) // 128) * 128          # lane-dense output stores
    lw_p = jnp.pad(lw, ((0, 0), (0, t_pad - t_out)))
    lb_p = jnp.pad(lb, ((0, 0), (0, t_pad - t_out)))
    y = pl.pallas_call(
        output_layer_kernel,
        out_shape=jax.ShapeDtypeStruct((B, N, t_pad), jnp.float32),
        grid=(B,),
        in_specs=[pl.BlockSpec((1, N, D), lambda i: (i, 0, 0)),
                  pl.BlockSpec((1, 1, D), lambda i: (i, 0, 0)),
                  pl.BlockSpec(aw.shape, lambda i: (0, 0)),
                  pl.BlockSpec(ab.shape, lambda i: (0, 0)),
                  pl.BlockSpec((D, t_pad), lambda i: (0, 0)),
                  pl.BlockSpec((1, t_pad), lambda i: (0, 0))],
        out_specs=pl.BlockSpec((1, N, t_pad), lambda i: (i, 0, 0)),
        compiler_params=pltpu.CompilerParams(dimension_semantics=("parallel",)),
    )(x, c, aw, ab, lw_p, lb_p)
    return y[..., :t_out]


# ------------------------------- model assembly -------------------------------

def sinusoidal_timestep_embedding(t, dim):
    half = dim // 2
    freqs = jnp.exp(-math.log(10000.0) * jnp.arange(half, dtype=jnp.float32) / half)
    args = t.astype(jnp.float32)[:, None] * freqs[None, :]
    return jnp.concatenate([jnp.cos(args), jnp.sin(args)], axis=-1)  # (B, dim)


def init_params(key, *, t_in, d, depth, max_positions, f_time):
    keys = iter(jax.random.split(key, 32))

    def w(shape, dtype=jnp.bfloat16):
        return (jax.random.normal(next(keys), shape, jnp.float32) * 0.02).astype(dtype)

    z = lambda shape: jnp.zeros(shape, jnp.float32)

    return {
        "tok_w": w((t_in, d)), "tok_b": z((1, d)),
        "pos_tables": [w((m, d), jnp.float32) for m in max_positions],
        "t_w1": w((f_time, d)), "t_b1": z((1, d)),
        "t_w2": w((d, d)), "t_b2": z((1, d)),
        # adaLN modulation linears of all layers packed column-wise:
        #   columns [l*6d : (l+1)*6d] = layer l's (shift/scale/gate msa, shift/scale/gate mlp)
        "adaln_w": w((d, depth * 6 * d)), "adaln_b": z((1, depth * 6 * d)),
        # per-layer block weights stacked along a leading depth axis
        "qkv_w": w((depth, d, 3 * d)), "qkv_b": z((depth, 1, 3 * d)),
        "proj_w": w((depth, d, d)), "proj_b": z((depth, 1, d)),
        "mlp_w1": w((depth, d, 4 * d)), "mlp_b1": z((depth, 1, 4 * d)),
        "mlp_w2": w((depth, 4 * d, d)), "mlp_b2": z((depth, 1, d)),
        "out_adaln_w": w((d, 2 * d)), "out_adaln_b": z((1, 2 * d)),
        "out_lin_w": w((d, t_in)), "out_lin_b": z((1, t_in)),
    }


def diffusion_transformer_forward(x, p, t, params, *, num_heads, f_time):
    d = params["tok_w"].shape[1]
    depth = params["qkv_w"].shape[0]
    B = x.shape[0]

    # InputEmbedding: token linear + summed learned positional embeddings
    # (gather done in-kernel as an exact one-hot matmul).
    x = input_embedding_call(x, p, params["tok_w"], params["tok_b"],
                             params["pos_tables"])

    # DiffusionTimestepEmbedding: sinusoidal features + 2-layer MLP (context=None).
    te = sinusoidal_timestep_embedding(t, f_time)
    c = timestep_mlp_call(te, params["t_w1"], params["t_b1"],
                          params["t_w2"], params["t_b2"])          # (B, D)

    # adaLN modulation for all layers in one lane-dense matmul, already ordered
    # as (B, L, 6, D); the reshape below is free (no transpose).
    mods = adaln_mod_call(c, params["adaln_w"], params["adaln_b"])
    mods = mods.reshape(B, depth, 6, d)

    # All transformer blocks fused into one depth-pipelined pallas_call.
    x = dit_blocks_call(x, mods, params, num_heads)

    # Output layer (adaLN shift/scale + final linear).
    return output_layer_call(x, c[:, None, :], params["out_adaln_w"],
                             params["out_adaln_b"], params["out_lin_w"],
                             params["out_lin_b"])


# ------------------------------------ main ------------------------------------

if __name__ == "__main__":
    B, N = 2, 8                 # batch, sequence length
    T_IN = 16                   # input_token_length
    D = 32                      # embedded_token_length
    HEADS = 4                   # num_attention_heads
    DEPTH = 2                   # depth
    MAX_POSITIONS = [10, 12]    # max_positions
    F_TIME = 32                 # sinusoidal frequency-embedding size

    key = jax.random.PRNGKey(0)
    kx, kt, kparam, *kp = jax.random.split(key, 4 + len(MAX_POSITIONS))

    x = jax.random.normal(kx, (B, N, T_IN), jnp.float32)
    p = jnp.stack(
        [jax.random.randint(kp[i], (B, N), 0, MAX_POSITIONS[i], dtype=jnp.int32)
         for i in range(len(MAX_POSITIONS))], axis=-1)     # (B, N, 2)
    t = jax.random.randint(kt, (B,), 0, 1000, dtype=jnp.int32)

    params = init_params(kparam, t_in=T_IN, d=D, depth=DEPTH,
                         max_positions=MAX_POSITIONS, f_time=F_TIME)

    fwd = jax.jit(functools.partial(diffusion_transformer_forward,
                                    num_heads=HEADS, f_time=F_TIME))
    out = fwd(x, p, t, params)
    out = jax.block_until_ready(out)
    assert out.shape == (B, N, T_IN), out.shape
    assert jnp.all(jnp.isfinite(out))
    print("KERNEL_OK")
</pallas_src>

<mosaic_0001>
module attributes {stable_mosaic.version = 11 : i64} {
  func.func @adaln_mod_kernel(%arg0: memref<2x32xf32, #tpu.memory_space<vmem>>, %arg1: memref<32x384xbf16, #tpu.memory_space<vmem>>, %arg2: memref<1x384xf32, #tpu.memory_space<vmem>>, %arg3: memref<2x384xf32, #tpu.memory_space<vmem>>) attributes {dimension_semantics = [], scalar_prefetch = 0 : i64, scratch_operands = 0 : i64, tpu.core_type = #tpu.core_type<tc>} {
    %c0 = arith.constant 0 : index
    %c0_0 = arith.constant 0 : index
    %0 = vector.load %arg0[%c0, %c0_0] : memref<2x32xf32, #tpu.memory_space<vmem>>, vector<2x32xf32>
    %1 = arith.negf %0 : vector<2x32xf32>
    %2 = math.exp %1 : vector<2x32xf32>
    %cst = arith.constant 1.000000e+00 : f32
    %3 = vector.broadcast %cst : f32 to vector<2x32xf32>
    %4 = arith.addf %3, %2 : vector<2x32xf32>
    %5 = arith.divf %3, %4 : vector<2x32xf32>
    %6 = arith.mulf %0, %5 : vector<2x32xf32>
    %7 = arith.truncf %6 : vector<2x32xf32> to vector<2x32xbf16>
    %c0_1 = arith.constant 0 : index
    %c0_2 = arith.constant 0 : index
    %8 = vector.load %arg1[%c0_1, %c0_2] : memref<32x384xbf16, #tpu.memory_space<vmem>>, vector<32x384xbf16>
    %cst_3 = arith.constant dense<0.000000e+00> : vector<2x384xf32>
    %9 = tpu.matmul %7, %8, %cst_3 {dimension_numbers = #tpu.dot_dimension_numbers<[1], [0], [0], [1], [0, 0, 1, 1], [], []>} : vector<2x32xbf16>, vector<32x384xbf16>, vector<2x384xf32> -> vector<2x384xf32>
    %c0_4 = arith.constant 0 : index
    %c0_5 = arith.constant 0 : index
    %10 = vector.load %arg2[%c0_4, %c0_5] : memref<1x384xf32, #tpu.memory_space<vmem>>, vector<1x384xf32>
    %11 = vector.broadcast %10 : vector<1x384xf32> to vector<2x384xf32>
    %12 = arith.addf %9, %11 : vector<2x384xf32>
    %c0_6 = arith.constant 0 : index
    %c0_7 = arith.constant 0 : index
    %13 = vector.load %arg3[%c0_6, %c0_7] : memref<2x384xf32, #tpu.memory_space<vmem>>, vector<2x384xf32>
    tpu.vector_store %arg3[%c0_6, %c0_7], %12 {strides = array<i32>} : memref<2x384xf32, #tpu.memory_space<vmem>>, vector<2x384xf32>,
    return
  }
}

module attributes {stable_mosaic.version = 11 : i64} {
  func.func @timestep_mlp_kernel(%arg0: memref<2x32xf32, #tpu.memory_space<vmem>>, %arg1: memref<32x32xbf16, #tpu.memory_space<vmem>>, %arg2: memref<1x32xf32, #tpu.memory_space<vmem>>, %arg3: memref<32x32xbf16, #tpu.memory_space<vmem>>, %arg4: memref<1x32xf32, #tpu.memory_space<vmem>>, %arg5: memref<2x32xf32, #tpu.memory_space<vmem>>) attributes {dimension_semantics = [], scalar_prefetch = 0 : i64, scratch_operands = 0 : i64, tpu.core_type = #tpu.core_type<tc>} {
    %c0 = arith.constant 0 : index
    %c0_0 = arith.constant 0 : index
    %0 = vector.load %arg0[%c0, %c0_0] : memref<2x32xf32, #tpu.memory_space<vmem>>, vector<2x32xf32>
    %1 = arith.truncf %0 : vector<2x32xf32> to vector<2x32xbf16>
    %c0_1 = arith.constant 0 : index
    %c0_2 = arith.constant 0 : index
    %2 = vector.load %arg1[%c0_1, %c0_2] : memref<32x32xbf16, #tpu.memory_space<vmem>>, vector<32x32xbf16>
    %cst = arith.constant dense<0.000000e+00> : vector<2x32xf32>
    %3 = tpu.matmul %1, %2, %cst {dimension_numbers = #tpu.dot_dimension_numbers<[1], [0], [0], [1], [0, 0, 1, 1], [], []>} : vector<2x32xbf16>, vector<32x32xbf16>, vector<2x32xf32> -> vector<2x32xf32>
    %c0_3 = arith.constant 0 : index
    %c0_4 = arith.constant 0 : index
    %4 = vector.load %arg2[%c0_3, %c0_4] : memref<1x32xf32, #tpu.memory_space<vmem>>, vector<1x32xf32>
    %5 = vector.broadcast %4 : vector<1x32xf32> to vector<2x32xf32>
    %6 = arith.addf %3, %5 : vector<2x32xf32>
    %7 = arith.negf %6 : vector<2x32xf32>
    %8 = math.exp %7 : vector<2x32xf32>
    %cst_5 = arith.constant 1.000000e+00 : f32
    %9 = vector.broadcast %cst_5 : f32 to vector<2x32xf32>
    %10 = arith.addf %9, %8 : vector<2x32xf32>
    %11 = arith.divf %9, %10 : vector<2x32xf32>
    %12 = arith.mulf %6, %11 : vector<2x32xf32>
    %13 = arith.truncf %12 : vector<2x32xf32> to vector<2x32xbf16>
    %c0_6 = arith.constant 0 : index
    %c0_7 = arith.constant 0 : index
    %14 = vector.load %arg3[%c0_6, %c0_7] : memref<32x32xbf16, #tpu.memory_space<vmem>>, vector<32x32xbf16>
    %cst_8 = arith.constant dense<0.000000e+00> : vector<2x32xf32>
    %15 = tpu.matmul %13, %14, %cst_8 {dimension_numbers = #tpu.dot_dimension_numbers<[1], [0], [0], [1], [0, 0, 1, 1], [], []>} : vector<2x32xbf16>, vector<32x32xbf16>, vector<2x32xf32> -> vector<2x32xf32>
    %c0_9 = arith.constant 0 : index
    %c0_10 = arith.constant 0 : index
    %16 = vector.load %arg4[%c0_9, %c0_10] : memref<1x32xf32, #tpu.memory_space<vmem>>, vector<1x32xf32>
    %17 = vector.broadcast %16 : vector<1x32xf32> to vector<2x32xf32>
    %18 = arith.addf %15, %17 : vector<2x32xf32>
    %c0_11 = arith.constant 0 : index
    %c0_12 = arith.constant 0 : index
    %19 = vector.load %arg5[%c0_11, %c0_12] : memref<2x32xf32, #tpu.memory_space<vmem>>, vector<2x32xf32>
    tpu.vector_store %arg5[%c0_11, %c0_12], %18 {strides = array<i32>} : memref<2x32xf32, #tpu.memory_space<vmem>>, vector<2x32xf32>,
    return
  }
}

module attributes {stable_mosaic.version = 11 : i64} {
  func.func @input_embedding_kernel(%arg0: i32, %arg1: memref<1x8x16xf32, #tpu.memory_space<vmem>>, %arg2: memref<1x8x2xi32, #tpu.memory_space<vmem>>, %arg3: memref<16x32xbf16, #tpu.memory_space<vmem>>, %arg4: memref<1x32xf32, #tpu.memory_space<vmem>>, %arg5: memref<10x32xf32, #tpu.memory_space<vmem>>, %arg6: memref<12x32xf32, #tpu.memory_space<vmem>>, %arg7: memref<1x8x32xf32, #tpu.memory_space<vmem>>) attributes {dimension_semantics = [#tpu.dimension_semantics<parallel>], iteration_bounds = array<i64: 2>, scalar_prefetch = 0 : i64, scratch_operands = 0 : i64, tpu.core_type = #tpu.core_type<tc>, window_params = [{transform_indices = @transform_0, window_bounds = array<i64: 1, 8, 16>}, {transform_indices = @transform_1, window_bounds = array<i64: 1, 8, 2>}, {pipeline_mode = #tpu.pipeline_mode<synchronous>, transform_indices = @transform_2, window_bounds = array<i64: 16, 32>}, {pipeline_mode = #tpu.pipeline_mode<synchronous>, transform_indices = @transform_3, window_bounds = array<i64: 1, 32>}, {pipeline_mode = #tpu.pipeline_mode<synchronous>, transform_indices = @transform_4, window_bounds = array<i64: 10, 32>}, {pipeline_mode = #tpu.pipeline_mode<synchronous>, transform_indices = @transform_5, window_bounds = array<i64: 12, 32>}, {transform_indices = @transform_6, window_bounds = array<i64: 1, 8, 32>}]} {
    %c0 = arith.constant 0 : index
    %c0_0 = arith.constant 0 : index
    %c0_1 = arith.constant 0 : index
    %0 = vector.load %arg1[%c0, %c0_0, %c0_1] : memref<1x8x16xf32, #tpu.memory_space<vmem>>, vector<1x8x16xf32>
    %1 = vector.shape_cast %0 : vector<1x8x16xf32> to vector<8x16xf32>
    %c0_2 = arith.constant 0 : index
    %c0_3 = arith.constant 0 : index
    %c0_4 = arith.constant 0 : index
    %2 = vector.load %arg2[%c0_2, %c0_3, %c0_4] : memref<1x8x2xi32, #tpu.memory_space<vmem>>, vector<1x8x2xi32>
    %3 = vector.shape_cast %2 : vector<1x8x2xi32> to vector<8x2xi32>
    %4 = arith.truncf %1 : vector<8x16xf32> to vector<8x16xbf16>
    %c0_5 = arith.constant 0 : index
    %c0_6 = arith.constant 0 : index
    %5 = vector.load %arg3[%c0_5, %c0_6] : memref<16x32xbf16, #tpu.memory_space<vmem>>, vector<16x32xbf16>
    %cst = arith.constant dense<0.000000e+00> : vector<8x32xf32>
    %6 = tpu.matmul %4, %5, %cst {dimension_numbers = #tpu.dot_dimension_numbers<[1], [0], [0], [1], [0, 0, 1, 1], [], []>} : vector<8x16xbf16>, vector<16x32xbf16>, vector<8x32xf32> -> vector<8x32xf32>
    %c0_7 = arith.constant 0 : index
    %c0_8 = arith.constant 0 : index
    %7 = vector.load %arg4[%c0_7, %c0_8] : memref<1x32xf32, #tpu.memory_space<vmem>>, vector<1x32xf32>
    %8 = vector.broadcast %7 : vector<1x32xf32> to vector<8x32xf32>
    %9 = arith.addf %6, %8 : vector<8x32xf32>
    %c0_9 = arith.constant 0 : index
    %c0_10 = arith.constant 0 : index
    %10 = vector.load %arg5[%c0_9, %c0_10] : memref<10x32xf32, #tpu.memory_space<vmem>>, vector<10x32xf32>
    %11 = tpu.iota {dimensions = array<i32: 1>} : vector<8x10xi32>
    %12 = vector.extract_strided_slice %3 {offsets = [0, 0], sizes = [8, 1], strides = [1, 1]} : vector<8x2xi32> to vector<8x1xi32>
    %13 = vector.broadcast %12 : vector<8x1xi32> to vector<8x10xi32>
    %14 = arith.cmpi eq, %11, %13 : vector<8x10xi32>
    %15 = arith.extui %14 : vector<8x10xi1> to vector<8x10xi32>
    %16 = arith.sitofp %15 : vector<8x10xi32> to vector<8x10xf32>
    %cst_11 = arith.constant dense<0.000000e+00> : vector<8x32xf32>
    %17 = tpu.matmul %16, %10, %cst_11 {dimension_numbers = #tpu.dot_dimension_numbers<[1], [0], [0], [1], [0, 0, 1, 1], [], []>} : vector<8x10xf32>, vector<10x32xf32>, vector<8x32xf32> -> vector<8x32xf32>
    %18 = arith.addf %9, %17 : vector<8x32xf32>
    %c0_12 = arith.constant 0 : index
    %c0_13 = arith.constant 0 : index
    %19 = vector.load %arg6[%c0_12, %c0_13] : memref<12x32xf32, #tpu.memory_space<vmem>>, vector<12x32xf32>
    %20 = tpu.iota {dimensions = array<i32: 1>} : vector<8x12xi32>
    %21 = vector.extract_strided_slice %3 {offsets = [0, 1], sizes = [8, 1], strides = [1, 1]} : vector<8x2xi32> to vector<8x1xi32>
    %22 = vector.broadcast %21 : vector<8x1xi32> to vector<8x12xi32>
    %23 = arith.cmpi eq, %20, %22 : vector<8x12xi32>
    %24 = arith.extui %23 : vector<8x12xi1> to vector<8x12xi32>
    %25 = arith.sitofp %24 : vector<8x12xi32> to vector<8x12xf32>
    %cst_14 = arith.constant dense<0.000000e+00> : vector<8x32xf32>
    %26 = tpu.matmul %25, %19, %cst_14 {dimension_numbers = #tpu.dot_dimension_numbers<[1], [0], [0], [1], [0, 0, 1, 1], [], []>} : vector<8x12xf32>, vector<12x32xf32>, vector<8x32xf32> -> vector<8x32xf32>
    %27 = arith.addf %18, %26 : vector<8x32xf32>
    %c0_15 = arith.constant 0 : index
    %c0_16 = arith.constant 0 : index
    %c0_17 = arith.constant 0 : index
    %28 = vector.load %arg7[%c0_15, %c0_16, %c0_17] : memref<1x8x32xf32, #tpu.memory_space<vmem>>, vector<1x8x32xf32>
    %29 = vector.shape_cast %28 : vector<1x8x32xf32> to vector<8x32xf32>
    %30 = vector.shape_cast %27 : vector<8x32xf32> to vector<1x8x32xf32>
    tpu.vector_store %arg7[%c0_15, %c0_16, %c0_17], %30 {strides = array<i32>} : memref<1x8x32xf32, #tpu.memory_space<vmem>>, vector<1x8x32xf32>,
    return
  }
  func.func @transform_0(%arg0: i32) -> (i32, i32, i32) {
    %c0_i32 = arith.constant 0 : i32
    %c0_i32_0 = arith.constant 0 : i32
    %c0_i32_1 = arith.constant 0 : i32
    return %arg0, %c0_i32, %c0_i32_0 : i32, i32, i32
  }
  func.func @transform_1(%arg0: i32) -> (i32, i32, i32) {
    %c0_i32 = arith.constant 0 : i32
    %c0_i32_0 = arith.constant 0 : i32
    %c0_i32_1 = arith.constant 0 : i32
    return %arg0, %c0_i32, %c0_i32_0 : i32, i32, i32
  }
  func.func @transform_2(%arg0: i32) -> (i32, i32) {
    %c0_i32 = arith.constant 0 : i32
    %c0_i32_0 = arith.constant 0 : i32
    %c0_i32_1 = arith.constant 0 : i32
    return %c0_i32, %c0_i32_0 : i32, i32
  }
  func.func @transform_3(%arg0: i32) -> (i32, i32) {
    %c0_i32 = arith.constant 0 : i32
    %c0_i32_0 = arith.constant 0 : i32
    %c0_i32_1 = arith.constant 0 : i32
    return %c0_i32, %c0_i32_0 : i32, i32
  }
  func.func @transform_4(%arg0: i32) -> (i32, i32) {
    %c0_i32 = arith.constant 0 : i32
    %c0_i32_0 = arith.constant 0 : i32
    %c0_i32_1 = arith.constant 0 : i32
    return %c0_i32, %c0_i32_0 : i32, i32
  }
  func.func @transform_5(%arg0: i32) -> (i32, i32) {
    %c0_i32 = arith.constant 0 : i32
    %c0_i32_0 = arith.constant 0 : i32
    %c0_i32_1 = arith.constant 0 : i32
    return %c0_i32, %c0_i32_0 : i32, i32
  }
  func.func @transform_6(%arg0: i32) -> (i32, i32, i32) {
    %c0_i32 = arith.constant 0 : i32
    %c0_i32_0 = arith.constant 0 : i32
    %c0_i32_1 = arith.constant 0 : i32
    return %arg0, %c0_i32, %c0_i32_0 : i32, i32, i32
  }
}

module attributes {stable_mosaic.version = 11 : i64} {
  func.func @dit_blocks_kernel(%arg0: i32, %arg1: i32, %arg2: memref<2x8x32xf32, #tpu.memory_space<vmem>>, %arg3: memref<2x1x6x32xf32, #tpu.memory_space<vmem>>, %arg4: memref<1x32x96xbf16, #tpu.memory_space<vmem>>, %arg5: memref<1x1x96xf32, #tpu.memory_space<vmem>>, %arg6: memref<1x32x32xbf16, #tpu.memory_space<vmem>>, %arg7: memref<1x1x32xf32, #tpu.memory_space<vmem>>, %arg8: memref<1x32x128xbf16, #tpu.memory_space<vmem>>, %arg9: memref<1x1x128xf32, #tpu.memory_space<vmem>>, %arg10: memref<1x128x32xbf16, #tpu.memory_space<vmem>>, %arg11: memref<1x1x32xf32, #tpu.memory_space<vmem>>, %arg12: memref<2x8x32xf32, #tpu.memory_space<vmem>>, %arg13: memref<2x8x32xf32, #tpu.memory_space<vmem>>) attributes {dimension_semantics = [#tpu.dimension_semantics<parallel>, #tpu.dimension_semantics<arbitrary>], iteration_bounds = array<i64: 1, 2>, scalar_prefetch = 0 : i64, scratch_operands = 1 : i64, tpu.core_type = #tpu.core_type<tc>, window_params = [{transform_indices = @transform_0, window_bounds = array<i64: 2, 8, 32>}, {transform_indices = @transform_1, window_bounds = array<i64: 2, 1, 6, 32>}, {transform_indices = @transform_2, window_bounds = array<i64: 1, 32, 96>}, {transform_indices = @transform_3, window_bounds = array<i64: 1, 1, 96>}, {transform_indices = @transform_4, window_bounds = array<i64: 1, 32, 32>}, {transform_indices = @transform_5, window_bounds = array<i64: 1, 1, 32>}, {transform_indices = @transform_6, window_bounds = array<i64: 1, 32, 128>}, {transform_indices = @transform_7, window_bounds = array<i64: 1, 1, 128>}, {transform_indices = @transform_8, window_bounds = array<i64: 1, 128, 32>}, {transform_indices = @transform_9, window_bounds = array<i64: 1, 1, 32>}, {transform_indices = @transform_10, window_bounds = array<i64: 2, 8, 32>}]} {
    %c0_i32 = arith.constant 0 : i32
    %0 = arith.cmpi eq, %arg1, %c0_i32 : i32
    %1 = arith.extui %0 : i1 to i32
    %c0_i32_0 = arith.constant 0 : i32
    %2 = arith.cmpi ne, %1, %c0_i32_0 : i32
    scf.if %2 {
      %c0_59 = arith.constant 0 : index
      %c0_60 = arith.constant 0 : index
      %c0_61 = arith.constant 0 : index
      %153 = vector.load %arg2[%c0_59, %c0_60, %c0_61] : memref<2x8x32xf32, #tpu.memory_space<vmem>>, vector<2x8x32xf32>
      %c0_62 = arith.constant 0 : index
      %c0_63 = arith.constant 0 : index
      %c0_64 = arith.constant 0 : index
      %154 = vector.load %arg13[%c0_62, %c0_63, %c0_64] : memref<2x8x32xf32, #tpu.memory_space<vmem>>, vector<2x8x32xf32>
      tpu.vector_store %arg13[%c0_62, %c0_63, %c0_64], %153 {strides = array<i32>} : memref<2x8x32xf32, #tpu.memory_space<vmem>>, vector<2x8x32xf32>,
    } else {
    }
    %c0 = arith.constant 0 : index
    %c0_1 = arith.constant 0 : index
    %c0_2 = arith.constant 0 : index
    %3 = vector.load %arg13[%c0, %c0_1, %c0_2] : memref<2x8x32xf32, #tpu.memory_space<vmem>>, vector<2x8x32xf32>
    %c0_3 = arith.constant 0 : index
    %c0_4 = arith.constant 0 : index
    %c0_5 = arith.constant 0 : index
    %c0_6 = arith.constant 0 : index
    %4 = vector.load %arg3[%c0_3, %c0_4, %c0_5, %c0_6] : memref<2x1x6x32xf32, #tpu.memory_space<vmem>>, vector<2x1x6x32xf32>
    %5 = vector.shape_cast %4 : vector<2x1x6x32xf32> to vector<2x6x32xf32>
    %6 = vector.extract_strided_slice %5 {offsets = [0, 0, 0], sizes = [2, 1, 32], strides = [1, 1, 1]} : vector<2x6x32xf32> to vector<2x1x32xf32>
    %7 = vector.extract_strided_slice %5 {offsets = [0, 1, 0], sizes = [2, 1, 32], strides = [1, 1, 1]} : vector<2x6x32xf32> to vector<2x1x32xf32>
    %8 = vector.extract_strided_slice %5 {offsets = [0, 2, 0], sizes = [2, 1, 32], strides = [1, 1, 1]} : vector<2x6x32xf32> to vector<2x1x32xf32>
    %9 = vector.extract_strided_slice %5 {offsets = [0, 3, 0], sizes = [2, 1, 32], strides = [1, 1, 1]} : vector<2x6x32xf32> to vector<2x1x32xf32>
    %10 = vector.extract_strided_slice %5 {offsets = [0, 4, 0], sizes = [2, 1, 32], strides = [1, 1, 1]} : vector<2x6x32xf32> to vector<2x1x32xf32>
    %11 = vector.extract_strided_slice %5 {offsets = [0, 5, 0], sizes = [2, 1, 32], strides = [1, 1, 1]} : vector<2x6x32xf32> to vector<2x1x32xf32>
    %cst = arith.constant dense<0.000000e+00> : vector<2x8xf32>
    %12 = vector.multi_reduction <add>, %3, %cst [2] : vector<2x8x32xf32> to vector<2x8xf32>
    %13 = vector.shape_cast %12 : vector<2x8xf32> to vector<2x8x1xf32>
    %cst_7 = arith.constant 3.200000e+01 : f32
    %14 = vector.broadcast %cst_7 : f32 to vector<2x8x1xf32>
    %15 = arith.divf %13, %14 : vector<2x8x1xf32>
    %16 = vector.broadcast %15 : vector<2x8x1xf32> to vector<2x8x32xf32>
    %17 = arith.subf %3, %16 : vector<2x8x32xf32>
    %18 = arith.mulf %17, %17 : vector<2x8x32xf32>
    %cst_8 = arith.constant dense<0.000000e+00> : vector<2x8xf32>
    %19 = vector.multi_reduction <add>, %18, %cst_8 [2] : vector<2x8x32xf32> to vector<2x8xf32>
    %20 = vector.shape_cast %19 : vector<2x8xf32> to vector<2x8x1xf32>
    %cst_9 = arith.constant 3.200000e+01 : f32
    %21 = vector.broadcast %cst_9 : f32 to vector<2x8x1xf32>
    %22 = arith.divf %20, %21 : vector<2x8x1xf32>
    %23 = vector.broadcast %15 : vector<2x8x1xf32> to vector<2x8x32xf32>
    %24 = arith.subf %3, %23 : vector<2x8x32xf32>
    %cst_10 = arith.constant 9.99999974E-6 : f32
    %25 = vector.broadcast %cst_10 : f32 to vector<2x8x1xf32>
    %26 = arith.addf %22, %25 : vector<2x8x1xf32>
    %27 = math.rsqrt %26 : vector<2x8x1xf32>
    %28 = vector.broadcast %27 : vector<2x8x1xf32> to vector<2x8x32xf32>
    %29 = arith.mulf %24, %28 : vector<2x8x32xf32>
    %cst_11 = arith.constant 1.000000e+00 : f32
    %30 = vector.broadcast %cst_11 : f32 to vector<2x1x32xf32>
    %31 = arith.addf %30, %7 : vector<2x1x32xf32>
    %32 = vector.broadcast %31 : vector<2x1x32xf32> to vector<2x8x32xf32>
    %33 = arith.mulf %29, %32 : vector<2x8x32xf32>
    %34 = vector.broadcast %6 : vector<2x1x32xf32> to vector<2x8x32xf32>
    %35 = arith.addf %33, %34 : vector<2x8x32xf32>
    %36 = vector.shape_cast %35 : vector<2x8x32xf32> to vector<16x32xf32>
    %37 = arith.truncf %36 : vector<16x32xf32> to vector<16x32xbf16>
    %c0_12 = arith.constant 0 : index
    %c0_13 = arith.constant 0 : index
    %c0_14 = arith.constant 0 : index
    %38 = vector.load %arg4[%c0_12, %c0_13, %c0_14] : memref<1x32x96xbf16, #tpu.memory_space<vmem>>, vector<1x32x96xbf16>
    %39 = vector.shape_cast %38 : vector<1x32x96xbf16> to vector<32x96xbf16>
    %cst_15 = arith.constant dense<0.000000e+00> : vector<16x96xf32>
    %40 = tpu.matmul %37, %39, %cst_15 {dimension_numbers = #tpu.dot_dimension_numbers<[1], [0], [0], [1], [0, 0, 1, 1], [], []>} : vector<16x32xbf16>, vector<32x96xbf16>, vector<16x96xf32> -> vector<16x96xf32>
    %c0_16 = arith.constant 0 : index
    %c0_17 = arith.constant 0 : index
    %c0_18 = arith.constant 0 : index
    %41 = vector.load %arg5[%c0_16, %c0_17, %c0_18] : memref<1x1x96xf32, #tpu.memory_space<vmem>>, vector<1x1x96xf32>
    %42 = vector.shape_cast %41 : vector<1x1x96xf32> to vector<1x96xf32>
    %43 = vector.broadcast %42 : vector<1x96xf32> to vector<16x96xf32>
    %44 = arith.addf %40, %43 : vector<16x96xf32>
    %45 = vector.shape_cast %44 : vector<16x96xf32> to vector<2x8x96xf32>
    %46 = vector.extract_strided_slice %45 {offsets = [0, 0, 0], sizes = [2, 8, 32], strides = [1, 1, 1]} : vector<2x8x96xf32> to vector<2x8x32xf32>
    %47 = vector.shape_cast %46 : vector<2x8x32xf32> to vector<2x8x4x8xf32>
    %48 = tpu.transpose %47, [0, 2, 1, 3] : vector<2x8x4x8xf32> -> vector<2x4x8x8xf32>
    %49 = vector.shape_cast %48 : vector<2x4x8x8xf32> to vector<8x8x8xf32>
    %50 = arith.truncf %49 : vector<8x8x8xf32> to vector<8x8x8xbf16>
    %51 = vector.extract_strided_slice %45 {offsets = [0, 0, 32], sizes = [2, 8, 32], strides = [1, 1, 1]} : vector<2x8x96xf32> to vector<2x8x32xf32>
    %52 = vector.shape_cast %51 : vector<2x8x32xf32> to vector<2x8x4x8xf32>
    %53 = tpu.transpose %52, [0, 2, 1, 3] : vector<2x8x4x8xf32> -> vector<2x4x8x8xf32>
    %54 = vector.shape_cast %53 : vector<2x4x8x8xf32> to vector<8x8x8xf32>
    %55 = arith.truncf %54 : vector<8x8x8xf32> to vector<8x8x8xbf16>
    %56 = vector.extract_strided_slice %45 {offsets = [0, 0, 64], sizes = [2, 8, 32], strides = [1, 1, 1]} : vector<2x8x96xf32> to vector<2x8x32xf32>
    %57 = vector.shape_cast %56 : vector<2x8x32xf32> to vector<2x8x4x8xf32>
    %58 = tpu.transpose %57, [0, 2, 1, 3] : vector<2x8x4x8xf32> -> vector<2x4x8x8xf32>
    %59 = vector.shape_cast %58 : vector<2x4x8x8xf32> to vector<8x8x8xf32>
    %60 = arith.truncf %59 : vector<8x8x8xf32> to vector<8x8x8xbf16>
    "tpu.trace_start"() <{level = 10 : i32, message = "bqd,bkd->bqk"}> : () -> ()
    %cst_19 = arith.constant dense<0.000000e+00> : vector<8x8x8xf32>
    %61 = tpu.matmul %50, %55, %cst_19 {dimension_numbers = #tpu.dot_dimension_numbers<[2], [2], [1], [1], [0, 0, 0, 1, 1, 1], [0], [0]>} : vector<8x8x8xbf16>, vector<8x8x8xbf16>, vector<8x8x8xf32> -> vector<8x8x8xf32>
    "tpu.trace_stop"() : () -> ()
    %cst_20 = arith.constant 0.353553385 : f32
    %62 = vector.broadcast %cst_20 : f32 to vector<8x8x8xf32>
    %63 = arith.mulf %61, %62 : vector<8x8x8xf32>
    %cst_21 = arith.constant dense<0xFF800000> : vector<8x8xf32>
    %64 = vector.multi_reduction <maximumf>, %63, %cst_21 [2] : vector<8x8x8xf32> to vector<8x8xf32>
    %65 = vector.shape_cast %64 : vector<8x8xf32> to vector<8x8x1xf32>
    %66 = vector.broadcast %65 : vector<8x8x1xf32> to vector<8x8x8xf32>
    %67 = arith.subf %63, %66 : vector<8x8x8xf32>
    %68 = math.exp %67 : vector<8x8x8xf32>
    %cst_22 = arith.constant dense<0.000000e+00> : vector<8x8xf32>
    %69 = vector.multi_reduction <add>, %68, %cst_22 [2] : vector<8x8x8xf32> to vector<8x8xf32>
    %70 = vector.shape_cast %69 : vector<8x8xf32> to vector<8x8x1xf32>
    %71 = tpu.reciprocal %70 {approx = true} : vector<8x8x1xf32> -> vector<8x8x1xf32>
    %72 = vector.broadcast %71 : vector<8x8x1xf32> to vector<8x8x8xf32>
    %73 = arith.mulf %68, %72 : vector<8x8x8xf32>
    %74 = arith.truncf %73 : vector<8x8x8xf32> to vector<8x8x8xbf16>
    "tpu.trace_start"() <{level = 10 : i32, message = "bqk,bkd->bqd"}> : () -> ()
    %cst_23 = arith.constant dense<0.000000e+00> : vector<8x8x8xf32>
    %75 = tpu.matmul %74, %60, %cst_23 {dimension_numbers = #tpu.dot_dimension_numbers<[2], [1], [1], [2], [0, 0, 0, 1, 1, 2], [0], [0]>} : vector<8x8x8xbf16>, vector<8x8x8xbf16>, vector<8x8x8xf32> -> vector<8x8x8xf32>
    "tpu.trace_stop"() : () -> ()
    %76 = vector.shape_cast %75 : vector<8x8x8xf32> to vector<2x4x8x8xf32>
    %77 = tpu.transpose %76, [0, 2, 1, 3] : vector<2x4x8x8xf32> -> vector<2x8x4x8xf32>
    %78 = vector.shape_cast %77 : vector<2x8x4x8xf32> to vector<16x32xf32>
    %79 = arith.truncf %78 : vector<16x32xf32> to vector<16x32xbf16>
    %c0_24 = arith.constant 0 : index
    %c0_25 = arith.constant 0 : index
    %c0_26 = arith.constant 0 : index
    %80 = vector.load %arg6[%c0_24, %c0_25, %c0_26] : memref<1x32x32xbf16, #tpu.memory_space<vmem>>, vector<1x32x32xbf16>
    %81 = vector.shape_cast %80 : vector<1x32x32xbf16> to vector<32x32xbf16>
    %cst_27 = arith.constant dense<0.000000e+00> : vector<16x32xf32>
    %82 = tpu.matmul %79, %81, %cst_27 {dimension_numbers = #tpu.dot_dimension_numbers<[1], [0], [0], [1], [0, 0, 1, 1], [], []>} : vector<16x32xbf16>, vector<32x32xbf16>, vector<16x32xf32> -> vector<16x32xf32>
    %c0_28 = arith.constant 0 : index
    %c0_29 = arith.constant 0 : index
    %c0_30 = arith.constant 0 : index
    %83 = vector.load %arg7[%c0_28, %c0_29, %c0_30] : memref<1x1x32xf32, #tpu.memory_space<vmem>>, vector<1x1x32xf32>
    %84 = vector.shape_cast %83 : vector<1x1x32xf32> to vector<1x32xf32>
    %85 = vector.broadcast %84 : vector<1x32xf32> to vector<16x32xf32>
    %86 = arith.addf %82, %85 : vector<16x32xf32>
    %87 = vector.shape_cast %86 : vector<16x32xf32> to vector<2x8x32xf32>
    %88 = vector.broadcast %8 : vector<2x1x32xf32> to vector<2x8x32xf32>
    %89 = arith.mulf %88, %87 : vector<2x8x32xf32>
    %90 = arith.addf %3, %89 : vector<2x8x32xf32>
    %cst_31 = arith.constant dense<0.000000e+00> : vector<2x8xf32>
    %91 = vector.multi_reduction <add>, %90, %cst_31 [2] : vector<2x8x32xf32> to vector<2x8xf32>
    %92 = vector.shape_cast %91 : vector<2x8xf32> to vector<2x8x1xf32>
    %cst_32 = arith.constant 3.200000e+01 : f32
    %93 = vector.broadcast %cst_32 : f32 to vector<2x8x1xf32>
    %94 = arith.divf %92, %93 : vector<2x8x1xf32>
    %95 = vector.broadcast %94 : vector<2x8x1xf32> to vector<2x8x32xf32>
    %96 = arith.subf %90, %95 : vector<2x8x32xf32>
    %97 = arith.mulf %96, %96 : vector<2x8x32xf32>
    %cst_33 = arith.constant dense<0.000000e+00> : vector<2x8xf32>
    %98 = vector.multi_reduction <add>, %97, %cst_33 [2] : vector<2x8x32xf32> to vector<2x8xf32>
    %99 = vector.shape_cast %98 : vector<2x8xf32> to vector<2x8x1xf32>
    %cst_34 = arith.constant 3.200000e+01 : f32
    %100 = vector.broadcast %cst_34 : f32 to vector<2x8x1xf32>
    %101 = arith.divf %99, %100 : vector<2x8x1xf32>
    %102 = vector.broadcast %94 : vector<2x8x1xf32> to vector<2x8x32xf32>
    %103 = arith.subf %90, %102 : vector<2x8x32xf32>
    %cst_35 = arith.constant 9.99999974E-6 : f32
    %104 = vector.broadcast %cst_35 : f32 to vector<2x8x1xf32>
    %105 = arith.addf %101, %104 : vector<2x8x1xf32>
    %106 = math.rsqrt %105 : vector<2x8x1xf32>
    %107 = vector.broadcast %106 : vector<2x8x1xf32> to vector<2x8x32xf32>
    %108 = arith.mulf %103, %107 : vector<2x8x32xf32>
    %cst_36 = arith.constant 1.000000e+00 : f32
    %109 = vector.broadcast %cst_36 : f32 to vector<2x1x32xf32>
    %110 = arith.addf %109, %10 : vector<2x1x32xf32>
    %111 = vector.broadcast %110 : vector<2x1x32xf32> to vector<2x8x32xf32>
    %112 = arith.mulf %108, %111 : vector<2x8x32xf32>
    %113 = vector.broadcast %9 : vector<2x1x32xf32> to vector<2x8x32xf32>
    %114 = arith.addf %112, %113 : vector<2x8x32xf32>
    %115 = vector.shape_cast %114 : vector<2x8x32xf32> to vector<16x32xf32>
    %116 = arith.truncf %115 : vector<16x32xf32> to vector<16x32xbf16>
    %c0_37 = arith.constant 0 : index
    %c0_38 = arith.constant 0 : index
    %c0_39 = arith.constant 0 : index
    %117 = vector.load %arg8[%c0_37, %c0_38, %c0_39] : memref<1x32x128xbf16, #tpu.memory_space<vmem>>, vector<1x32x128xbf16>
    %118 = vector.shape_cast %117 : vector<1x32x128xbf16> to vector<32x128xbf16>
    %cst_40 = arith.constant dense<0.000000e+00> : vector<16x128xf32>
    %119 = tpu.matmul %116, %118, %cst_40 {dimension_numbers = #tpu.dot_dimension_numbers<[1], [0], [0], [1], [0, 0, 1, 1], [], []>} : vector<16x32xbf16>, vector<32x128xbf16>, vector<16x128xf32> -> vector<16x128xf32>
    %c0_41 = arith.constant 0 : index
    %c0_42 = arith.constant 0 : index
    %c0_43 = arith.constant 0 : index
    %120 = vector.load %arg9[%c0_41, %c0_42, %c0_43] : memref<1x1x128xf32, #tpu.memory_space<vmem>>, vector<1x1x128xf32>
    %121 = vector.shape_cast %120 : vector<1x1x128xf32> to vector<1x128xf32>
    %122 = vector.broadcast %121 : vector<1x128xf32> to vector<16x128xf32>
    %123 = arith.addf %119, %122 : vector<16x128xf32>
    %124 = arith.mulf %123, %123 : vector<16x128xf32>
    %125 = arith.mulf %123, %124 : vector<16x128xf32>
    %cst_44 = arith.constant 4.471500e-02 : f32
    %126 = vector.broadcast %cst_44 : f32 to vector<16x128xf32>
    %127 = arith.mulf %126, %125 : vector<16x128xf32>
    %128 = arith.addf %123, %127 : vector<16x128xf32>
    %cst_45 = arith.constant 0.797884583 : f32
    %129 = vector.broadcast %cst_45 : f32 to vector<16x128xf32>
    %130 = arith.mulf %129, %128 : vector<16x128xf32>
    %131 = math.tanh %130 : vector<16x128xf32>
    %cst_46 = arith.constant 1.000000e+00 : f32
    %132 = vector.broadcast %cst_46 : f32 to vector<16x128xf32>
    %133 = arith.addf %132, %131 : vector<16x128xf32>
    %cst_47 = arith.constant 5.000000e-01 : f32
    %134 = vector.broadcast %cst_47 : f32 to vector<16x128xf32>
    %135 = arith.mulf %134, %133 : vector<16x128xf32>
    %136 = arith.mulf %123, %135 : vector<16x128xf32>
    %137 = arith.truncf %136 : vector<16x128xf32> to vector<16x128xbf16>
    %c0_48 = arith.constant 0 : index
    %c0_49 = arith.constant 0 : index
    %c0_50 = arith.constant 0 : index
    %138 = vector.load %arg10[%c0_48, %c0_49, %c0_50] : memref<1x128x32xbf16, #tpu.memory_space<vmem>>, vector<1x128x32xbf16>
    %139 = vector.shape_cast %138 : vector<1x128x32xbf16> to vector<128x32xbf16>
    %cst_51 = arith.constant dense<0.000000e+00> : vector<16x32xf32>
    %140 = tpu.matmul %137, %139, %cst_51 {dimension_numbers = #tpu.dot_dimension_numbers<[1], [0], [0], [1], [0, 0, 1, 1], [], []>} : vector<16x128xbf16>, vector<128x32xbf16>, vector<16x32xf32> -> vector<16x32xf32>
    %c0_52 = arith.constant 0 : index
    %c0_53 = arith.constant 0 : index
    %c0_54 = arith.constant 0 : index
    %141 = vector.load %arg11[%c0_52, %c0_53, %c0_54] : memref<1x1x32xf32, #tpu.memory_space<vmem>>, vector<1x1x32xf32>
    %142 = vector.shape_cast %141 : vector<1x1x32xf32> to vector<1x32xf32>
    %143 = vector.broadcast %142 : vector<1x32xf32> to vector<16x32xf32>
    %144 = arith.addf %140, %143 : vector<16x32xf32>
    %145 = vector.shape_cast %144 : vector<16x32xf32> to vector<2x8x32xf32>
    %146 = vector.broadcast %11 : vector<2x1x32xf32> to vector<2x8x32xf32>
    %147 = arith.mulf %146, %145 : vector<2x8x32xf32>
    %148 = arith.addf %90, %147 : vector<2x8x32xf32>
    %c0_55 = arith.constant 0 : index
    %c0_56 = arith.constant 0 : index
    %c0_57 = arith.constant 0 : index
    %149 = vector.load %arg13[%c0_55, %c0_56, %c0_57] : memref<2x8x32xf32, #tpu.memory_space<vmem>>, vector<2x8x32xf32>
    tpu.vector_store %arg13[%c0_55, %c0_56, %c0_57], %148 {strides = array<i32>} : memref<2x8x32xf32, #tpu.memory_space<vmem>>, vector<2x8x32xf32>,
    %c1_i32 = arith.constant 1 : i32
    %150 = arith.cmpi eq, %arg1, %c1_i32 : i32
    %151 = arith.extui %150 : i1 to i32
    %c0_i32_58 = arith.constant 0 : i32
    %152 = arith.cmpi ne, %151, %c0_i32_58 : i32
    scf.if %152 {
      %c0_59 = arith.constant 0 : index
      %c0_60 = arith.constant 0 : index
      %c0_61 = arith.constant 0 : index
      %153 = vector.load %arg12[%c0_59, %c0_60, %c0_61] : memref<2x8x32xf32, #tpu.memory_space<vmem>>, vector<2x8x32xf32>
      tpu.vector_store %arg12[%c0_59, %c0_60, %c0_61], %148 {strides = array<i32>} : memref<2x8x32xf32, #tpu.memory_space<vmem>>, vector<2x8x32xf32>,
    } else {
    }
    return
  }
  func.func @transform_0(%arg0: i32, %arg1: i32) -> (i32, i32, i32) {
    %c0_i32 = arith.constant 0 : i32
    %c0_i32_0 = arith.constant 0 : i32
    %c0_i32_1 = arith.constant 0 : i32
    return %arg0, %c0_i32, %c0_i32_0 : i32, i32, i32
  }
  func.func @transform_1(%arg0: i32, %arg1: i32) -> (i32, i32, i32, i32) {
    %c0_i32 = arith.constant 0 : i32
    %c0_i32_0 = arith.constant 0 : i32
    %c0_i32_1 = arith.constant 0 : i32
    return %arg0, %arg1, %c0_i32, %c0_i32_0 : i32, i32, i32, i32
  }
  func.func @transform_2(%arg0: i32, %arg1: i32) -> (i32, i32, i32) {
    %c0_i32 = arith.constant 0 : i32
    %c0_i32_0 = arith.constant 0 : i32
    %c0_i32_1 = arith.constant 0 : i32
    return %arg1, %c0_i32, %c0_i32_0 : i32, i32, i32
  }
  func.func @transform_3(%arg0: i32, %arg1: i32) -> (i32, i32, i32) {
    %c0_i32 = arith.constant 0 : i32
    %c0_i32_0 = arith.constant 0 : i32
    %c0_i32_1 = arith.constant 0 : i32
    return %arg1, %c0_i32, %c0_i32_0 : i32, i32, i32
  }
  func.func @transform_4(%arg0: i32, %arg1: i32) -> (i32, i32, i32) {
    %c0_i32 = arith.constant 0 : i32
    %c0_i32_0 = arith.constant 0 : i32
    %c0_i32_1 = arith.constant 0 : i32
    return %arg1, %c0_i32, %c0_i32_0 : i32, i32, i32
  }
  func.func @transform_5(%arg0: i32, %arg1: i32) -> (i32, i32, i32) {
    %c0_i32 = arith.constant 0 : i32
    %c0_i32_0 = arith.constant 0 : i32
    %c0_i32_1 = arith.constant 0 : i32
    return %arg1, %c0_i32, %c0_i32_0 : i32, i32, i32
  }
  func.func @transform_6(%arg0: i32, %arg1: i32) -> (i32, i32, i32) {
    %c0_i32 = arith.constant 0 : i32
    %c0_i32_0 = arith.constant 0 : i32
    %c0_i32_1 = arith.constant 0 : i32
    return %arg1, %c0_i32, %c0_i32_0 : i32, i32, i32
  }
  func.func @transform_7(%arg0: i32, %arg1: i32) -> (i32, i32, i32) {
    %c0_i32 = arith.constant 0 : i32
    %c0_i32_0 = arith.constant 0 : i32
    %c0_i32_1 = arith.constant 0 : i32
    return %arg1, %c0_i32, %c0_i32_0 : i32, i32, i32
  }
  func.func @transform_8(%arg0: i32, %arg1: i32) -> (i32, i32, i32) {
    %c0_i32 = arith.constant 0 : i32
    %c0_i32_0 = arith.constant 0 : i32
    %c0_i32_1 = arith.constant 0 : i32
    return %arg1, %c0_i32, %c0_i32_0 : i32, i32, i32
  }
  func.func @transform_9(%arg0: i32, %arg1: i32) -> (i32, i32, i32) {
    %c0_i32 = arith.constant 0 : i32
    %c0_i32_0 = arith.constant 0 : i32
    %c0_i32_1 = arith.constant 0 : i32
    return %arg1, %c0_i32, %c0_i32_0 : i32, i32, i32
  }
  func.func @transform_10(%arg0: i32, %arg1: i32) -> (i32, i32, i32) {
    %c0_i32 = arith.constant 0 : i32
    %c0_i32_0 = arith.constant 0 : i32
    %c0_i32_1 = arith.constant 0 : i32
    return %arg0, %c0_i32, %c0_i32_0 : i32, i32, i32
  }
}

module attributes {stable_mosaic.version = 11 : i64} {
  func.func @output_layer_kernel(%arg0: i32, %arg1: memref<1x8x32xf32, #tpu.memory_space<vmem>>, %arg2: memref<1x1x32xf32, #tpu.memory_space<vmem>>, %arg3: memref<32x64xbf16, #tpu.memory_space<vmem>>, %arg4: memref<1x64xf32, #tpu.memory_space<vmem>>, %arg5: memref<32x128xbf16, #tpu.memory_space<vmem>>, %arg6: memref<1x128xf32, #tpu.memory_space<vmem>>, %arg7: memref<1x8x128xf32, #tpu.memory_space<vmem>>) attributes {dimension_semantics = [#tpu.dimension_semantics<parallel>], iteration_bounds = array<i64: 2>, scalar_prefetch = 0 : i64, scratch_operands = 0 : i64, tpu.core_type = #tpu.core_type<tc>, window_params = [{transform_indices = @transform_0, window_bounds = array<i64: 1, 8, 32>}, {transform_indices = @transform_1, window_bounds = array<i64: 1, 1, 32>}, {pipeline_mode = #tpu.pipeline_mode<synchronous>, transform_indices = @transform_2, window_bounds = array<i64: 32, 64>}, {pipeline_mode = #tpu.pipeline_mode<synchronous>, transform_indices = @transform_3, window_bounds = array<i64: 1, 64>}, {pipeline_mode = #tpu.pipeline_mode<synchronous>, transform_indices = @transform_4, window_bounds = array<i64: 32, 128>}, {pipeline_mode = #tpu.pipeline_mode<synchronous>, transform_indices = @transform_5, window_bounds = array<i64: 1, 128>}, {transform_indices = @transform_6, window_bounds = array<i64: 1, 8, 128>}]} {
    %c0 = arith.constant 0 : index
    %c0_0 = arith.constant 0 : index
    %c0_1 = arith.constant 0 : index
    %0 = vector.load %arg1[%c0, %c0_0, %c0_1] : memref<1x8x32xf32, #tpu.memory_space<vmem>>, vector<1x8x32xf32>
    %1 = vector.shape_cast %0 : vector<1x8x32xf32> to vector<8x32xf32>
    %c0_2 = arith.constant 0 : index
    %c0_3 = arith.constant 0 : index
    %c0_4 = arith.constant 0 : index
    %2 = vector.load %arg2[%c0_2, %c0_3, %c0_4] : memref<1x1x32xf32, #tpu.memory_space<vmem>>, vector<1x1x32xf32>
    %3 = vector.shape_cast %2 : vector<1x1x32xf32> to vector<1x32xf32>
    %4 = arith.negf %3 : vector<1x32xf32>
    %5 = math.exp %4 : vector<1x32xf32>
    %cst = arith.constant 1.000000e+00 : f32
    %6 = vector.broadcast %cst : f32 to vector<1x32xf32>
    %7 = arith.addf %6, %5 : vector<1x32xf32>
    %8 = arith.divf %6, %7 : vector<1x32xf32>
    %9 = arith.mulf %3, %8 : vector<1x32xf32>
    %10 = arith.truncf %9 : vector<1x32xf32> to vector<1x32xbf16>
    %c0_5 = arith.constant 0 : index
    %c0_6 = arith.constant 0 : index
    %11 = vector.load %arg3[%c0_5, %c0_6] : memref<32x64xbf16, #tpu.memory_space<vmem>>, vector<32x64xbf16>
    %cst_7 = arith.constant dense<0.000000e+00> : vector<1x64xf32>
    %12 = tpu.matmul %10, %11, %cst_7 {dimension_numbers = #tpu.dot_dimension_numbers<[1], [0], [0], [1], [0, 0, 1, 1], [], []>} : vector<1x32xbf16>, vector<32x64xbf16>, vector<1x64xf32> -> vector<1x64xf32>
    %c0_8 = arith.constant 0 : index
    %c0_9 = arith.constant 0 : index
    %13 = vector.load %arg4[%c0_8, %c0_9] : memref<1x64xf32, #tpu.memory_space<vmem>>, vector<1x64xf32>
    %14 = arith.addf %12, %13 : vector<1x64xf32>
    %15 = vector.extract_strided_slice %14 {offsets = [0, 0], sizes = [1, 32], strides = [1, 1]} : vector<1x64xf32> to vector<1x32xf32>
    %16 = vector.extract_strided_slice %14 {offsets = [0, 32], sizes = [1, 32], strides = [1, 1]} : vector<1x64xf32> to vector<1x32xf32>
    %cst_10 = arith.constant dense<0.000000e+00> : vector<8xf32>
    %17 = vector.multi_reduction <add>, %1, %cst_10 [1] : vector<8x32xf32> to vector<8xf32>
    %18 = vector.shape_cast %17 : vector<8xf32> to vector<8x1xf32>
    %cst_11 = arith.constant 3.200000e+01 : f32
    %19 = vector.broadcast %cst_11 : f32 to vector<8x1xf32>
    %20 = arith.divf %18, %19 : vector<8x1xf32>
    %21 = vector.broadcast %20 : vector<8x1xf32> to vector<8x32xf32>
    %22 = arith.subf %1, %21 : vector<8x32xf32>
    %23 = arith.mulf %22, %22 : vector<8x32xf32>
    %cst_12 = arith.constant dense<0.000000e+00> : vector<8xf32>
    %24 = vector.multi_reduction <add>, %23, %cst_12 [1] : vector<8x32xf32> to vector<8xf32>
    %25 = vector.shape_cast %24 : vector<8xf32> to vector<8x1xf32>
    %cst_13 = arith.constant 3.200000e+01 : f32
    %26 = vector.broadcast %cst_13 : f32 to vector<8x1xf32>
    %27 = arith.divf %25, %26 : vector<8x1xf32>
    %28 = vector.broadcast %20 : vector<8x1xf32> to vector<8x32xf32>
    %29 = arith.subf %1, %28 : vector<8x32xf32>
    %cst_14 = arith.constant 9.99999974E-6 : f32
    %30 = vector.broadcast %cst_14 : f32 to vector<8x1xf32>
    %31 = arith.addf %27, %30 : vector<8x1xf32>
    %32 = math.rsqrt %31 : vector<8x1xf32>
    %33 = vector.broadcast %32 : vector<8x1xf32> to vector<8x32xf32>
    %34 = arith.mulf %29, %33 : vector<8x32xf32>
    %cst_15 = arith.constant 1.000000e+00 : f32
    %35 = vector.broadcast %cst_15 : f32 to vector<1x32xf32>
    %36 = arith.addf %35, %16 : vector<1x32xf32>
    %37 = vector.broadcast %36 : vector<1x32xf32> to vector<8x32xf32>
    %38 = arith.mulf %34, %37 : vector<8x32xf32>
    %39 = vector.broadcast %15 : vector<1x32xf32> to vector<8x32xf32>
    %40 = arith.addf %38, %39 : vector<8x32xf32>
    %41 = arith.truncf %40 : vector<8x32xf32> to vector<8x32xbf16>
    %c0_16 = arith.constant 0 : index
    %c0_17 = arith.constant 0 : index
    %42 = vector.load %arg5[%c0_16, %c0_17] : memref<32x128xbf16, #tpu.memory_space<vmem>>, vector<32x128xbf16>
    %cst_18 = arith.constant dense<0.000000e+00> : vector<8x128xf32>
    %43 = tpu.matmul %41, %42, %cst_18 {dimension_numbers = #tpu.dot_dimension_numbers<[1], [0], [0], [1], [0, 0, 1, 1], [], []>} : vector<8x32xbf16>, vector<32x128xbf16>, vector<8x128xf32> -> vector<8x128xf32>
    %c0_19 = arith.constant 0 : index
    %c0_20 = arith.constant 0 : index
    %44 = vector.load %arg6[%c0_19, %c0_20] : memref<1x128xf32, #tpu.memory_space<vmem>>, vector<1x128xf32>
    %45 = vector.broadcast %44 : vector<1x128xf32> to vector<8x128xf32>
    %46 = arith.addf %43, %45 : vector<8x128xf32>
    %c0_21 = arith.constant 0 : index
    %c0_22 = arith.constant 0 : index
    %c0_23 = arith.constant 0 : index
    %47 = vector.load %arg7[%c0_21, %c0_22, %c0_23] : memref<1x8x128xf32, #tpu.memory_space<vmem>>, vector<1x8x128xf32>
    %48 = vector.shape_cast %47 : vector<1x8x128xf32> to vector<8x128xf32>
    %49 = vector.shape_cast %46 : vector<8x128xf32> to vector<1x8x128xf32>
    tpu.vector_store %arg7[%c0_21, %c0_22, %c0_23], %49 {strides = array<i32>} : memref<1x8x128xf32, #tpu.memory_space<vmem>>, vector<1x8x128xf32>,
    return
  }
  func.func @transform_0(%arg0: i32) -> (i32, i32, i32) {
    %c0_i32 = arith.constant 0 : i32
    %c0_i32_0 = arith.constant 0 : i32
    %c0_i32_1 = arith.constant 0 : i32
    return %arg0, %c0_i32, %c0_i32_0 : i32, i32, i32
  }
  func.func @transform_1(%arg0: i32) -> (i32, i32, i32) {
    %c0_i32 = arith.constant 0 : i32
    %c0_i32_0 = arith.constant 0 : i32
    %c0_i32_1 = arith.constant 0 : i32
    return %arg0, %c0_i32, %c0_i32_0 : i32, i32, i32
  }
  func.func @transform_2(%arg0: i32) -> (i32, i32) {
    %c0_i32 = arith.constant 0 : i32
    %c0_i32_0 = arith.constant 0 : i32
    %c0_i32_1 = arith.constant 0 : i32
    return %c0_i32, %c0_i32_0 : i32, i32
  }
  func.func @transform_3(%arg0: i32) -> (i32, i32) {
    %c0_i32 = arith.constant 0 : i32
    %c0_i32_0 = arith.constant 0 : i32
    %c0_i32_1 = arith.constant 0 : i32
    return %c0_i32, %c0_i32_0 : i32, i32
  }
  func.func @transform_4(%arg0: i32) -> (i32, i32) {
    %c0_i32 = arith.constant 0 : i32
    %c0_i32_0 = arith.constant 0 : i32
    %c0_i32_1 = arith.constant 0 : i32
    return %c0_i32, %c0_i32_0 : i32, i32
  }
  func.func @transform_5(%arg0: i32) -> (i32, i32) {
    %c0_i32 = arith.constant 0 : i32
    %c0_i32_0 = arith.constant 0 : i32
    %c0_i32_1 = arith.constant 0 : i32
    return %c0_i32, %c0_i32_0 : i32, i32
  }
  func.func @transform_6(%arg0: i32) -> (i32, i32, i32) {
    %c0_i32 = arith.constant 0 : i32
    %c0_i32_0 = arith.constant 0 : i32
    %c0_i32_1 = arith.constant 0 : i32
    return %arg0, %c0_i32, %c0_i32_0 : i32, i32, i32
  }
}

</mosaic_0001>

<llo_original>
// kernel: diffusion_transformer_forward.6
$region0: #{diffusion_transformer_forward.6}
  #allocation0 [shape = 'u32[]', space=smem, size = 0x4, offset = 0x4, fixed_abs, tag = 'smem constant byte address 0x4 - core index']
  #allocation1 [shape = 'u32[144,128]{1,0:T(1,128)}', space=vmem, size = 0x12000, scoped, tag = 'internal scratch']
  %s0 = inlined_call_operand.vmem [shape: f32[2,32], index: 0, kind: input, shape index: {}]
  %s1 = inlined_call_operand.vmem [shape: bf16[32,32], index: 1, kind: input, shape index: {}]
  %s2 = inlined_call_operand.vmem [shape: f32[1,32], index: 2, kind: input, shape index: {}]
  %s3 = inlined_call_operand.vmem [shape: bf16[32,32], index: 3, kind: input, shape index: {}]
  %s4 = inlined_call_operand.vmem [shape: f32[1,32], index: 4, kind: input, shape index: {}]
  %s5 = inlined_call_operand.vmem [shape: f32[2,32], index: 5, kind: output, shape index: {}]
  %s6 = sld [smem:[#allocation0]]
  $region30: #{diffusion_transformer_forward.6} parent=0
    _
  %s8 = ssub.s32 1, %s6
  %s9 = scalar_select 0, %s8, %s6
  // Predicated region
  $region2: #{diffusion_transformer_forward.6} parent=0 // pred_check
    _
  $region3: #{diffusion_transformer_forward.6} parent=0 // pred_check_branch
    %11 = sbr.rel (0) target = $region5
  $region4: #{diffusion_transformer_forward.6} parent=0 // pred_region
    _
  $region5: #{diffusion_transformer_forward.6} parent=0 // pred_fallthru
    _
  // Predicated region
  $region6: #{diffusion_transformer_forward.6} parent=0 // pred_check
    _
  $region7: #{diffusion_transformer_forward.6} parent=0 // pred_check_branch
    %13 = sbr.rel (0) target = $region9
  $region8: #{diffusion_transformer_forward.6} parent=0 // pred_region
    _
  $region9: #{diffusion_transformer_forward.6} parent=0 // pred_fallthru
    _
  // Predicated region
  $region10: #{diffusion_transformer_forward.6} parent=0 // pred_check
    _
  $region11: #{diffusion_transformer_forward.6} parent=0 // pred_check_branch
    %15 = sbr.rel (0) target = $region13
  $region12: #{diffusion_transformer_forward.6} parent=0 // pred_region
    _
  $region13: #{diffusion_transformer_forward.6} parent=0 // pred_fallthru
    _
  // Predicated region
  $region14: #{diffusion_transformer_forward.6} parent=0 // pred_check
    _
  $region15: #{diffusion_transformer_forward.6} parent=0 // pred_check_branch
    %17 = sbr.rel (0) target = $region17
  $region16: #{diffusion_transformer_forward.6} parent=0 // pred_region
    _
  $region17: #{diffusion_transformer_forward.6} parent=0 // pred_fallthru
    _
  // Predicated region
  $region18: #{diffusion_transformer_forward.6} parent=0 // pred_check
    _
  $region19: #{diffusion_transformer_forward.6} parent=0 // pred_check_branch
    %19 = sbr.rel (0) target = $region21
  $region20: #{diffusion_transformer_forward.6} parent=0 // pred_region
    _
  $region21: #{diffusion_transformer_forward.6} parent=0 // pred_fallthru
    _
  %v21 = vld [vmem:[%s0] sm:$0x3]
  %v22 = vpack.c.bf16 %v21, %v21
  %v23 = vld [vmem:[%s1] sm:$0xf]
  %v24 = vld [vmem:[%s1 + $0x4] sm:$0xf]
  %v25 = vld [vmem:[%s1 + $0x8] sm:$0xf]
  %v26 = vld [vmem:[%s1 + $0xc] sm:$0xf]
  %v27 = vld [vmem:[%s2] sm:$0x1]
  %v29 = vlaneseq
  %v30 = vshrl.u32 %v29, 7
  %v31 = vsub.s32 0, %v30
  %v32 = vrot.slane %v27, %v31
  %v38 = vunpack.c.l.b16 %v23
  %v39 = vunpack.c.l.b16 %v24
  %v40 = vunpack.c.l.b16 %v25
  %v41 = vunpack.c.l.b16 %v26
  %v42 = vpack.c.b16 %v39, %v38
  %v43 = vpack.c.b16 %v41, %v40
  %vm46 = vcmask 261120
  %v48 = vsel %vm46, %v22, 0
  %50 = vmatprep.subr.bf16.mxu0 0
  %51 = vmatpush1.bf16.msra.mxu0 %v42
  %52 = vmatprep.subr.bf16.mxu0 0
  %53 = vmatpush1.bf16.msra.mxu0 %v43
  %54 = vmatprep.subr.bf16.mxu0 0
  %55 = vmatpush1.bf16.msra.mxu0 0
  %56 = vmatprep.subr.bf16.mxu0 0
  %57 = vmatpush1.bf16.msra.mxu0 0
  %58 = vmatprep.subr.bf16.mxu0 0
  %59 = vmatpush1.bf16.msra.mxu0 0
  %60 = vmatprep.subr.bf16.mxu0 0
  %61 = vmatpush1.bf16.msra.mxu0 0
  %62 = vmatprep.subr.bf16.mxu0 0
  %63 = vmatpush1.bf16.msra.mxu0 0
  %64 = vmatprep.subr.bf16.mxu0 0
  %65 = vmatpush1.bf16.msra.mxu0 0
  %66 = vmatprep.subr.bf16.mxu0 0
  %67 = vmatpush1.bf16.msra.mxu0 0
  %68 = vmatprep.subr.bf16.mxu0 0
  %69 = vmatpush1.bf16.msra.mxu0 0
  %70 = vmatprep.subr.bf16.mxu0 0
  %71 = vmatpush1.bf16.msra.mxu0 0
  %72 = vmatprep.subr.bf16.mxu0 0
  %73 = vmatpush1.bf16.msra.mxu0 0
  %74 = vmatprep.subr.bf16.mxu0 0
  %75 = vmatpush1.bf16.msra.mxu0 0
  %76 = vmatprep.subr.bf16.mxu0 0
  %77 = vmatpush1.bf16.msra.mxu0 0
  %78 = vmatprep.subr.bf16.mxu0 0
  %79 = vmatpush1.bf16.msra.mxu0 0
  %80 = vmatprep.subr.bf16.mxu0 0
  %81 = vmatpush1.bf16.msra.mxu0 0
  %82 = vmatprep.mubr.bf16.mxu0 0
  %83 = vmatmul.mubr.bf16.gmra.mrb[0].mxu0 %v48
  %v84 = vpop.f32.mrb[0].mxu0
  %v85 = vadd.f32 %v32, %v84
  %v86 = vpop.f32.mrb[0].mxu0
  %v87 = vpop.f32.mrb[0].mxu0
  %v88 = vpop.f32.mrb[0].mxu0
  %89 = vdwg.mxu0
  %v90 = vxor.u32 %v85, 2147483648
  %v91 = vmul.f32 %v90, 1.442695
  %v92 = vpow.pop %v91
  %v93 = vadd.f32 %v92, 1.0
  %v94 = vrcp.pop %v93
  %v95 = vmul.f32 1.0, %v94
  %v96 = vmul.f32 %v85, %v95
  %v97 = vpack.c.bf16 %v96, %v96
  %v98 = vld [vmem:[%s3] sm:$0xf]
  %v99 = vld [vmem:[%s3 + $0x4] sm:$0xf]
  %v100 = vld [vmem:[%s3 + $0x8] sm:$0xf]
  %v101 = vld [vmem:[%s3 + $0xc] sm:$0xf]
  %v102 = vld [vmem:[%s4] sm:$0x1]
  %v104 = vlaneseq
  %v105 = vshrl.u32 %v104, 7
  %v106 = vsub.s32 0, %v105
  %v107 = vrot.slane %v102, %v106
  %v113 = vunpack.c.l.b16 %v98
  %v114 = vunpack.c.l.b16 %v99
  %v115 = vunpack.c.l.b16 %v100
  %v116 = vunpack.c.l.b16 %v101
  %v117 = vpack.c.b16 %v114, %v113
  %v118 = vpack.c.b16 %v116, %v115
  %v122 = vsel %vm46, %v97, 0
  %124 = vmatprep.subr.bf16.mxu0 0
  %125 = vmatpush1.bf16.msra.mxu0 %v117
  %126 = vmatprep.subr.bf16.mxu0 0
  %127 = vmatpush1.bf16.msra.mxu0 %v118
  %128 = vmatprep.subr.bf16.mxu0 0
  %129 = vmatpush1.bf16.msra.mxu0 0
  %130 = vmatprep.subr.bf16.mxu0 0
  %131 = vmatpush1.bf16.msra.mxu0 0
  %132 = vmatprep.subr.bf16.mxu0 0
  %133 = vmatpush1.bf16.msra.mxu0 0
  %134 = vmatprep.subr.bf16.mxu0 0
  %135 = vmatpush1.bf16.msra.mxu0 0
  %136 = vmatprep.subr.bf16.mxu0 0
  %137 = vmatpush1.bf16.msra.mxu0 0
  %138 = vmatprep.subr.bf16.mxu0 0
  %139 = vmatpush1.bf16.msra.mxu0 0
  %140 = vmatprep.subr.bf16.mxu0 0
  %141 = vmatpush1.bf16.msra.mxu0 0
  %142 = vmatprep.subr.bf16.mxu0 0
  %143 = vmatpush1.bf16.msra.mxu0 0
  %144 = vmatprep.subr.bf16.mxu0 0
  %145 = vmatpush1.bf16.msra.mxu0 0
  %146 = vmatprep.subr.bf16.mxu0 0
  %147 = vmatpush1.bf16.msra.mxu0 0
  %148 = vmatprep.subr.bf16.mxu0 0
  %149 = vmatpush1.bf16.msra.mxu0 0
  %150 = vmatprep.subr.bf16.mxu0 0
  %151 = vmatpush1.bf16.msra.mxu0 0
  %152 = vmatprep.subr.bf16.mxu0 0
  %153 = vmatpush1.bf16.msra.mxu0 0
  %154 = vmatprep.subr.bf16.mxu0 0
  %155 = vmatpush1.bf16.msra.mxu0 0
  %156 = vmatprep.mubr.bf16.mxu0 0
  %157 = vmatmul.mubr.bf16.gmra.mrb[0].mxu0 %v122
  %v158 = vpop.f32.mrb[0].mxu0
  %v159 = vadd.f32 %v107, %v158
  %v160 = vpop.f32.mrb[0].mxu0
  %v161 = vpop.f32.mrb[0].mxu0
  %v162 = vpop.f32.mrb[0].mxu0
  %163 = vdwg.mxu0
  %vm164 = vcmask 254976
  %165 = vst.msk [vmem:[%s5] sm:$0x3] %vm164, %v159
  // Predicated region
  $region22: #{diffusion_transformer_forward.6} parent=0 // pred_check
    _
  $region23: #{diffusion_transformer_forward.6} parent=0 // pred_check_branch
    %167 = sbr.rel (0) target = $region25
  $region24: #{diffusion_transformer_forward.6} parent=0 // pred_region
    _
  $region25: #{diffusion_transformer_forward.6} parent=0 // pred_fallthru
    _
  // Predicated region
  $region26: #{diffusion_transformer_forward.6} parent=0 // pred_check
    _
  $region27: #{diffusion_transformer_forward.6} parent=0 // pred_check_branch
    %169 = sbr.rel (0) target = $region29
  $region28: #{diffusion_transformer_forward.6} parent=0 // pred_region
    _
  $region29: #{diffusion_transformer_forward.6} parent=0 // pred_fallthru
    _

// kernel: diffusion_transformer_forward.7
$region0: #{diffusion_transformer_forward.7}
  #allocation0 [shape = 'u32[]', space=smem, size = 0x4, offset = 0x4, fixed_abs, tag = 'smem constant byte address 0x4 - core index']
  #allocation1 [shape = 'u32[144,128]{1,0:T(1,128)}', space=vmem, size = 0x12000, scoped, tag = 'internal scratch']
  %s0 = inlined_call_operand.vmem [shape: f32[2,32], index: 0, kind: input, shape index: {}]
  %s1 = inlined_call_operand.vmem [shape: bf16[32,384], index: 1, kind: input, shape index: {}]
  %s2 = inlined_call_operand.vmem [shape: f32[1,384], index: 2, kind: input, shape index: {}]
  %s3 = inlined_call_operand.vmem [shape: f32[2,384], index: 3, kind: output, shape index: {}]
  %s4 = sld [smem:[#allocation0]]
  $region22: #{diffusion_transformer_forward.7} parent=0
    _
  %s6 = ssub.s32 1, %s4
  %s7 = scalar_select 0, %s6, %s4
  // Predicated region
  $region2: #{diffusion_transformer_forward.7} parent=0 // pred_check
    _
  $region3: #{diffusion_transformer_forward.7} parent=0 // pred_check_branch
    %9 = sbr.rel (0) target = $region5
  $region4: #{diffusion_transformer_forward.7} parent=0 // pred_region
    _
  $region5: #{diffusion_transformer_forward.7} parent=0 // pred_fallthru
    _
  // Predicated region
  $region6: #{diffusion_transformer_forward.7} parent=0 // pred_check
    _
  $region7: #{diffusion_transformer_forward.7} parent=0 // pred_check_branch
    %11 = sbr.rel (0) target = $region9
  $region8: #{diffusion_transformer_forward.7} parent=0 // pred_region
    _
  $region9: #{diffusion_transformer_forward.7} parent=0 // pred_fallthru
    _
  // Predicated region
  $region10: #{diffusion_transformer_forward.7} parent=0 // pred_check
    _
  $region11: #{diffusion_transformer_forward.7} parent=0 // pred_check_branch
    %13 = sbr.rel (0) target = $region13
  $region12: #{diffusion_transformer_forward.7} parent=0 // pred_region
    _
  $region13: #{diffusion_transformer_forward.7} parent=0 // pred_fallthru
    _
  %v15 = vld [vmem:[%s0] sm:$0x3]
  %v16 = vxor.u32 %v15, 2147483648
  %v17 = vmul.f32 %v16, 1.442695
  %v18 = vpow.pop %v17
  %v19 = vadd.f32 %v18, 1.0
  %v20 = vrcp.pop %v19
  %v21 = vmul.f32 1.0, %v20
  %v22 = vmul.f32 %v15, %v21
  %v23 = vpack.c.bf16 %v22, %v22
  %v24 = vld [vmem:[%s1] sm:$0xff]
  %v25 = vld [vmem:[%s1 + $0x8] sm:$0xf]
  %v26 = vld [vmem:[%s1 + $0xc] sm:$0xff]
  %v27 = vld [vmem:[%s1 + $0x14] sm:$0xf]
  %v28 = vld [vmem:[%s1 + $0x18] sm:$0xff]
  %v29 = vld [vmem:[%s1 + $0x20] sm:$0xf]
  %v30 = vld [vmem:[%s1 + $0x24] sm:$0xff]
  %v31 = vld [vmem:[%s1 + $0x2c] sm:$0xf]
  %v32 = vld [vmem:[%s2] sm:$0x7]
  %v34 = vlaneseq
  %v35 = vshrl.u32 %v34, 7
  %v36 = vsub.s32 0, %v35
  %v37 = vrot.slane %v32, %v36
  %v38 = vlaneseq
  %v39 = vshrl.u32 %v38, 7
  %v40 = vsub.s32 1, %v39
  %v41 = vrot.slane %v32, %v40
  %v42 = vlaneseq
  %v43 = vshrl.u32 %v42, 7
  %v44 = vsub.s32 2, %v43
  %v45 = vrot.slane %v32, %v44
  %v57 = vunpack.c.l.b16 %v24
  %v58 = vunpack.c.h.b16 %v24
  %v59 = vunpack.c.l.b16 %v25
  %v60 = vunpack.c.l.b16 %v26
  %v61 = vunpack.c.h.b16 %v26
  %v62 = vunpack.c.l.b16 %v27
  %v63 = vunpack.c.l.b16 %v28
  %v64 = vunpack.c.h.b16 %v28
  %v65 = vunpack.c.l.b16 %v29
  %v66 = vunpack.c.l.b16 %v30
  %v67 = vunpack.c.h.b16 %v30
  %v68 = vunpack.c.l.b16 %v31
  %v69 = vpack.c.b16 %v60, %v57
  %v70 = vpack.c.b16 %v61, %v58
  %v71 = vpack.c.b16 %v62, %v59
  %v72 = vpack.c.b16 %v66, %v63
  %v73 = vpack.c.b16 %v67, %v64
  %v74 = vpack.c.b16 %v68, %v65
  %vm81 = vcmask 261120
  %v83 = vsel %vm81, %v23, 0
  %85 = vmatprep.subr.bf16.mxu0 %v70
  %86 = vmatpush1.bf16.msra.mxu0 %v69
  %87 = vmatprep.subr.bf16.mxu0 %v73
  %88 = vmatpush1.bf16.msra.mxu0 %v72
  %89 = vmatprep.subr.bf16.mxu0 0
  %90 = vmatpush1.bf16.msra.mxu0 0
  %91 = vmatprep.subr.bf16.mxu0 0
  %92 = vmatpush1.bf16.msra.mxu0 0
  %93 = vmatprep.subr.bf16.mxu0 0
  %94 = vmatpush1.bf16.msra.mxu0 0
  %95 = vmatprep.subr.bf16.mxu0 0
  %96 = vmatpush1.bf16.msra.mxu0 0
  %97 = vmatprep.subr.bf16.mxu0 0
  %98 = vmatpush1.bf16.msra.mxu0 0
  %99 = vmatprep.subr.bf16.mxu0 0
  %100 = vmatpush1.bf16.msra.mxu0 0
  %101 = vmatprep.subr.bf16.mxu0 0
  %102 = vmatpush1.bf16.msra.mxu0 0
  %103 = vmatprep.subr.bf16.mxu0 0
  %104 = vmatpush1.bf16.msra.mxu0 0
  %105 = vmatprep.subr.bf16.mxu0 0
  %106 = vmatpush1.bf16.msra.mxu0 0
  %107 = vmatprep.subr.bf16.mxu0 0
  %108 = vmatpush1.bf16.msra.mxu0 0
  %109 = vmatprep.subr.bf16.mxu0 0
  %110 = vmatpush1.bf16.msra.mxu0 0
  %111 = vmatprep.subr.bf16.mxu0 0
  %112 = vmatpush1.bf16.msra.mxu0 0
  %113 = vmatprep.subr.bf16.mxu0 0
  %114 = vmatpush1.bf16.msra.mxu0 0
  %115 = vmatprep.subr.bf16.mxu0 0
  %116 = vmatpush1.bf16.msra.mxu0 0
  %117 = vmatprep.mubr.bf16.mxu0 0
  %118 = vmatmul.mubr.bf16.gmra.mrb[0].mxu0 %v83
  %v119 = vpop.f32.mrb[0].mxu0
  %v120 = vadd.f32 %v37, %v119
  %v121 = vpop.f32.mrb[0].mxu0
  %v122 = vadd.f32 %v41, %v121
  %v123 = vpop.f32.mrb[0].mxu0
  %v124 = vpop.f32.mrb[0].mxu0
  %125 = vdwg.mxu0
  %126 = vmatprep.subr.bf16.mxu0 0
  %127 = vmatpush1.bf16.msra.mxu0 %v71
  %128 = vmatprep.subr.bf16.mxu0 0
  %129 = vmatpush1.bf16.msra.mxu0 %v74
  %130 = vmatprep.subr.bf16.mxu0 0
  %131 = vmatpush1.bf16.msra.mxu0 0
  %132 = vmatprep.subr.bf16.mxu0 0
  %133 = vmatpush1.bf16.msra.mxu0 0
  %134 = vmatprep.subr.bf16.mxu0 0
  %135 = vmatpush1.bf16.msra.mxu0 0
  %136 = vmatprep.subr.bf16.mxu0 0
  %137 = vmatpush1.bf16.msra.mxu0 0
  %138 = vmatprep.subr.bf16.mxu0 0
  %139 = vmatpush1.bf16.msra.mxu0 0
  %140 = vmatprep.subr.bf16.mxu0 0
  %141 = vmatpush1.bf16.msra.mxu0 0
  %142 = vmatprep.subr.bf16.mxu0 0
  %143 = vmatpush1.bf16.msra.mxu0 0
  %144 = vmatprep.subr.bf16.mxu0 0
  %145 = vmatpush1.bf16.msra.mxu0 0
  %146 = vmatprep.subr.bf16.mxu0 0
  %147 = vmatpush1.bf16.msra.mxu0 0
  %148 = vmatprep.subr.bf16.mxu0 0
  %149 = vmatpush1.bf16.msra.mxu0 0
  %150 = vmatprep.subr.bf16.mxu0 0
  %151 = vmatpush1.bf16.msra.mxu0 0
  %152 = vmatprep.subr.bf16.mxu0 0
  %153 = vmatpush1.bf16.msra.mxu0 0
  %154 = vmatprep.subr.bf16.mxu0 0
  %155 = vmatpush1.bf16.msra.mxu0 0
  %156 = vmatprep.subr.bf16.mxu0 0
  %157 = vmatpush1.bf16.msra.mxu0 0
  %158 = vmatprep.mubr.bf16.mxu0 0
  %159 = vmatmul.mubr.bf16.gmra.mrb[0].mxu0 %v83
  %v160 = vpop.f32.mrb[0].mxu0
  %v161 = vadd.f32 %v45, %v160
  %v162 = vpop.f32.mrb[0].mxu0
  %v163 = vpop.f32.mrb[0].mxu0
  %v164 = vpop.f32.mrb[0].mxu0
  %165 = vdwg.mxu0
  %v169 = vcombine.low %v120, %v122
  %v171 = vunpack.c.l.s4 1983009808
  %v172 = vunpack.c.0.s8 %v171
  %v173 = vlaneseq
  %v174 = vshrl.u32 %v173, 7
  %v175 = vsub.s32 %v172, %v174
  %v176 = vrot.slane %v169, %v175
  %v178 = vunpack.c.l.s4 1983009808
  %v179 = vunpack.c.0.s8 %v178
  %v180 = vlaneseq
  %v181 = vshrl.u32 %v180, 7
  %v182 = vsub.s32 %v179, %v181
  %v183 = vrot.slane %v161, %v182
  %v184 = vcombine.low %v176, %v183
  %186 = vst [vmem:[%s3] sm:$0x3f] %v184
  // Predicated region
  $region14: #{diffusion_transformer_forward.7} parent=0 // pred_check
    _
  $region15: #{diffusion_transformer_forward.7} parent=0 // pred_check_branch
    %188 = sbr.rel (0) target = $region17
  $region16: #{diffusion_transformer_forward.7} parent=0 // pred_region
    _
  $region17: #{diffusion_transformer_forward.7} parent=0 // pred_fallthru
    _
  // Predicated region
  $region18: #{diffusion_transformer_forward.7} parent=0 // pred_check
    _
  $region19: #{diffusion_transformer_forward.7} parent=0 // pred_check_branch
    %190 = sbr.rel (0) target = $region21
  $region20: #{diffusion_transformer_forward.7} parent=0 // pred_region
    _
  $region21: #{diffusion_transformer_forward.7} parent=0 // pred_fallthru
    _

// kernel: diffusion_transformer_forward.5
$region0: #{diffusion_transformer_forward.5}
  #allocation0 [shape = 'u32[]', space=smem, size = 0x4, offset = 0x4, fixed_abs, tag = 'smem constant byte address 0x4 - core index']
  #allocation1 [shape = 'u32[144,128]{1,0:T(1,128)}', space=vmem, size = 0x12000, scoped, tag = 'internal scratch']
  %s0 = inlined_call_operand.vmem [shape: f32[2,8,16], index: 0, kind: input, shape index: {}]
  %s1 = inlined_call_operand.vmem [shape: s32[2,8,2], index: 1, kind: input, shape index: {}]
  %s2 = inlined_call_operand.vmem [shape: bf16[16,32], index: 2, kind: input, shape index: {}]
  %s3 = inlined_call_operand.vmem [shape: f32[1,32], index: 3, kind: input, shape index: {}]
  %s4 = inlined_call_operand.vmem [shape: f32[10,32], index: 4, kind: input, shape index: {}]
  %s5 = inlined_call_operand.vmem [shape: f32[12,32], index: 5, kind: input, shape index: {}]
  %s6 = inlined_call_operand.hbm [shape: f32[2,8,32], index: 6, kind: output, shape index: {}]
  %s7 = sld [smem:[#allocation0]]
  $region57: #{diffusion_transformer_forward.5} parent=0
    _
  %s9 = ssub.s32 1, %s7
  %s10 = scalar_select 0, %s9, %s7
  $region1: #{diffusion_transformer_forward.5} parent=0
    #allocation2 [shape = 'u8[8192]{0}', space=vmem, size = 0x2000, scoped, tag = 'output window, operand 0']
    #allocation3 [shape = 's32[2]{0}', space=sflag, size = 0x8, scoped, tag = 'scoped memory for diffusion_transformer_forward.5']
    %11 = vsyncpa [#allocation3], 0
    %s12 = scalar_lea.sflag [#allocation3], 1
    %13 = vsyncpa %s12, 0
    loop: start=0, step=1, limit=4
    $region2: #{diffusion_transformer_forward.5} parent=1 // loop_pre_header
      _
    $region3: #{diffusion_transformer_forward.5} parent=1 // loop_header
      %s15 = sphi 0, %s19
      %p16 = scmp.ge.s32.totalorder %s15, 4
      %s25 = sphi 0, %s27
      %s28 = sphi 0, %s25
      %s29 = sphi 0, %s28
      %s45 = sphi 0, %s29
      %s51 = sphi 0, %s53
      %s54 = sphi 0, %s51
      %s55 = sphi 0, %s54
      %s71 = sphi 0, %s55
      %s75 = sphi 0, %s75
      %s77 = sphi 0, %s75
      %s78 = sphi 0, %s77
      %s92 = sphi 0, %s78
      %s96 = sphi 0, %s96
      %s98 = sphi 0, %s96
      %s99 = sphi 0, %s98
      %s113 = sphi 0, %s99
      %s117 = sphi 0, %s117
      %s119 = sphi 0, %s117
      %s120 = sphi 0, %s119
      %s134 = sphi 0, %s120
      %s138 = sphi 0, %s138
      %s140 = sphi 0, %s138
      %s141 = sphi 0, %s140
      %s155 = sphi 0, %s141
      %s161 = sphi 0, %s163
      %s164 = sphi 0, %s161
      %s165 = sphi 0, %s164
      %s181 = sphi 0, %s165
    $region4: #{diffusion_transformer_forward.5} parent=1 // loop_header_branch
      %18 = sbr.rel (%p16) target = $region8
    $region5: #{diffusion_transformer_forward.5} parent=1 // loop_body
      %s20 = ssub.s32 %s15, 1
      %s21 = ssub.s32 %s15, 2
      %s22 = sadd.s32 %s15, 1
      %s23 = ssub.s32 %s15, %s22
      %p24 = scmp.eq.s32.totalorder %s23, 0
      %s26 = sadd.s32 %s25, 1
      %s27 = scalar_select %p24, %s25, %s26
      %p30 = pneg %p24
      %p31 = scmp.eq.s32.totalorder %s15, 1
      %p32 = por %p30, %p31
      %p33 = scmp.ne.s32.totalorder %s25, %s28
      %p34 = scmp.eq.s32.totalorder %s15, 0
      %p35 = por %p33, %p34
      %p36 = scmp.ne.s32.totalorder %s25, %s28
      %p37 = scmp.eq.s32.totalorder %s20, 1
      %p38 = por %p36, %p37
      %p39 = scmp.ne.s32.totalorder %s28, %s29
      %p40 = scmp.eq.s32.totalorder %s20, 0
      %p41 = por %p39, %p40
      %p42 = scmp.ne.s32.totalorder %s28, %s29
      %p43 = scmp.eq.s32.totalorder %s21, 1
      %p44 = por %p42, %p43
      %p46 = scmp.ne.s32.totalorder %s29, %s45
      %p47 = scmp.eq.s32.totalorder %s21, 0
      %p48 = por %p46, %p47
      %s49 = ssub.s32 %s15, %s22
      %p50 = scmp.eq.s32.totalorder %s49, 0
      %s52 = sadd.s32 %s51, 1
      %s53 = scalar_select %p50, %s51, %s52
      %p56 = pneg %p50
      %p57 = scmp.eq.s32.totalorder %s15, 1
      %p58 = por %p56, %p57
      %p59 = scmp.ne.s32.totalorder %s51, %s54
      %p60 = scmp.eq.s32.totalorder %s15, 0
      %p61 = por %p59, %p60
      %p62 = scmp.ne.s32.totalorder %s51, %s54
      %p63 = scmp.eq.s32.totalorder %s20, 1
      %p64 = por %p62, %p63
      %p65 = scmp.ne.s32.totalorder %s54, %s55
      %p66 = scmp.eq.s32.totalorder %s20, 0
      %p67 = por %p65, %p66
      %p68 = scmp.ne.s32.totalorder %s54, %s55
      %p69 = scmp.eq.s32.totalorder %s21, 1
      %p70 = por %p68, %p69
      %p72 = scmp.ne.s32.totalorder %s55, %s71
      %p73 = scmp.eq.s32.totalorder %s21, 0
      %p74 = por %p72, %p73
      %s76 = sadd.s32 %s75, 1
      %p79 = scmp.eq.s32.totalorder %s15, 1
      %p80 = scmp.ne.s32.totalorder %s75, %s77
      %p81 = scmp.eq.s32.totalorder %s15, 0
      %p82 = por %p80, %p81
      %p83 = scmp.ne.s32.totalorder %s75, %s77
      %p84 = scmp.eq.s32.totalorder %s20, 1
      %p85 = por %p83, %p84
      %p86 = scmp.ne.s32.totalorder %s77, %s78
      %p87 = scmp.eq.s32.totalorder %s20, 0
      %p88 = por %p86, %p87
      %p89 = scmp.ne.s32.totalorder %s77, %s78
      %p90 = scmp.eq.s32.totalorder %s21, 1
      %p91 = por %p89, %p90
      %p93 = scmp.ne.s32.totalorder %s78, %s92
      %p94 = scmp.eq.s32.totalorder %s21, 0
      %p95 = por %p93, %p94
      %s97 = sadd.s32 %s96, 1
      %p100 = scmp.eq.s32.totalorder %s15, 1
      %p101 = scmp.ne.s32.totalorder %s96, %s98
      %p102 = scmp.eq.s32.totalorder %s15, 0
      %p103 = por %p101, %p102
      %p104 = scmp.ne.s32.totalorder %s96, %s98
      %p105 = scmp.eq.s32.totalorder %s20, 1
      %p106 = por %p104, %p105
      %p107 = scmp.ne.s32.totalorder %s98, %s99
      %p108 = scmp.eq.s32.totalorder %s20, 0
      %p109 = por %p107, %p108
      %p110 = scmp.ne.s32.totalorder %s98, %s99
      %p111 = scmp.eq.s32.totalorder %s21, 1
      %p112 = por %p110, %p111
      %p114 = scmp.ne.s32.totalorder %s99, %s113
      %p115 = scmp.eq.s32.totalorder %s21, 0
      %p116 = por %p114, %p115
      %s118 = sadd.s32 %s117, 1
      %p121 = scmp.eq.s32.totalorder %s15, 1
      %p122 = scmp.ne.s32.totalorder %s117, %s119
      %p123 = scmp.eq.s32.totalorder %s15, 0
      %p124 = por %p122, %p123
      %p125 = scmp.ne.s32.totalorder %s117, %s119
      %p126 = scmp.eq.s32.totalorder %s20, 1
      %p127 = por %p125, %p126
      %p128 = scmp.ne.s32.totalorder %s119, %s120
      %p129 = scmp.eq.s32.totalorder %s20, 0
      %p130 = por %p128, %p129
      %p131 = scmp.ne.s32.totalorder %s119, %s120
      %p132 = scmp.eq.s32.totalorder %s21, 1
      %p133 = por %p131, %p132
      %p135 = scmp.ne.s32.totalorder %s120, %s134
      %p136 = scmp.eq.s32.totalorder %s21, 0
      %p137 = por %p135, %p136
      %s139 = sadd.s32 %s138, 1
      %p142 = scmp.eq.s32.totalorder %s15, 1
      %p143 = scmp.ne.s32.totalorder %s138, %s140
      %p144 = scmp.eq.s32.totalorder %s15, 0
      %p145 = por %p143, %p144
      %p146 = scmp.ne.s32.totalorder %s138, %s140
      %p147 = scmp.eq.s32.totalorder %s20, 1
      %p148 = por %p146, %p147
      %p149 = scmp.ne.s32.totalorder %s140, %s141
      %p150 = scmp.eq.s32.totalorder %s20, 0
      %p151 = por %p149, %p150
      %p152 = scmp.ne.s32.totalorder %s140, %s141
      %p153 = scmp.eq.s32.totalorder %s21, 1
      %p154 = por %p152, %p153
      %p156 = scmp.ne.s32.totalorder %s141, %s155
      %p157 = scmp.eq.s32.totalorder %s21, 0
      %p158 = por %p156, %p157
      %s159 = ssub.s32 %s15, %s22
      %p160 = scmp.eq.s32.totalorder %s159, 0
      %s162 = sadd.s32 %s161, 1
      %s163 = scalar_select %p160, %s161, %s162
      %p166 = pneg %p160
      %p167 = scmp.eq.s32.totalorder %s15, 1
      %p168 = por %p166, %p167
      %p169 = scmp.ne.s32.totalorder %s161, %s164
      %p170 = scmp.eq.s32.totalorder %s15, 0
      %p171 = por %p169, %p170
      %p172 = scmp.ne.s32.totalorder %s161, %s164
      %p173 = scmp.eq.s32.totalorder %s20, 1
      %p174 = por %p172, %p173
      %p175 = scmp.ne.s32.totalorder %s164, %s165
      %p176 = scmp.eq.s32.totalorder %s20, 0
      %p177 = por %p175, %p176
      %p178 = scmp.ne.s32.totalorder %s164, %s165
      %p179 = scmp.eq.s32.totalorder %s21, 1
      %p180 = por %p178, %p179
      %p182 = scmp.ne.s32.totalorder %s165, %s181
      %p183 = scmp.eq.s32.totalorder %s21, 0
      %p184 = por %p182, %p183
      %p185 = scmp.le.s32.totalorder 1, %s15
      %p186 = scmp.lt.s32.totalorder %s15, 3
      %p187 = pnand %p185, %p186
      %p188 = pneg %p187
      // Predicated region
      $region9: #{diffusion_transformer_forward.5} parent=5 // pred_check
        _
      $region10: #{diffusion_transformer_forward.5} parent=5 // pred_check_branch
        %190 = sbr.rel (%p187) target = $region12
      $region11: #{diffusion_transformer_forward.5} parent=5 // pred_region
        %s191 = ssub.s32 %s15, 1
        // Predicated region
        $region13: #{diffusion_transformer_forward.5} parent=11 // pred_check
          %p192 = pneg %p88
        $region14: #{diffusion_transformer_forward.5} parent=11 // pred_check_branch
          %194 = sbr.rel (%p192) target = $region16
        $region15: #{diffusion_transformer_forward.5} parent=11 // pred_region
          _
        $region16: #{diffusion_transformer_forward.5} parent=11 // pred_fallthru
          _
        // Predicated region
        $region17: #{diffusion_transformer_forward.5} parent=11 // pred_check
          %p195 = pneg %p109
        $region18: #{diffusion_transformer_forward.5} parent=11 // pred_check_branch
          %197 = sbr.rel (%p195) target = $region20
        $region19: #{diffusion_transformer_forward.5} parent=11 // pred_region
          _
        $region20: #{diffusion_transformer_forward.5} parent=11 // pred_fallthru
          _
        // Predicated region
        $region21: #{diffusion_transformer_forward.5} parent=11 // pred_check
          %p198 = pneg %p130
        $region22: #{diffusion_transformer_forward.5} parent=11 // pred_check_branch
          %200 = sbr.rel (%p198) target = $region24
        $region23: #{diffusion_transformer_forward.5} parent=11 // pred_region
          _
        $region24: #{diffusion_transformer_forward.5} parent=11 // pred_fallthru
          _
        // Predicated region
        $region25: #{diffusion_transformer_forward.5} parent=11 // pred_check
          %p201 = pneg %p151
        $region26: #{diffusion_transformer_forward.5} parent=11 // pred_check_branch
          %203 = sbr.rel (%p201) target = $region28
        $region27: #{diffusion_transformer_forward.5} parent=11 // pred_region
          _
        $region28: #{diffusion_transformer_forward.5} parent=11 // pred_fallthru
          _
      $region12: #{diffusion_transformer_forward.5} parent=5 // pred_fallthru
        _
      %p204 = scmp.lt.s32.totalorder %s15, 2
      // Predicated region
      $region29: #{diffusion_transformer_forward.5} parent=5 // pred_check
        %p205 = pneg %p204
      $region30: #{diffusion_transformer_forward.5} parent=5 // pred_check_branch
        %207 = sbr.rel (%p205) target = $region32
      $region31: #{diffusion_transformer_forward.5} parent=5 // pred_region
        // Predicated region
        $region33: #{diffusion_transformer_forward.5} parent=31 // pred_check
          %p208 = pneg %p35
        $region34: #{diffusion_transformer_forward.5} parent=31 // pred_check_branch
          %210 = sbr.rel (%p208) target = $region36
        $region35: #{diffusion_transformer_forward.5} parent=31 // pred_region
          %p211 = scmp.lt.s32.totalorder %s15, 1
          %s212 = scalar_select %p211, %s15, 1
          %s213 = smul.addr %s212, 8
          %s214 = scalar_lea.vmem %s0, %s213
        $region36: #{diffusion_transformer_forward.5} parent=31 // pred_fallthru
          _
        // Predicated region
        $region37: #{diffusion_transformer_forward.5} parent=31 // pred_check
          %p215 = pneg %p61
        $region38: #{diffusion_transformer_forward.5} parent=31 // pred_check_branch
          %217 = sbr.rel (%p215) target = $region40
        $region39: #{diffusion_transformer_forward.5} parent=31 // pred_region
          %p218 = scmp.lt.s32.totalorder %s15, 1
          %s219 = scalar_select %p218, %s15, 1
          %s220 = smul.addr %s219, 8
          %s221 = scalar_lea.vmem %s1, %s220
        $region40: #{diffusion_transformer_forward.5} parent=31 // pred_fallthru
          _
      $region32: #{diffusion_transformer_forward.5} parent=5 // pred_fallthru
        _
      %p222 = scmp.le.s32.totalorder 1, %s15
      %p223 = scmp.lt.s32.totalorder %s15, 3
      %p224 = pnand %p222, %p223
      %p225 = pneg %p224
      // Predicated region
      $region41: #{diffusion_transformer_forward.5} parent=5 // pred_check
        _
      $region42: #{diffusion_transformer_forward.5} parent=5 // pred_check_branch
        %227 = sbr.rel (%p224) target = $region44
      $region43: #{diffusion_transformer_forward.5} parent=5 // pred_region
        %s228 = ssub.s32 %s15, 1
        %p229 = scmp.lt.s32.totalorder %s20, 1
        %s230 = scalar_select %p229, %s20, 1
        %s231 = smul.addr %s230, 8
        %s232 = scalar_lea.vmem %s0, %s231
        %p233 = pneg %p41
        %p234 = pneg %p38
        %p235 = scmp.lt.s32.totalorder %s20, 1
        %s236 = scalar_select %p235, %s20, 1
        %s237 = smul.addr %s236, 8
        %s238 = scalar_lea.vmem %s1, %s237
        %p239 = pneg %p67
        %p240 = pneg %p64
        %p241 = pneg %p88
        %p242 = pneg %p85
        %p243 = pneg %p109
        %p244 = pneg %p106
        %p245 = pneg %p130
        %p246 = pneg %p127
        %p247 = pneg %p151
        %p248 = pneg %p148
        %p249 = pneg %p177
        %p250 = pneg %p174
        %s251 = sand.u32 %s164, 1
        %s252 = scalar_lea.sflag [#allocation3], %s251
        %s253 = sand.u32 %s164, 1
        %s254 = smul.addr %s253, 8
        %s255 = scalar_lea.vmem [#allocation2], %s254
        %p256 = scmp.lt.s32.totalorder %s20, 1
        %s257 = scalar_select %p256, %s20, 1
        %s258 = smul.addr %s257, 8
        %s259 = scalar_lea.vmem %s0, %s258
        %p260 = scmp.lt.s32.totalorder %s20, 1
        %s261 = scalar_select %p260, %s20, 1
        %s262 = smul.addr %s261, 8
        %s263 = scalar_lea.vmem %s1, %s262
        %v265 = vld [vmem:[%s259] sm:$0xff]
        %v266 = vld [vmem:[%s263] sm:$0xff]
        %v267 = vpack.c.bf16 %v265, %v265
        %v268 = vld [vmem:[%s2] sm:$0xf]
        %v269 = vld [vmem:[%s2 + $0x4] sm:$0xf]
        %v270 = vld [vmem:[%s3] sm:$0x1]
        %v272 = vlaneseq
        %v273 = vshrl.u32 %v272, 7
        %v274 = vsub.s32 0, %v273
        %v275 = vrot.slane %v270, %v274
        %v279 = vunpack.c.l.b16 %v268
        %v280 = vunpack.c.l.b16 %v269
        %v281 = vpack.c.b16 %v280, %v279
        %vm283 = vcmask 130048
        %v285 = vsel %vm283, %v267, 0
        %287 = vmatprep.subr.bf16.mxu0 0
        %288 = vmatpush1.bf16.msra.mxu0 %v281
        %289 = vmatprep.subr.bf16.mxu0 0
        %290 = vmatpush1.bf16.msra.mxu0 0
        %291 = vmatprep.subr.bf16.mxu0 0
        %292 = vmatpush1.bf16.msra.mxu0 0
        %293 = vmatprep.subr.bf16.mxu0 0
        %294 = vmatpush1.bf16.msra.mxu0 0
        %295 = vmatprep.subr.bf16.mxu0 0
        %296 = vmatpush1.bf16.msra.mxu0 0
        %297 = vmatprep.subr.bf16.mxu0 0
        %298 = vmatpush1.bf16.msra.mxu0 0
        %299 = vmatprep.subr.bf16.mxu0 0
        %300 = vmatpush1.bf16.msra.mxu0 0
        %301 = vmatprep.subr.bf16.mxu0 0
        %302 = vmatpush1.bf16.msra.mxu0 0
        %303 = vmatprep.subr.bf16.mxu0 0
        %304 = vmatpush1.bf16.msra.mxu0 0
        %305 = vmatprep.subr.bf16.mxu0 0
        %306 = vmatpush1.bf16.msra.mxu0 0
        %307 = vmatprep.subr.bf16.mxu0 0
        %308 = vmatpush1.bf16.msra.mxu0 0
        %309 = vmatprep.subr.bf16.mxu0 0
        %310 = vmatpush1.bf16.msra.mxu0 0
        %311 = vmatprep.subr.bf16.mxu0 0
        %312 = vmatpush1.bf16.msra.mxu0 0
        %313 = vmatprep.subr.bf16.mxu0 0
        %314 = vmatpush1.bf16.msra.mxu0 0
        %315 = vmatprep.subr.bf16.mxu0 0
        %316 = vmatpush1.bf16.msra.mxu0 0
        %317 = vmatprep.subr.bf16.mxu0 0
        %318 = vmatpush1.bf16.msra.mxu0 0
        %319 = vmatprep.mubr.bf16.mxu0 0
        %320 = vmatmul.mubr.bf16.gmra.mrb[0].mxu0 %v285
        %v321 = vpop.f32.mrb[0].mxu0
        %v322 = vadd.f32 %v275, %v321
        %v323 = vpop.f32.mrb[0].mxu0
        %v324 = vpop.f32.mrb[0].mxu0
        %v325 = vpop.f32.mrb[0].mxu0
        %326 = vdwg.mxu0
        %v327 = vld [vmem:[%s4] sm:$0xff]
        %v328 = vld [vmem:[%s4 + $0x8] sm:$0x3]
        %v329 = vlaneseq
        %v330 = vand.u32 %v329, 127
        %331 = vset.pattern.permute.xlu0 0
        %332 = vperm.xlu0 %331, %v266
        %v333 = vpop.permute.xlu0 %332
        %vm334 = vcmp.eq.s32.totalorder %v330, %v333
        %v335 = vsel %vm334, 1, 0
        %v336 = vcvt.s32.f32 %v335
        %vm337 = vcmask 80896
        %v339 = vsel %vm337, %v336, 0
        %vm341 = vcmask 1041408
        %v343 = vsel %vm341, %v328, 0
        %345 = vmatprep.subr.mxu0 0.0
        %346 = vmatpush1.msra.mxu0 %v327
        %347 = vmatprep.subr.mxu0 0.0
        %348 = vmatpush1.msra.mxu0 %v343
        %349 = vmatprep.subr.mxu0 0.0
        %350 = vmatpush1.msra.mxu0 0.0
        %351 = vmatprep.subr.mxu0 0.0
        %352 = vmatpush1.msra.mxu0 0.0
        %353 = vmatprep.subr.mxu0 0.0
        %354 = vmatpush1.msra.mxu0 0.0
        %355 = vmatprep.subr.mxu0 0.0
        %356 = vmatpush1.msra.mxu0 0.0
        %357 = vmatprep.subr.mxu0 0.0
        %358 = vmatpush1.msra.mxu0 0.0
        %359 = vmatprep.subr.mxu0 0.0
        %360 = vmatpush1.msra.mxu0 0.0
        %361 = vmatprep.subr.mxu0 0.0
        %362 = vmatpush1.msra.mxu0 0.0
        %363 = vmatprep.subr.mxu0 0.0
        %364 = vmatpush1.msra.mxu0 0.0
        %365 = vmatprep.subr.mxu0 0.0
        %366 = vmatpush1.msra.mxu0 0.0
        %367 = vmatprep.subr.mxu0 0.0
        %368 = vmatpush1.msra.mxu0 0.0
        %369 = vmatprep.subr.mxu0 0.0
        %370 = vmatpush1.msra.mxu0 0.0
        %371 = vmatprep.subr.mxu0 0.0
        %372 = vmatpush1.msra.mxu0 0.0
        %373 = vmatprep.subr.mxu0 0.0
        %374 = vmatpush1.msra.mxu0 0.0
        %375 = vmatprep.subr.mxu0 0.0
        %376 = vmatpush1.msra.mxu0 0.0
        %377 = vmatprep.subr.mxu0 0.0
        %378 = vmatpush1.msra.mxu0 0.0
        %379 = vmatprep.subr.mxu0 0.0
        %380 = vmatpush1.msra.mxu0 0.0
        %381 = vmatprep.subr.mxu0 0.0
        %382 = vmatpush1.msra.mxu0 0.0
        %383 = vmatprep.subr.mxu0 0.0
        %384 = vmatpush1.msra.mxu0 0.0
        %385 = vmatprep.subr.mxu0 0.0
        %386 = vmatpush1.msra.mxu0 0.0
        %387 = vmatprep.subr.mxu0 0.0
        %388 = vmatpush1.msra.mxu0 0.0
        %389 = vmatprep.subr.mxu0 0.0
        %390 = vmatpush1.msra.mxu0 0.0
        %391 = vmatprep.subr.mxu0 0.0
        %392 = vmatpush1.msra.mxu0 0.0
        %393 = vmatprep.subr.mxu0 0.0
        %394 = vmatpush1.msra.mxu0 0.0
        %395 = vmatprep.subr.mxu0 0.0
        %396 = vmatpush1.msra.mxu0 0.0
        %397 = vmatprep.subr.mxu0 0.0
        %398 = vmatpush1.msra.mxu0 0.0
        %399 = vmatprep.subr.mxu0 0.0
        %400 = vmatpush1.msra.mxu0 0.0
        %401 = vmatprep.subr.mxu0 0.0
        %402 = vmatpush1.msra.mxu0 0.0
        %403 = vmatprep.subr.mxu0 0.0
        %404 = vmatpush1.msra.mxu0 0.0
        %405 = vmatprep.subr.mxu0 0.0
        %406 = vmatpush1.msra.mxu0 0.0
        %407 = vmatprep.subr.mxu0 0.0
        %408 = vmatpush1.msra.mxu0 0.0
        %409 = vmatprep.mubr.f32.mxu0 0.0
        %410 = vmatmul.mubr.f32.gmra.mrb[0].mxu0 %v339
        %v411 = vpop.f32.mrb[0].mxu0
        %v412 = vadd.f32 0.0, %v411
        %v413 = vpop.f32.mrb[0].mxu0
        %414 = vdwg.mxu0
        %v415 = vadd.f32 %v322, %v412
        %v416 = vld [vmem:[%s5] sm:$0xff]
        %v417 = vld [vmem:[%s5 + $0x8] sm:$0xf]
        %418 = vset.pattern.permute.xlu0 1
        %419 = vperm.xlu0 %418, %v266
        %v420 = vpop.permute.xlu0 %419
        %vm421 = vcmp.eq.s32.totalorder %v330, %v420
        %v422 = vsel %vm421, 1, 0
        %v423 = vcvt.s32.f32 %v422
        %vm424 = vcmask 97280
        %v426 = vsel %vm424, %v423, 0
        %vm428 = vcmask 1043456
        %v430 = vsel %vm428, %v417, 0
        %432 = vmatprep.subr.mxu0 0.0
        %433 = vmatpush1.msra.mxu0 %v416
        %434 = vmatprep.subr.mxu0 0.0
        %435 = vmatpush1.msra.mxu0 %v430
        %436 = vmatprep.subr.mxu0 0.0
        %437 = vmatpush1.msra.mxu0 0.0
        %438 = vmatprep.subr.mxu0 0.0
        %439 = vmatpush1.msra.mxu0 0.0
        %440 = vmatprep.subr.mxu0 0.0
        %441 = vmatpush1.msra.mxu0 0.0
        %442 = vmatprep.subr.mxu0 0.0
        %443 = vmatpush1.msra.mxu0 0.0
        %444 = vmatprep.subr.mxu0 0.0
        %445 = vmatpush1.msra.mxu0 0.0
        %446 = vmatprep.subr.mxu0 0.0
        %447 = vmatpush1.msra.mxu0 0.0
        %448 = vmatprep.subr.mxu0 0.0
        %449 = vmatpush1.msra.mxu0 0.0
        %450 = vmatprep.subr.mxu0 0.0
        %451 = vmatpush1.msra.mxu0 0.0
        %452 = vmatprep.subr.mxu0 0.0
        %453 = vmatpush1.msra.mxu0 0.0
        %454 = vmatprep.subr.mxu0 0.0
        %455 = vmatpush1.msra.mxu0 0.0
        %456 = vmatprep.subr.mxu0 0.0
        %457 = vmatpush1.msra.mxu0 0.0
        %458 = vmatprep.subr.mxu0 0.0
        %459 = vmatpush1.msra.mxu0 0.0
        %460 = vmatprep.subr.mxu0 0.0
        %461 = vmatpush1.msra.mxu0 0.0
        %462 = vmatprep.subr.mxu0 0.0
        %463 = vmatpush1.msra.mxu0 0.0
        %464 = vmatprep.subr.mxu0 0.0
        %465 = vmatpush1.msra.mxu0 0.0
        %466 = vmatprep.subr.mxu0 0.0
        %467 = vmatpush1.msra.mxu0 0.0
        %468 = vmatprep.subr.mxu0 0.0
        %469 = vmatpush1.msra.mxu0 0.0
        %470 = vmatprep.subr.mxu0 0.0
        %471 = vmatpush1.msra.mxu0 0.0
        %472 = vmatprep.subr.mxu0 0.0
        %473 = vmatpush1.msra.mxu0 0.0
        %474 = vmatprep.subr.mxu0 0.0
        %475 = vmatpush1.msra.mxu0 0.0
        %476 = vmatprep.subr.mxu0 0.0
        %477 = vmatpush1.msra.mxu0 0.0
        %478 = vmatprep.subr.mxu0 0.0
        %479 = vmatpush1.msra.mxu0 0.0
        %480 = vmatprep.subr.mxu0 0.0
        %481 = vmatpush1.msra.mxu0 0.0
        %482 = vmatprep.subr.mxu0 0.0
        %483 = vmatpush1.msra.mxu0 0.0
        %484 = vmatprep.subr.mxu0 0.0
        %485 = vmatpush1.msra.mxu0 0.0
        %486 = vmatprep.subr.mxu0 0.0
        %487 = vmatpush1.msra.mxu0 0.0
        %488 = vmatprep.subr.mxu0 0.0
        %489 = vmatpush1.msra.mxu0 0.0
        %490 = vmatprep.subr.mxu0 0.0
        %491 = vmatpush1.msra.mxu0 0.0
        %492 = vmatprep.subr.mxu0 0.0
        %493 = vmatpush1.msra.mxu0 0.0
        %494 = vmatprep.subr.mxu0 0.0
        %495 = vmatpush1.msra.mxu0 0.0
        %496 = vmatprep.mubr.f32.mxu0 0.0
        %497 = vmatmul.mubr.f32.gmra.mrb[0].mxu0 %v426
        %v498 = vpop.f32.mrb[0].mxu0
        %v499 = vadd.f32 0.0, %v498
        %v500 = vpop.f32.mrb[0].mxu0
        %501 = vdwg.mxu0
        %v502 = vadd.f32 %v415, %v499
        %vm503 = vcmask 261120
        %504 = vst.msk [vmem:[%s255] sm:$0xff] %vm503, %v502
        %s505 = sand.u32 %s164, 1
        %s506 = scalar_lea.sflag [#allocation3], %s505
        %s507 = sand.u32 %s164, 1
        %s508 = smul.addr %s507, 8
        %s509 = scalar_lea.vmem [#allocation2], %s508
        // Predicated region
        $region45: #{diffusion_transformer_forward.5} parent=43 // pred_check
          %p510 = pneg %p174
        $region46: #{diffusion_transformer_forward.5} parent=43 // pred_check_branch
          %512 = sbr.rel (%p510) target = $region48
        $region47: #{diffusion_transformer_forward.5} parent=43 // pred_region
          %s514 = ssub.s32 128, 128
          %515 = vsyncadd %s506, %s514
          %s516 = smul.addr %s20, 128
          %s517 = scalar_lea.hbm %s6, %s516
          %s519 = sshll.u32 %s509, 4
          %s520 = int_to_ptr.vmem [resolvable:$true] %s519
          %522 = dma.vmem_to_hbm [thread:$0]  %s520, 128, %s517, %s506
        $region48: #{diffusion_transformer_forward.5} parent=43 // pred_fallthru
          _
      $region44: #{diffusion_transformer_forward.5} parent=5 // pred_fallthru
        _
      %p523 = scmp.le.s32.totalorder 2, %s15
      // Predicated region
      $region49: #{diffusion_transformer_forward.5} parent=5 // pred_check
        %p524 = pneg %p523
      $region50: #{diffusion_transformer_forward.5} parent=5 // pred_check_branch
        %526 = sbr.rel (%p524) target = $region52
      $region51: #{diffusion_transformer_forward.5} parent=5 // pred_region
        %s527 = ssub.s32 %s15, 2
        // Predicated region
        $region53: #{diffusion_transformer_forward.5} parent=51 // pred_check
          %p528 = pneg %p180
        $region54: #{diffusion_transformer_forward.5} parent=51 // pred_check_branch
          %530 = sbr.rel (%p528) target = $region56
        $region55: #{diffusion_transformer_forward.5} parent=51 // pred_region
          %s531 = sand.u32 %s165, 1
          %s532 = scalar_lea.sflag [#allocation3], %s531
          %s533 = sand.u32 %s165, 1
          %s534 = smul.addr %s533, 8
          %s535 = scalar_lea.vmem [#allocation2], %s534
          %536 = dma.done %s532, 128
        $region56: #{diffusion_transformer_forward.5} parent=51 // pred_fallthru
          _
      $region52: #{diffusion_transformer_forward.5} parent=5 // pred_fallthru
        _
    $region6: #{diffusion_transformer_forward.5} parent=1 // loop_footer
      %s19 = sadd.s32 1, %s15
    $region7: #{diffusion_transformer_forward.5} parent=1 // loop_footer_branch
      %14 = sbr.rel target = $region3
    $region8: #{diffusion_transformer_forward.5} parent=1 // loop_exit
      _
    %537 = vsyncpa [#allocation3], 1
    %s538 = scalar_lea.sflag [#allocation3], 1
    %539 = vsyncpa %s538, 1

// kernel: diffusion_transformer_forward.9
$region0: #{diffusion_transformer_forward.9}
  #allocation0 [shape = 'u32[]', space=smem, size = 0x4, offset = 0x4, fixed_abs, tag = 'smem constant byte address 0x4 - core index']
  #allocation1 [shape = 'u32[144,128]{1,0:T(1,128)}', space=vmem, size = 0x12000, scoped, tag = 'internal scratch']
  %s0 = inlined_call_operand.vmem [shape: f32[2,8,32], index: 0, kind: input, shape index: {}]
  %s1 = inlined_call_operand.vmem [shape: f32[2,1,32], index: 1, kind: input, shape index: {}]
  %s2 = inlined_call_operand.vmem [shape: bf16[32,64], index: 2, kind: input, shape index: {}]
  %s3 = inlined_call_operand.vmem [shape: f32[1,64], index: 3, kind: input, shape index: {}]
  %s4 = inlined_call_operand.vmem [shape: bf16[32,128], index: 4, kind: input, shape index: {}]
  %s5 = inlined_call_operand.vmem [shape: f32[1,128], index: 5, kind: input, shape index: {}]
  %s6 = inlined_call_operand.hbm [shape: f32[2,8,128], index: 6, kind: output, shape index: {}]
  %s7 = sld [smem:[#allocation0]]
  $region57: #{diffusion_transformer_forward.9} parent=0
    _
  %s9 = ssub.s32 1, %s7
  %s10 = scalar_select 0, %s9, %s7
  $region1: #{diffusion_transformer_forward.9} parent=0
    #allocation2 [shape = 'u8[8192]{0}', space=vmem, size = 0x2000, scoped, tag = 'output window, operand 0']
    #allocation3 [shape = 's32[2]{0}', space=sflag, size = 0x8, scoped, tag = 'scoped memory for diffusion_transformer_forward.9']
    %11 = vsyncpa [#allocation3], 0
    %s12 = scalar_lea.sflag [#allocation3], 1
    %13 = vsyncpa %s12, 0
    loop: start=0, step=1, limit=4
    $region2: #{diffusion_transformer_forward.9} parent=1 // loop_pre_header
      _
    $region3: #{diffusion_transformer_forward.9} parent=1 // loop_header
      %s15 = sphi 0, %s19
      %p16 = scmp.ge.s32.totalorder %s15, 4
      %s25 = sphi 0, %s27
      %s28 = sphi 0, %s25
      %s29 = sphi 0, %s28
      %s45 = sphi 0, %s29
      %s51 = sphi 0, %s53
      %s54 = sphi 0, %s51
      %s55 = sphi 0, %s54
      %s71 = sphi 0, %s55
      %s75 = sphi 0, %s75
      %s77 = sphi 0, %s75
      %s78 = sphi 0, %s77
      %s92 = sphi 0, %s78
      %s96 = sphi 0, %s96
      %s98 = sphi 0, %s96
      %s99 = sphi 0, %s98
      %s113 = sphi 0, %s99
      %s117 = sphi 0, %s117
      %s119 = sphi 0, %s117
      %s120 = sphi 0, %s119
      %s134 = sphi 0, %s120
      %s138 = sphi 0, %s138
      %s140 = sphi 0, %s138
      %s141 = sphi 0, %s140
      %s155 = sphi 0, %s141
      %s161 = sphi 0, %s163
      %s164 = sphi 0, %s161
      %s165 = sphi 0, %s164
      %s181 = sphi 0, %s165
    $region4: #{diffusion_transformer_forward.9} parent=1 // loop_header_branch
      %18 = sbr.rel (%p16) target = $region8
    $region5: #{diffusion_transformer_forward.9} parent=1 // loop_body
      %s20 = ssub.s32 %s15, 1
      %s21 = ssub.s32 %s15, 2
      %s22 = sadd.s32 %s15, 1
      %s23 = ssub.s32 %s15, %s22
      %p24 = scmp.eq.s32.totalorder %s23, 0
      %s26 = sadd.s32 %s25, 1
      %s27 = scalar_select %p24, %s25, %s26
      %p30 = pneg %p24
      %p31 = scmp.eq.s32.totalorder %s15, 1
      %p32 = por %p30, %p31
      %p33 = scmp.ne.s32.totalorder %s25, %s28
      %p34 = scmp.eq.s32.totalorder %s15, 0
      %p35 = por %p33, %p34
      %p36 = scmp.ne.s32.totalorder %s25, %s28
      %p37 = scmp.eq.s32.totalorder %s20, 1
      %p38 = por %p36, %p37
      %p39 = scmp.ne.s32.totalorder %s28, %s29
      %p40 = scmp.eq.s32.totalorder %s20, 0
      %p41 = por %p39, %p40
      %p42 = scmp.ne.s32.totalorder %s28, %s29
      %p43 = scmp.eq.s32.totalorder %s21, 1
      %p44 = por %p42, %p43
      %p46 = scmp.ne.s32.totalorder %s29, %s45
      %p47 = scmp.eq.s32.totalorder %s21, 0
      %p48 = por %p46, %p47
      %s49 = ssub.s32 %s15, %s22
      %p50 = scmp.eq.s32.totalorder %s49, 0
      %s52 = sadd.s32 %s51, 1
      %s53 = scalar_select %p50, %s51, %s52
      %p56 = pneg %p50
      %p57 = scmp.eq.s32.totalorder %s15, 1
      %p58 = por %p56, %p57
      %p59 = scmp.ne.s32.totalorder %s51, %s54
      %p60 = scmp.eq.s32.totalorder %s15, 0
      %p61 = por %p59, %p60
      %p62 = scmp.ne.s32.totalorder %s51, %s54
      %p63 = scmp.eq.s32.totalorder %s20, 1
      %p64 = por %p62, %p63
      %p65 = scmp.ne.s32.totalorder %s54, %s55
      %p66 = scmp.eq.s32.totalorder %s20, 0
      %p67 = por %p65, %p66
      %p68 = scmp.ne.s32.totalorder %s54, %s55
      %p69 = scmp.eq.s32.totalorder %s21, 1
      %p70 = por %p68, %p69
      %p72 = scmp.ne.s32.totalorder %s55, %s71
      %p73 = scmp.eq.s32.totalorder %s21, 0
      %p74 = por %p72, %p73
      %s76 = sadd.s32 %s75, 1
      %p79 = scmp.eq.s32.totalorder %s15, 1
      %p80 = scmp.ne.s32.totalorder %s75, %s77
      %p81 = scmp.eq.s32.totalorder %s15, 0
      %p82 = por %p80, %p81
      %p83 = scmp.ne.s32.totalorder %s75, %s77
      %p84 = scmp.eq.s32.totalorder %s20, 1
      %p85 = por %p83, %p84
      %p86 = scmp.ne.s32.totalorder %s77, %s78
      %p87 = scmp.eq.s32.totalorder %s20, 0
      %p88 = por %p86, %p87
      %p89 = scmp.ne.s32.totalorder %s77, %s78
      %p90 = scmp.eq.s32.totalorder %s21, 1
      %p91 = por %p89, %p90
      %p93 = scmp.ne.s32.totalorder %s78, %s92
      %p94 = scmp.eq.s32.totalorder %s21, 0
      %p95 = por %p93, %p94
      %s97 = sadd.s32 %s96, 1
      %p100 = scmp.eq.s32.totalorder %s15, 1
      %p101 = scmp.ne.s32.totalorder %s96, %s98
      %p102 = scmp.eq.s32.totalorder %s15, 0
      %p103 = por %p101, %p102
      %p104 = scmp.ne.s32.totalorder %s96, %s98
      %p105 = scmp.eq.s32.totalorder %s20, 1
      %p106 = por %p104, %p105
      %p107 = scmp.ne.s32.totalorder %s98, %s99
      %p108 = scmp.eq.s32.totalorder %s20, 0
      %p109 = por %p107, %p108
      %p110 = scmp.ne.s32.totalorder %s98, %s99
      %p111 = scmp.eq.s32.totalorder %s21, 1
      %p112 = por %p110, %p111
      %p114 = scmp.ne.s32.totalorder %s99, %s113
      %p115 = scmp.eq.s32.totalorder %s21, 0
      %p116 = por %p114, %p115
      %s118 = sadd.s32 %s117, 1
      %p121 = scmp.eq.s32.totalorder %s15, 1
      %p122 = scmp.ne.s32.totalorder %s117, %s119
      %p123 = scmp.eq.s32.totalorder %s15, 0
      %p124 = por %p122, %p123
      %p125 = scmp.ne.s32.totalorder %s117, %s119
      %p126 = scmp.eq.s32.totalorder %s20, 1
      %p127 = por %p125, %p126
      %p128 = scmp.ne.s32.totalorder %s119, %s120
      %p129 = scmp.eq.s32.totalorder %s20, 0
      %p130 = por %p128, %p129
      %p131 = scmp.ne.s32.totalorder %s119, %s120
      %p132 = scmp.eq.s32.totalorder %s21, 1
      %p133 = por %p131, %p132
      %p135 = scmp.ne.s32.totalorder %s120, %s134
      %p136 = scmp.eq.s32.totalorder %s21, 0
      %p137 = por %p135, %p136
      %s139 = sadd.s32 %s138, 1
      %p142 = scmp.eq.s32.totalorder %s15, 1
      %p143 = scmp.ne.s32.totalorder %s138, %s140
      %p144 = scmp.eq.s32.totalorder %s15, 0
      %p145 = por %p143, %p144
      %p146 = scmp.ne.s32.totalorder %s138, %s140
      %p147 = scmp.eq.s32.totalorder %s20, 1
      %p148 = por %p146, %p147
      %p149 = scmp.ne.s32.totalorder %s140, %s141
      %p150 = scmp.eq.s32.totalorder %s20, 0
      %p151 = por %p149, %p150
      %p152 = scmp.ne.s32.totalorder %s140, %s141
      %p153 = scmp.eq.s32.totalorder %s21, 1
      %p154 = por %p152, %p153
      %p156 = scmp.ne.s32.totalorder %s141, %s155
      %p157 = scmp.eq.s32.totalorder %s21, 0
      %p158 = por %p156, %p157
      %s159 = ssub.s32 %s15, %s22
      %p160 = scmp.eq.s32.totalorder %s159, 0
      %s162 = sadd.s32 %s161, 1
      %s163 = scalar_select %p160, %s161, %s162
      %p166 = pneg %p160
      %p167 = scmp.eq.s32.totalorder %s15, 1
      %p168 = por %p166, %p167
      %p169 = scmp.ne.s32.totalorder %s161, %s164
      %p170 = scmp.eq.s32.totalorder %s15, 0
      %p171 = por %p169, %p170
      %p172 = scmp.ne.s32.totalorder %s161, %s164
      %p173 = scmp.eq.s32.totalorder %s20, 1
      %p174 = por %p172, %p173
      %p175 = scmp.ne.s32.totalorder %s164, %s165
      %p176 = scmp.eq.s32.totalorder %s20, 0
      %p177 = por %p175, %p176
      %p178 = scmp.ne.s32.totalorder %s164, %s165
      %p179 = scmp.eq.s32.totalorder %s21, 1
      %p180 = por %p178, %p179
      %p182 = scmp.ne.s32.totalorder %s165, %s181
      %p183 = scmp.eq.s32.totalorder %s21, 0
      %p184 = por %p182, %p183
      %p185 = scmp.le.s32.totalorder 1, %s15
      %p186 = scmp.lt.s32.totalorder %s15, 3
      %p187 = pnand %p185, %p186
      %p188 = pneg %p187
      // Predicated region
      $region9: #{diffusion_transformer_forward.9} parent=5 // pred_check
        _
      $region10: #{diffusion_transformer_forward.9} parent=5 // pred_check_branch
        %190 = sbr.rel (%p187) target = $region12
      $region11: #{diffusion_transformer_forward.9} parent=5 // pred_region
        %s191 = ssub.s32 %s15, 1
        // Predicated region
        $region13: #{diffusion_transformer_forward.9} parent=11 // pred_check
          %p192 = pneg %p88
        $region14: #{diffusion_transformer_forward.9} parent=11 // pred_check_branch
          %194 = sbr.rel (%p192) target = $region16
        $region15: #{diffusion_transformer_forward.9} parent=11 // pred_region
          _
        $region16: #{diffusion_transformer_forward.9} parent=11 // pred_fallthru
          _
        // Predicated region
        $region17: #{diffusion_transformer_forward.9} parent=11 // pred_check
          %p195 = pneg %p109
        $region18: #{diffusion_transformer_forward.9} parent=11 // pred_check_branch
          %197 = sbr.rel (%p195) target = $region20
        $region19: #{diffusion_transformer_forward.9} parent=11 // pred_region
          _
        $region20: #{diffusion_transformer_forward.9} parent=11 // pred_fallthru
          _
        // Predicated region
        $region21: #{diffusion_transformer_forward.9} parent=11 // pred_check
          %p198 = pneg %p130
        $region22: #{diffusion_transformer_forward.9} parent=11 // pred_check_branch
          %200 = sbr.rel (%p198) target = $region24
        $region23: #{diffusion_transformer_forward.9} parent=11 // pred_region
          _
        $region24: #{diffusion_transformer_forward.9} parent=11 // pred_fallthru
          _
        // Predicated region
        $region25: #{diffusion_transformer_forward.9} parent=11 // pred_check
          %p201 = pneg %p151
        $region26: #{diffusion_transformer_forward.9} parent=11 // pred_check_branch
          %203 = sbr.rel (%p201) target = $region28
        $region27: #{diffusion_transformer_forward.9} parent=11 // pred_region
          _
        $region28: #{diffusion_transformer_forward.9} parent=11 // pred_fallthru
          _
      $region12: #{diffusion_transformer_forward.9} parent=5 // pred_fallthru
        _
      %p204 = scmp.lt.s32.totalorder %s15, 2
      // Predicated region
      $region29: #{diffusion_transformer_forward.9} parent=5 // pred_check
        %p205 = pneg %p204
      $region30: #{diffusion_transformer_forward.9} parent=5 // pred_check_branch
        %207 = sbr.rel (%p205) target = $region32
      $region31: #{diffusion_transformer_forward.9} parent=5 // pred_region
        // Predicated region
        $region33: #{diffusion_transformer_forward.9} parent=31 // pred_check
          %p208 = pneg %p35
        $region34: #{diffusion_transformer_forward.9} parent=31 // pred_check_branch
          %210 = sbr.rel (%p208) target = $region36
        $region35: #{diffusion_transformer_forward.9} parent=31 // pred_region
          %p211 = scmp.lt.s32.totalorder %s15, 1
          %s212 = scalar_select %p211, %s15, 1
          %s213 = smul.addr %s212, 8
          %s214 = scalar_lea.vmem %s0, %s213
        $region36: #{diffusion_transformer_forward.9} parent=31 // pred_fallthru
          _
        // Predicated region
        $region37: #{diffusion_transformer_forward.9} parent=31 // pred_check
          %p215 = pneg %p61
        $region38: #{diffusion_transformer_forward.9} parent=31 // pred_check_branch
          %217 = sbr.rel (%p215) target = $region40
        $region39: #{diffusion_transformer_forward.9} parent=31 // pred_region
          %p218 = scmp.lt.s32.totalorder %s15, 1
          %s219 = scalar_select %p218, %s15, 1
          %s220 = scalar_lea.vmem %s1, %s219
        $region40: #{diffusion_transformer_forward.9} parent=31 // pred_fallthru
          _
      $region32: #{diffusion_transformer_forward.9} parent=5 // pred_fallthru
        _
      %p221 = scmp.le.s32.totalorder 1, %s15
      %p222 = scmp.lt.s32.totalorder %s15, 3
      %p223 = pnand %p221, %p222
      %p224 = pneg %p223
      // Predicated region
      $region41: #{diffusion_transformer_forward.9} parent=5 // pred_check
        _
      $region42: #{diffusion_transformer_forward.9} parent=5 // pred_check_branch
        %226 = sbr.rel (%p223) target = $region44
      $region43: #{diffusion_transformer_forward.9} parent=5 // pred_region
        %s227 = ssub.s32 %s15, 1
        %p228 = scmp.lt.s32.totalorder %s20, 1
        %s229 = scalar_select %p228, %s20, 1
        %s230 = smul.addr %s229, 8
        %s231 = scalar_lea.vmem %s0, %s230
        %p232 = pneg %p41
        %p233 = pneg %p38
        %p234 = scmp.lt.s32.totalorder %s20, 1
        %s235 = scalar_select %p234, %s20, 1
        %s236 = scalar_lea.vmem %s1, %s235
        %p237 = pneg %p67
        %p238 = pneg %p64
        %p239 = pneg %p88
        %p240 = pneg %p85
        %p241 = pneg %p109
        %p242 = pneg %p106
        %p243 = pneg %p130
        %p244 = pneg %p127
        %p245 = pneg %p151
        %p246 = pneg %p148
        %p247 = pneg %p177
        %p248 = pneg %p174
        %s249 = sand.u32 %s164, 1
        %s250 = scalar_lea.sflag [#allocation3], %s249
        %s251 = sand.u32 %s164, 1
        %s252 = smul.addr %s251, 8
        %s253 = scalar_lea.vmem [#allocation2], %s252
        %p254 = scmp.lt.s32.totalorder %s20, 1
        %s255 = scalar_select %p254, %s20, 1
        %s256 = smul.addr %s255, 8
        %s257 = scalar_lea.vmem %s0, %s256
        %p258 = scmp.lt.s32.totalorder %s20, 1
        %s259 = scalar_select %p258, %s20, 1
        %s260 = scalar_lea.vmem %s1, %s259
        %v262 = vld [vmem:[%s257] sm:$0xff]
        %v263 = vld [vmem:[%s260] sm:$0x1]
        %v264 = vxor.u32 %v263, 2147483648
        %v265 = vmul.f32 %v264, 1.442695
        %v266 = vpow.pop %v265
        %v267 = vadd.f32 %v266, 1.0
        %v268 = vrcp.pop %v267
        %v269 = vmul.f32 1.0, %v268
        %v270 = vmul.f32 %v263, %v269
        %v271 = vpack.c.bf16 %v270, %v270
        %v272 = vld [vmem:[%s2] sm:$0xf]
        %v273 = vld [vmem:[%s2 + $0x4] sm:$0xf]
        %v274 = vld [vmem:[%s2 + $0x8] sm:$0xf]
        %v275 = vld [vmem:[%s2 + $0xc] sm:$0xf]
        %v276 = vld [vmem:[%s3] sm:$0x1]
        %v281 = vunpack.c.l.b16 %v272
        %v282 = vunpack.c.l.b16 %v273
        %v283 = vunpack.c.l.b16 %v274
        %v284 = vunpack.c.l.b16 %v275
        %v285 = vpack.c.b16 %v282, %v281
        %v286 = vpack.c.b16 %v284, %v283
        %vm289 = vcmask 261120
        %v291 = vsel %vm289, %v271, 0
        %293 = vmatprep.subr.bf16.mxu0 0
        %294 = vmatpush1.bf16.msra.mxu0 %v285
        %295 = vmatprep.subr.bf16.mxu0 0
        %296 = vmatpush1.bf16.msra.mxu0 %v286
        %297 = vmatprep.subr.bf16.mxu0 0
        %298 = vmatpush1.bf16.msra.mxu0 0
        %299 = vmatprep.subr.bf16.mxu0 0
        %300 = vmatpush1.bf16.msra.mxu0 0
        %301 = vmatprep.subr.bf16.mxu0 0
        %302 = vmatpush1.bf16.msra.mxu0 0
        %303 = vmatprep.subr.bf16.mxu0 0
        %304 = vmatpush1.bf16.msra.mxu0 0
        %305 = vmatprep.subr.bf16.mxu0 0
        %306 = vmatpush1.bf16.msra.mxu0 0
        %307 = vmatprep.subr.bf16.mxu0 0
        %308 = vmatpush1.bf16.msra.mxu0 0
        %309 = vmatprep.subr.bf16.mxu0 0
        %310 = vmatpush1.bf16.msra.mxu0 0
        %311 = vmatprep.subr.bf16.mxu0 0
        %312 = vmatpush1.bf16.msra.mxu0 0
        %313 = vmatprep.subr.bf16.mxu0 0
        %314 = vmatpush1.bf16.msra.mxu0 0
        %315 = vmatprep.subr.bf16.mxu0 0
        %316 = vmatpush1.bf16.msra.mxu0 0
        %317 = vmatprep.subr.bf16.mxu0 0
        %318 = vmatpush1.bf16.msra.mxu0 0
        %319 = vmatprep.subr.bf16.mxu0 0
        %320 = vmatpush1.bf16.msra.mxu0 0
        %321 = vmatprep.subr.bf16.mxu0 0
        %322 = vmatpush1.bf16.msra.mxu0 0
        %323 = vmatprep.subr.bf16.mxu0 0
        %324 = vmatpush1.bf16.msra.mxu0 0
        %325 = vmatprep.mubr.bf16.mxu0 0
        %326 = vmatmul.mubr.bf16.gmra.mrb[0].mxu0 %v291
        %v327 = vpop.f32.mrb[0].mxu0
        %v328 = vadd.f32 %v276, %v327
        %v329 = vpop.f32.mrb[0].mxu0
        %v330 = vpop.f32.mrb[0].mxu0
        %v331 = vpop.f32.mrb[0].mxu0
        %332 = vdwg.mxu0
        %v333 = vsel %vm289, %v262, 0.0
        %334 = vadd.xlane.f32.xlu0 %v333
        %v335 = vpop.xlane.xlu0 %334
        %v336 = vrcp.pop 32.0
        %v337 = vmul.f32 %v335, %v336
        %v338 = vsub.f32 %v262, %v337
        %v339 = vmul.f32 %v338, %v338
        %v340 = vsel %vm289, %v339, 0.0
        %341 = vadd.xlane.f32.xlu0 %v340
        %v342 = vpop.xlane.xlu0 %341
        %v343 = vmul.f32 %v342, %v336
        %v344 = vadd.f32 %v343, 1e-05
        %v345 = vrsqrt.pop %v344
        %v346 = vmul.f32 %v338, %v345
        %v347 = vadd.f32 %v328, 1.0
        %v348 = vlaneseq
        %v349 = vshrl.u32 %v348, 7
        %v350 = vsub.s32 0, %v349
        %v351 = vrot.slane %v347, %v350
        %353 = vrot.lane.b32.xlu0 %v351, 96
        %v354 = vpop.permute.xlu0 %353
        %v356 = vmul.f32 %v346, %v354
        %v357 = vlaneseq
        %v358 = vshrl.u32 %v357, 7
        %v359 = vsub.s32 0, %v358
        %v360 = vrot.slane %v328, %v359
        %v361 = vadd.f32 %v356, %v360
        %v362 = vpack.c.bf16 %v361, %v361
        %v363 = vld [vmem:[%s4] sm:$0xf]
        %v364 = vld [vmem:[%s4 + $0x4] sm:$0xf]
        %v365 = vld [vmem:[%s4 + $0x8] sm:$0xf]
        %v366 = vld [vmem:[%s4 + $0xc] sm:$0xf]
        %v367 = vld [vmem:[%s5] sm:$0x1]
        %v369 = vlaneseq
        %v370 = vshrl.u32 %v369, 7
        %v371 = vsub.s32 0, %v370
        %v372 = vrot.slane %v367, %v371
        %v378 = vunpack.c.l.b16 %v363
        %v379 = vunpack.c.l.b16 %v364
        %v380 = vunpack.c.l.b16 %v365
        %v381 = vunpack.c.l.b16 %v366
        %v382 = vpack.c.b16 %v379, %v378
        %v383 = vpack.c.b16 %v381, %v380
        %v387 = vsel %vm289, %v362, 0
        %389 = vmatprep.subr.bf16.mxu0 0
        %390 = vmatpush1.bf16.msra.mxu0 %v382
        %391 = vmatprep.subr.bf16.mxu0 0
        %392 = vmatpush1.bf16.msra.mxu0 %v383
        %393 = vmatprep.subr.bf16.mxu0 0
        %394 = vmatpush1.bf16.msra.mxu0 0
        %395 = vmatprep.subr.bf16.mxu0 0
        %396 = vmatpush1.bf16.msra.mxu0 0
        %397 = vmatprep.subr.bf16.mxu0 0
        %398 = vmatpush1.bf16.msra.mxu0 0
        %399 = vmatprep.subr.bf16.mxu0 0
        %400 = vmatpush1.bf16.msra.mxu0 0
        %401 = vmatprep.subr.bf16.mxu0 0
        %402 = vmatpush1.bf16.msra.mxu0 0
        %403 = vmatprep.subr.bf16.mxu0 0
        %404 = vmatpush1.bf16.msra.mxu0 0
        %405 = vmatprep.subr.bf16.mxu0 0
        %406 = vmatpush1.bf16.msra.mxu0 0
        %407 = vmatprep.subr.bf16.mxu0 0
        %408 = vmatpush1.bf16.msra.mxu0 0
        %409 = vmatprep.subr.bf16.mxu0 0
        %410 = vmatpush1.bf16.msra.mxu0 0
        %411 = vmatprep.subr.bf16.mxu0 0
        %412 = vmatpush1.bf16.msra.mxu0 0
        %413 = vmatprep.subr.bf16.mxu0 0
        %414 = vmatpush1.bf16.msra.mxu0 0
        %415 = vmatprep.subr.bf16.mxu0 0
        %416 = vmatpush1.bf16.msra.mxu0 0
        %417 = vmatprep.subr.bf16.mxu0 0
        %418 = vmatpush1.bf16.msra.mxu0 0
        %419 = vmatprep.subr.bf16.mxu0 0
        %420 = vmatpush1.bf16.msra.mxu0 0
        %421 = vmatprep.mubr.bf16.mxu0 0
        %422 = vmatmul.mubr.bf16.gmra.mrb[0].mxu0 %v387
        %v423 = vpop.f32.mrb[0].mxu0
        %v424 = vadd.f32 %v372, %v423
        %v425 = vpop.f32.mrb[0].mxu0
        %v426 = vpop.f32.mrb[0].mxu0
        %v427 = vpop.f32.mrb[0].mxu0
        %428 = vdwg.mxu0
        %429 = vst [vmem:[%s253] sm:$0xff] %v424
        %s430 = sand.u32 %s164, 1
        %s431 = scalar_lea.sflag [#allocation3], %s430
        %s432 = sand.u32 %s164, 1
        %s433 = smul.addr %s432, 8
        %s434 = scalar_lea.vmem [#allocation2], %s433
        // Predicated region
        $region45: #{diffusion_transformer_forward.9} parent=43 // pred_check
          %p435 = pneg %p174
        $region46: #{diffusion_transformer_forward.9} parent=43 // pred_check_branch
          %437 = sbr.rel (%p435) target = $region48
        $region47: #{diffusion_transformer_forward.9} parent=43 // pred_region
          %s439 = ssub.s32 128, 128
          %440 = vsyncadd %s431, %s439
          %s441 = smul.addr %s20, 128
          %s442 = scalar_lea.hbm %s6, %s441
          %s444 = sshll.u32 %s434, 4
          %s445 = int_to_ptr.vmem [resolvable:$true] %s444
          %447 = dma.vmem_to_hbm [thread:$0]  %s445, 128, %s442, %s431
        $region48: #{diffusion_transformer_forward.9} parent=43 // pred_fallthru
          _
      $region44: #{diffusion_transformer_forward.9} parent=5 // pred_fallthru
        _
      %p448 = scmp.le.s32.totalorder 2, %s15
      // Predicated region
      $region49: #{diffusion_transformer_forward.9} parent=5 // pred_check
        %p449 = pneg %p448
      $region50: #{diffusion_transformer_forward.9} parent=5 // pred_check_branch
        %451 = sbr.rel (%p449) target = $region52
      $region51: #{diffusion_transformer_forward.9} parent=5 // pred_region
        %s452 = ssub.s32 %s15, 2
        // Predicated region
        $region53: #{diffusion_transformer_forward.9} parent=51 // pred_check
          %p453 = pneg %p180
        $region54: #{diffusion_transformer_forward.9} parent=51 // pred_check_branch
          %455 = sbr.rel (%p453) target = $region56
        $region55: #{diffusion_transformer_forward.9} parent=51 // pred_region
          %s456 = sand.u32 %s165, 1
          %s457 = scalar_lea.sflag [#allocation3], %s456
          %s458 = sand.u32 %s165, 1
          %s459 = smul.addr %s458, 8
          %s460 = scalar_lea.vmem [#allocation2], %s459
          %461 = dma.done %s457, 128
        $region56: #{diffusion_transformer_forward.9} parent=51 // pred_fallthru
          _
      $region52: #{diffusion_transformer_forward.9} parent=5 // pred_fallthru
        _
    $region6: #{diffusion_transformer_forward.9} parent=1 // loop_footer
      %s19 = sadd.s32 1, %s15
    $region7: #{diffusion_transformer_forward.9} parent=1 // loop_footer_branch
      %14 = sbr.rel target = $region3
    $region8: #{diffusion_transformer_forward.9} parent=1 // loop_exit
      _
    %462 = vsyncpa [#allocation3], 1
    %s463 = scalar_lea.sflag [#allocation3], 1
    %464 = vsyncpa %s463, 1

// kernel: diffusion_transformer_forward.8
$region0: #{diffusion_transformer_forward.8}
  #allocation0 [shape = 'u32[]', space=smem, size = 0x4, offset = 0x4, fixed_abs, tag = 'smem constant byte address 0x4 - core index']
  #allocation1 [shape = 'u32[144,128]{1,0:T(1,128)}', space=vmem, size = 0x12000, scoped, tag = 'internal scratch']
  #allocation2 [shape = 'f32[2,8,32]{2,1,0:T(8,128)}', space=vmem, size = 0x2000, scoped, tag = 'scratch operand']
  %s0 = inlined_call_operand.hbm [shape: f32[2,8,32], index: 0, kind: input, shape index: {}, may-alias: {0,10}]
  %s1 = inlined_call_operand.hbm [shape: f32[2,2,6,32], index: 1, kind: input, shape index: {}]
  %s2 = inlined_call_operand.hbm [shape: bf16[2,32,96], index: 2, kind: input, shape index: {}]
  %s3 = inlined_call_operand.hbm [shape: f32[2,1,96], index: 3, kind: input, shape index: {}]
  %s4 = inlined_call_operand.hbm [shape: bf16[2,32,32], index: 4, kind: input, shape index: {}]
  %s5 = inlined_call_operand.hbm [shape: f32[2,1,32], index: 5, kind: input, shape index: {}]
  %s6 = inlined_call_operand.hbm [shape: bf16[2,32,128], index: 6, kind: input, shape index: {}]
  %s7 = inlined_call_operand.hbm [shape: f32[2,1,128], index: 7, kind: input, shape index: {}]
  %s8 = inlined_call_operand.hbm [shape: bf16[2,128,32], index: 8, kind: input, shape index: {}]
  %s9 = inlined_call_operand.hbm [shape: f32[2,1,32], index: 9, kind: input, shape index: {}]
  %s10 = inlined_call_operand.hbm [shape: f32[2,8,32], index: 10, kind: output, shape index: {}, may-alias: {0,10}]
  %s11 = sld [smem:[#allocation0]]
  $region121: #{diffusion_transformer_forward.8} parent=0
    _
  %s13 = ssub.s32 1, %s11
  %s14 = scalar_select 0, %s13, %s11
  $region1: #{diffusion_transformer_forward.8} parent=0
    #allocation3 [shape = 'u8[8192]{0}', space=vmem, size = 0x2000, scoped, tag = 'input window, operand 0, single buffered']
    #allocation4 [shape = 's32[2]{0}', space=sflag, size = 0x8, scoped, tag = 'scoped memory for diffusion_transformer_forward.8']
    #allocation5 [shape = 's32[2]{0}', space=sflag, size = 0x8, scoped, tag = 'scoped memory for diffusion_transformer_forward.8']
    #allocation6 [shape = 'u8[16384]{0}', space=vmem, size = 0x4000, scoped, tag = 'input window, operand 1']
    #allocation7 [shape = 's32[2]{0}', space=sflag, size = 0x8, scoped, tag = 'scoped memory for diffusion_transformer_forward.8']
    #allocation8 [shape = 'u8[16384]{0}', space=vmem, size = 0x4000, scoped, tag = 'input window, operand 2']
    #allocation9 [shape = 'u8[1024]{0}', space=vmem, size = 0x400, scoped, tag = 'input window, operand 3']
    #allocation10 [shape = 's32[2]{0}', space=sflag, size = 0x8, scoped, tag = 'scoped memory for diffusion_transformer_forward.8']
    #allocation11 [shape = 'u8[16384]{0}', space=vmem, size = 0x4000, scoped, tag = 'input window, operand 4']
    #allocation12 [shape = 'u8[1024]{0}', space=vmem, size = 0x400, scoped, tag = 'input window, operand 5']
    #allocation13 [shape = 's32[2]{0}', space=sflag, size = 0x8, scoped, tag = 'scoped memory for diffusion_transformer_forward.8']
    #allocation14 [shape = 'u8[16384]{0}', space=vmem, size = 0x4000, scoped, tag = 'input window, operand 6']
    #allocation15 [shape = 'u8[1024]{0}', space=vmem, size = 0x400, scoped, tag = 'input window, operand 7']
    #allocation16 [shape = 's32[2]{0}', space=sflag, size = 0x8, scoped, tag = 'scoped memory for diffusion_transformer_forward.8']
    #allocation17 [shape = 'u8[65536]{0}', space=vmem, size = 0x10000, scoped, tag = 'input window, operand 8']
    #allocation18 [shape = 'u8[1024]{0}', space=vmem, size = 0x400, scoped, tag = 'input window, operand 9']
    #allocation19 [shape = 's32[2]{0}', space=sflag, size = 0x8, scoped, tag = 'scoped memory for diffusion_transformer_forward.8']
    #allocation20 [shape = 'u8[8192]{0}', space=vmem, size = 0x2000, scoped, tag = 'output window, operand 0, single buffered']
    %15 = vsyncpa [#allocation4], 0
    %16 = vsyncpa [#allocation7], 0
    %s17 = scalar_lea.sflag [#allocation7], 1
    %18 = vsyncpa %s17, 0
    %19 = vsyncpa [#allocation10], 0
    %s20 = scalar_lea.sflag [#allocation10], 1
    %21 = vsyncpa %s20, 0
    %22 = vsyncpa [#allocation13], 0
    %s23 = scalar_lea.sflag [#allocation13], 1
    %24 = vsyncpa %s23, 0
    %25 = vsyncpa [#allocation16], 0
    %s26 = scalar_lea.sflag [#allocation16], 1
    %27 = vsyncpa %s26, 0
    %28 = vsyncpa [#allocation19], 0
    %s29 = scalar_lea.sflag [#allocation19], 1
    %30 = vsyncpa %s29, 0
    %31 = vsyncpa [#allocation5], 0
    loop: start=0, step=1, limit=4
    $region2: #{diffusion_transformer_forward.8} parent=1 // loop_pre_header
      _
    $region3: #{diffusion_transformer_forward.8} parent=1 // loop_header
      %s33 = sphi 0, %s37
      %p34 = scmp.ge.s32.totalorder %s33, 4
      %s40 = sphi 0, %s52
      %s41 = sphi 0, %s48
      %s42 = sphi 0, %s40
      %s43 = sphi 0, %s41
      %s44 = sphi 0, %s42
      %s45 = sphi 0, %s43
      %s55 = sphi 0, %s57
      %s58 = sphi 0, %s55
      %s59 = sphi 0, %s58
      %s75 = sphi 0, %s59
      %s83 = sphi 0, %s85
      %s86 = sphi 0, %s83
      %s87 = sphi 0, %s86
      %s103 = sphi 0, %s87
      %s109 = sphi 0, %s111
      %s112 = sphi 0, %s109
      %s113 = sphi 0, %s112
      %s129 = sphi 0, %s113
      %s135 = sphi 0, %s137
      %s138 = sphi 0, %s135
      %s139 = sphi 0, %s138
      %s155 = sphi 0, %s139
      %s161 = sphi 0, %s163
      %s164 = sphi 0, %s161
      %s165 = sphi 0, %s164
      %s181 = sphi 0, %s165
      %s187 = sphi 0, %s189
      %s190 = sphi 0, %s187
      %s191 = sphi 0, %s190
      %s207 = sphi 0, %s191
      %s213 = sphi 0, %s215
      %s216 = sphi 0, %s213
      %s217 = sphi 0, %s216
      %s233 = sphi 0, %s217
      %s239 = sphi 0, %s241
      %s242 = sphi 0, %s239
      %s243 = sphi 0, %s242
      %s259 = sphi 0, %s243
      %s265 = sphi 0, %s267
      %s268 = sphi 0, %s265
      %s269 = sphi 0, %s268
      %s285 = sphi 0, %s269
      %s291 = sphi 0, %s293
      %s294 = sphi 0, %s291
      %s295 = sphi 0, %s294
      %s311 = sphi 0, %s295
      %s317 = sphi 0, %s319
      %s320 = sphi 0, %s317
      %s321 = sphi 0, %s320
      %s337 = sphi 0, %s321
    $region4: #{diffusion_transformer_forward.8} parent=1 // loop_header_branch
      %36 = sbr.rel (%p34) target = $region8
    $region5: #{diffusion_transformer_forward.8} parent=1 // loop_body
      %s38 = ssub.s32 %s33, 1
      %s39 = ssub.s32 %s33, 2
      %s46 = sadd.s32 1, %s41
      %p47 = scmp.ge.s32.totalorder %s46, 2
      %s48 = scalar_select %p47, 0, %s46
      %s49 = sadd.s32 1, %s40
      %s50 = scalar_select %p47, %s49, %s40
      %p51 = scmp.ge.s32.totalorder %s50, 1
      %s52 = scalar_select %p51, 0, %s50
      %s53 = ssub.s32 %s40, %s52
      %p54 = scmp.eq.s32.totalorder %s53, 0
      %s56 = sadd.s32 %s55, 1
      %s57 = scalar_select %p54, %s55, %s56
      %p60 = pneg %p54
      %p61 = scmp.eq.s32.totalorder %s33, 1
      %p62 = por %p60, %p61
      %p63 = scmp.ne.s32.totalorder %s55, %s58
      %p64 = scmp.eq.s32.totalorder %s33, 0
      %p65 = por %p63, %p64
      %p66 = scmp.ne.s32.totalorder %s55, %s58
      %p67 = scmp.eq.s32.totalorder %s38, 1
      %p68 = por %p66, %p67
      %p69 = scmp.ne.s32.totalorder %s58, %s59
      %p70 = scmp.eq.s32.totalorder %s38, 0
      %p71 = por %p69, %p70
      %p72 = scmp.ne.s32.totalorder %s58, %s59
      %p73 = scmp.eq.s32.totalorder %s39, 1
      %p74 = por %p72, %p73
      %p76 = scmp.ne.s32.totalorder %s59, %s75
      %p77 = scmp.eq.s32.totalorder %s39, 0
      %p78 = por %p76, %p77
      %s79 = ssub.s32 %s40, %s52
      %s80 = ssub.s32 %s41, %s48
      %s81 = sor.u32 %s79, %s80
      %p82 = scmp.eq.s32.totalorder %s81, 0
      %s84 = sadd.s32 %s83, 1
      %s85 = scalar_select %p82, %s83, %s84
      %p88 = pneg %p82
      %p89 = scmp.eq.s32.totalorder %s33, 1
      %p90 = por %p88, %p89
      %p91 = scmp.ne.s32.totalorder %s83, %s86
      %p92 = scmp.eq.s32.totalorder %s33, 0
      %p93 = por %p91, %p92
      %p94 = scmp.ne.s32.totalorder %s83, %s86
      %p95 = scmp.eq.s32.totalorder %s38, 1
      %p96 = por %p94, %p95
      %p97 = scmp.ne.s32.totalorder %s86, %s87
      %p98 = scmp.eq.s32.totalorder %s38, 0
      %p99 = por %p97, %p98
      %p100 = scmp.ne.s32.totalorder %s86, %s87
      %p101 = scmp.eq.s32.totalorder %s39, 1
      %p102 = por %p100, %p101
      %p104 = scmp.ne.s32.totalorder %s87, %s103
      %p105 = scmp.eq.s32.totalorder %s39, 0
      %p106 = por %p104, %p105
      %s107 = ssub.s32 %s41, %s48
      %p108 = scmp.eq.s32.totalorder %s107, 0
      %s110 = sadd.s32 %s109, 1
      %s111 = scalar_select %p108, %s109, %s110
      %p114 = pneg %p108
      %p115 = scmp.eq.s32.totalorder %s33, 1
      %p116 = por %p114, %p115
      %p117 = scmp.ne.s32.totalorder %s109, %s112
      %p118 = scmp.eq.s32.totalorder %s33, 0
      %p119 = por %p117, %p118
      %p120 = scmp.ne.s32.totalorder %s109, %s112
      %p121 = scmp.eq.s32.totalorder %s38, 1
      %p122 = por %p120, %p121
      %p123 = scmp.ne.s32.totalorder %s112, %s113
      %p124 = scmp.eq.s32.totalorder %s38, 0
      %p125 = por %p123, %p124
      %p126 = scmp.ne.s32.totalorder %s112, %s113
      %p127 = scmp.eq.s32.totalorder %s39, 1
      %p128 = por %p126, %p127
      %p130 = scmp.ne.s32.totalorder %s113, %s129
      %p131 = scmp.eq.s32.totalorder %s39, 0
      %p132 = por %p130, %p131
      %s133 = ssub.s32 %s41, %s48
      %p134 = scmp.eq.s32.totalorder %s133, 0
      %s136 = sadd.s32 %s135, 1
      %s137 = scalar_select %p134, %s135, %s136
      %p140 = pneg %p134
      %p141 = scmp.eq.s32.totalorder %s33, 1
      %p142 = por %p140, %p141
      %p143 = scmp.ne.s32.totalorder %s135, %s138
      %p144 = scmp.eq.s32.totalorder %s33, 0
      %p145 = por %p143, %p144
      %p146 = scmp.ne.s32.totalorder %s135, %s138
      %p147 = scmp.eq.s32.totalorder %s38, 1
      %p148 = por %p146, %p147
      %p149 = scmp.ne.s32.totalorder %s138, %s139
      %p150 = scmp.eq.s32.totalorder %s38, 0
      %p151 = por %p149, %p150
      %p152 = scmp.ne.s32.totalorder %s138, %s139
      %p153 = scmp.eq.s32.totalorder %s39, 1
      %p154 = por %p152, %p153
      %p156 = scmp.ne.s32.totalorder %s139, %s155
      %p157 = scmp.eq.s32.totalorder %s39, 0
      %p158 = por %p156, %p157
      %s159 = ssub.s32 %s41, %s48
      %p160 = scmp.eq.s32.totalorder %s159, 0
      %s162 = sadd.s32 %s161, 1
      %s163 = scalar_select %p160, %s161, %s162
      %p166 = pneg %p160
      %p167 = scmp.eq.s32.totalorder %s33, 1
      %p168 = por %p166, %p167
      %p169 = scmp.ne.s32.totalorder %s161, %s164
      %p170 = scmp.eq.s32.totalorder %s33, 0
      %p171 = por %p169, %p170
      %p172 = scmp.ne.s32.totalorder %s161, %s164
      %p173 = scmp.eq.s32.totalorder %s38, 1
      %p174 = por %p172, %p173
      %p175 = scmp.ne.s32.totalorder %s164, %s165
      %p176 = scmp.eq.s32.totalorder %s38, 0
      %p177 = por %p175, %p176
      %p178 = scmp.ne.s32.totalorder %s164, %s165
      %p179 = scmp.eq.s32.totalorder %s39, 1
      %p180 = por %p178, %p179
      %p182 = scmp.ne.s32.totalorder %s165, %s181
      %p183 = scmp.eq.s32.totalorder %s39, 0
      %p184 = por %p182, %p183
      %s185 = ssub.s32 %s41, %s48
      %p186 = scmp.eq.s32.totalorder %s185, 0
      %s188 = sadd.s32 %s187, 1
      %s189 = scalar_select %p186, %s187, %s188
      %p192 = pneg %p186
      %p193 = scmp.eq.s32.totalorder %s33, 1
      %p194 = por %p192, %p193
      %p195 = scmp.ne.s32.totalorder %s187, %s190
      %p196 = scmp.eq.s32.totalorder %s33, 0
      %p197 = por %p195, %p196
      %p198 = scmp.ne.s32.totalorder %s187, %s190
      %p199 = scmp.eq.s32.totalorder %s38, 1
      %p200 = por %p198, %p199
      %p201 = scmp.ne.s32.totalorder %s190, %s191
      %p202 = scmp.eq.s32.totalorder %s38, 0
      %p203 = por %p201, %p202
      %p204 = scmp.ne.s32.totalorder %s190, %s191
      %p205 = scmp.eq.s32.totalorder %s39, 1
      %p206 = por %p204, %p205
      %p208 = scmp.ne.s32.totalorder %s191, %s207
      %p209 = scmp.eq.s32.totalorder %s39, 0
      %p210 = por %p208, %p209
      %s211 = ssub.s32 %s41, %s48
      %p212 = scmp.eq.s32.totalorder %s211, 0
      %s214 = sadd.s32 %s213, 1
      %s215 = scalar_select %p212, %s213, %s214
      %p218 = pneg %p212
      %p219 = scmp.eq.s32.totalorder %s33, 1
      %p220 = por %p218, %p219
      %p221 = scmp.ne.s32.totalorder %s213, %s216
      %p222 = scmp.eq.s32.totalorder %s33, 0
      %p223 = por %p221, %p222
      %p224 = scmp.ne.s32.totalorder %s213, %s216
      %p225 = scmp.eq.s32.totalorder %s38, 1
      %p226 = por %p224, %p225
      %p227 = scmp.ne.s32.totalorder %s216, %s217
      %p228 = scmp.eq.s32.totalorder %s38, 0
      %p229 = por %p227, %p228
      %p230 = scmp.ne.s32.totalorder %s216, %s217
      %p231 = scmp.eq.s32.totalorder %s39, 1
      %p232 = por %p230, %p231
      %p234 = scmp.ne.s32.totalorder %s217, %s233
      %p235 = scmp.eq.s32.totalorder %s39, 0
      %p236 = por %p234, %p235
      %s237 = ssub.s32 %s41, %s48
      %p238 = scmp.eq.s32.totalorder %s237, 0
      %s240 = sadd.s32 %s239, 1
      %s241 = scalar_select %p238, %s239, %s240
      %p244 = pneg %p238
      %p245 = scmp.eq.s32.totalorder %s33, 1
      %p246 = por %p244, %p245
      %p247 = scmp.ne.s32.totalorder %s239, %s242
      %p248 = scmp.eq.s32.totalorder %s33, 0
      %p249 = por %p247, %p248
      %p250 = scmp.ne.s32.totalorder %s239, %s242
      %p251 = scmp.eq.s32.totalorder %s38, 1
      %p252 = por %p250, %p251
      %p253 = scmp.ne.s32.totalorder %s242, %s243
      %p254 = scmp.eq.s32.totalorder %s38, 0
      %p255 = por %p253, %p254
      %p256 = scmp.ne.s32.totalorder %s242, %s243
      %p257 = scmp.eq.s32.totalorder %s39, 1
      %p258 = por %p256, %p257
      %p260 = scmp.ne.s32.totalorder %s243, %s259
      %p261 = scmp.eq.s32.totalorder %s39, 0
      %p262 = por %p260, %p261
      %s263 = ssub.s32 %s41, %s48
      %p264 = scmp.eq.s32.totalorder %s263, 0
      %s266 = sadd.s32 %s265, 1
      %s267 = scalar_select %p264, %s265, %s266
      %p270 = pneg %p264
      %p271 = scmp.eq.s32.totalorder %s33, 1
      %p272 = por %p270, %p271
      %p273 = scmp.ne.s32.totalorder %s265, %s268
      %p274 = scmp.eq.s32.totalorder %s33, 0
      %p275 = por %p273, %p274
      %p276 = scmp.ne.s32.totalorder %s265, %s268
      %p277 = scmp.eq.s32.totalorder %s38, 1
      %p278 = por %p276, %p277
      %p279 = scmp.ne.s32.totalorder %s268, %s269
      %p280 = scmp.eq.s32.totalorder %s38, 0
      %p281 = por %p279, %p280
      %p282 = scmp.ne.s32.totalorder %s268, %s269
      %p283 = scmp.eq.s32.totalorder %s39, 1
      %p284 = por %p282, %p283
      %p286 = scmp.ne.s32.totalorder %s269, %s285
      %p287 = scmp.eq.s32.totalorder %s39, 0
      %p288 = por %p286, %p287
      %s289 = ssub.s32 %s41, %s48
      %p290 = scmp.eq.s32.totalorder %s289, 0
      %s292 = sadd.s32 %s291, 1
      %s293 = scalar_select %p290, %s291, %s292
      %p296 = pneg %p290
      %p297 = scmp.eq.s32.totalorder %s33, 1
      %p298 = por %p296, %p297
      %p299 = scmp.ne.s32.totalorder %s291, %s294
      %p300 = scmp.eq.s32.totalorder %s33, 0
      %p301 = por %p299, %p300
      %p302 = scmp.ne.s32.totalorder %s291, %s294
      %p303 = scmp.eq.s32.totalorder %s38, 1
      %p304 = por %p302, %p303
      %p305 = scmp.ne.s32.totalorder %s294, %s295
      %p306 = scmp.eq.s32.totalorder %s38, 0
      %p307 = por %p305, %p306
      %p308 = scmp.ne.s32.totalorder %s294, %s295
      %p309 = scmp.eq.s32.totalorder %s39, 1
      %p310 = por %p308, %p309
      %p312 = scmp.ne.s32.totalorder %s295, %s311
      %p313 = scmp.eq.s32.totalorder %s39, 0
      %p314 = por %p312, %p313
      %s315 = ssub.s32 %s40, %s52
      %p316 = scmp.eq.s32.totalorder %s315, 0
      %s318 = sadd.s32 %s317, 1
      %s319 = scalar_select %p316, %s317, %s318
      %p322 = pneg %p316
      %p323 = scmp.eq.s32.totalorder %s33, 1
      %p324 = por %p322, %p323
      %p325 = scmp.ne.s32.totalorder %s317, %s320
      %p326 = scmp.eq.s32.totalorder %s33, 0
      %p327 = por %p325, %p326
      %p328 = scmp.ne.s32.totalorder %s317, %s320
      %p329 = scmp.eq.s32.totalorder %s38, 1
      %p330 = por %p328, %p329
      %p331 = scmp.ne.s32.totalorder %s320, %s321
      %p332 = scmp.eq.s32.totalorder %s38, 0
      %p333 = por %p331, %p332
      %p334 = scmp.ne.s32.totalorder %s320, %s321
      %p335 = scmp.eq.s32.totalorder %s39, 1
      %p336 = por %p334, %p335
      %p338 = scmp.ne.s32.totalorder %s321, %s337
      %p339 = scmp.eq.s32.totalorder %s39, 0
      %p340 = por %p338, %p339
      %p341 = scmp.le.s32.totalorder 1, %s33
      %p342 = scmp.lt.s32.totalorder %s33, 3
      %p343 = pnand %p341, %p342
      %p344 = pneg %p343
      // Predicated region
      $region9: #{diffusion_transformer_forward.8} parent=5 // pred_check
        _
      $region10: #{diffusion_transformer_forward.8} parent=5 // pred_check_branch
        %346 = sbr.rel (%p343) target = $region12
      $region11: #{diffusion_transformer_forward.8} parent=5 // pred_region
        %s347 = ssub.s32 %s33, 1
        // Predicated region
        $region13: #{diffusion_transformer_forward.8} parent=11 // pred_check
          %p348 = pneg %p71
        $region14: #{diffusion_transformer_forward.8} parent=11 // pred_check_branch
          %350 = sbr.rel (%p348) target = $region16
        $region15: #{diffusion_transformer_forward.8} parent=11 // pred_region
          %s351 = smul.u32 2, %s42
          %s353 = ssub.s32 256, 256
          %354 = vsyncadd [#allocation4], %s353
          %s355 = smul.addr %s351, 128
          %s356 = scalar_lea.hbm %s0, %s355
          %s357 = sshll.u32 [#allocation3], 4
          %s358 = int_to_ptr.vmem [resolvable:$true] %s357
          %363 = dma.hbm_to_vmem [thread:$0]  %s356, 256, %s358, [#allocation4], 128, 128, 8
        $region16: #{diffusion_transformer_forward.8} parent=11 // pred_fallthru
          _
      $region12: #{diffusion_transformer_forward.8} parent=5 // pred_fallthru
        _
      %p364 = scmp.lt.s32.totalorder %s33, 2
      // Predicated region
      $region17: #{diffusion_transformer_forward.8} parent=5 // pred_check
        %p365 = pneg %p364
      $region18: #{diffusion_transformer_forward.8} parent=5 // pred_check_branch
        %367 = sbr.rel (%p365) target = $region20
      $region19: #{diffusion_transformer_forward.8} parent=5 // pred_region
        // Predicated region
        $region21: #{diffusion_transformer_forward.8} parent=19 // pred_check
          %p368 = pneg %p93
        $region22: #{diffusion_transformer_forward.8} parent=19 // pred_check_branch
          %370 = sbr.rel (%p368) target = $region24
        $region23: #{diffusion_transformer_forward.8} parent=19 // pred_region
          %s371 = sand.u32 %s33, 1
          %s372 = scalar_lea.sflag [#allocation7], %s371
          %s373 = sand.u32 %s83, 1
          %s374 = smul.addr %s373, 16
          %s375 = scalar_lea.vmem [#allocation6], %s374
          %s376 = smul.u32 2, %s40
          %s378 = ssub.s32 256, 256
          %379 = vsyncadd %s372, %s378
          %s380 = smul.addr %s376, 2
          %s381 = sadd.s32 %s41, %s380
          %s382 = smul.addr %s381, 128
          %s383 = scalar_lea.hbm %s1, %s382
          %s384 = sshll.u32 %s375, 4
          %s385 = int_to_ptr.vmem [resolvable:$true] %s384
          %390 = dma.hbm_to_vmem [thread:$0]  %s383, 256, %s385, %s372, 256, 128, 8
        $region24: #{diffusion_transformer_forward.8} parent=19 // pred_fallthru
          _
        // Predicated region
        $region25: #{diffusion_transformer_forward.8} parent=19 // pred_check
          %p391 = pneg %p119
        $region26: #{diffusion_transformer_forward.8} parent=19 // pred_check_branch
          %393 = sbr.rel (%p391) target = $region28
        $region27: #{diffusion_transformer_forward.8} parent=19 // pred_region
          %s394 = sand.u32 %s33, 1
          %s395 = scalar_lea.sflag [#allocation7], %s394
          %s396 = sand.u32 %s109, 1
          %s397 = smul.addr %s396, 16
          %s398 = scalar_lea.vmem [#allocation8], %s397
          %s400 = ssub.s32 256, 256
          %401 = vsyncadd %s395, %s400
          %s402 = smul.addr %s41, 4
          %s403 = smul.addr %s402, 64
          %s404 = scalar_lea.hbm %s2, %s403
          %s405 = sshll.u32 %s398, 4
          %s406 = int_to_ptr.vmem [resolvable:$true] %s405
          %411 = dma.hbm_to_vmem [thread:$0]  %s404, 256, %s406, %s395, 64, 64, 4
        $region28: #{diffusion_transformer_forward.8} parent=19 // pred_fallthru
          _
        // Predicated region
        $region29: #{diffusion_transformer_forward.8} parent=19 // pred_check
          %p412 = pneg %p145
        $region30: #{diffusion_transformer_forward.8} parent=19 // pred_check_branch
          %414 = sbr.rel (%p412) target = $region32
        $region31: #{diffusion_transformer_forward.8} parent=19 // pred_region
          %s415 = sand.u32 %s33, 1
          %s416 = scalar_lea.sflag [#allocation10], %s415
          %s417 = sand.u32 %s135, 1
          %s418 = scalar_lea.vmem [#allocation9], %s417
          %s420 = ssub.s32 16, 16
          %421 = vsyncadd %s416, %s420
          %s422 = smul.addr %s41, 16
          %s423 = scalar_lea.hbm %s3, %s422
          %s425 = sshll.u32 %s418, 4
          %s426 = int_to_ptr.vmem [resolvable:$true] %s425
          %428 = dma.hbm_to_vmem [thread:$0]  %s423, 16, %s426, %s416
        $region32: #{diffusion_transformer_forward.8} parent=19 // pred_fallthru
          _
        // Predicated region
        $region33: #{diffusion_transformer_forward.8} parent=19 // pred_check
          %p429 = pneg %p171
        $region34: #{diffusion_transformer_forward.8} parent=19 // pred_check_branch
          %431 = sbr.rel (%p429) target = $region36
        $region35: #{diffusion_transformer_forward.8} parent=19 // pred_region
          %s432 = sand.u32 %s33, 1
          %s433 = scalar_lea.sflag [#allocation10], %s432
          %s434 = sand.u32 %s161, 1
          %s435 = smul.addr %s434, 16
          %s436 = scalar_lea.vmem [#allocation11], %s435
          %s438 = ssub.s32 256, 256
          %439 = vsyncadd %s433, %s438
          %s440 = smul.addr %s41, 4
          %s441 = smul.addr %s440, 64
          %s442 = scalar_lea.hbm %s4, %s441
          %s443 = sshll.u32 %s436, 4
          %s444 = int_to_ptr.vmem [resolvable:$true] %s443
          %449 = dma.hbm_to_vmem [thread:$0]  %s442, 256, %s444, %s433, 64, 64, 4
        $region36: #{diffusion_transformer_forward.8} parent=19 // pred_fallthru
          _
        // Predicated region
        $region37: #{diffusion_transformer_forward.8} parent=19 // pred_check
          %p450 = pneg %p197
        $region38: #{diffusion_transformer_forward.8} parent=19 // pred_check_branch
          %452 = sbr.rel (%p450) target = $region40
        $region39: #{diffusion_transformer_forward.8} parent=19 // pred_region
          %s453 = sand.u32 %s33, 1
          %s454 = scalar_lea.sflag [#allocation13], %s453
          %s455 = sand.u32 %s187, 1
          %s456 = scalar_lea.vmem [#allocation12], %s455
          %s458 = ssub.s32 16, 16
          %459 = vsyncadd %s454, %s458
          %s460 = smul.addr %s41, 16
          %s461 = scalar_lea.hbm %s5, %s460
          %s463 = sshll.u32 %s456, 4
          %s464 = int_to_ptr.vmem [resolvable:$true] %s463
          %466 = dma.hbm_to_vmem [thread:$0]  %s461, 16, %s464, %s454
        $region40: #{diffusion_transformer_forward.8} parent=19 // pred_fallthru
          _
        // Predicated region
        $region41: #{diffusion_transformer_forward.8} parent=19 // pred_check
          %p467 = pneg %p223
        $region42: #{diffusion_transformer_forward.8} parent=19 // pred_check_branch
          %469 = sbr.rel (%p467) target = $region44
        $region43: #{diffusion_transformer_forward.8} parent=19 // pred_region
          %s470 = sand.u32 %s33, 1
          %s471 = scalar_lea.sflag [#allocation13], %s470
          %s472 = sand.u32 %s213, 1
          %s473 = smul.addr %s472, 16
          %s474 = scalar_lea.vmem [#allocation14], %s473
          %s476 = ssub.s32 256, 256
          %477 = vsyncadd %s471, %s476
          %s478 = smul.addr %s41, 4
          %s479 = smul.addr %s478, 64
          %s480 = scalar_lea.hbm %s6, %s479
          %s481 = sshll.u32 %s474, 4
          %s482 = int_to_ptr.vmem [resolvable:$true] %s481
          %487 = dma.hbm_to_vmem [thread:$0]  %s480, 256, %s482, %s471, 64, 64, 4
        $region44: #{diffusion_transformer_forward.8} parent=19 // pred_fallthru
          _
        // Predicated region
        $region45: #{diffusion_transformer_forward.8} parent=19 // pred_check
          %p488 = pneg %p249
        $region46: #{diffusion_transformer_forward.8} parent=19 // pred_check_branch
          %490 = sbr.rel (%p488) target = $region48
        $region47: #{diffusion_transformer_forward.8} parent=19 // pred_region
          %s491 = sand.u32 %s33, 1
          %s492 = scalar_lea.sflag [#allocation16], %s491
          %s493 = sand.u32 %s239, 1
          %s494 = scalar_lea.vmem [#allocation15], %s493
          %s496 = ssub.s32 16, 16
          %497 = vsyncadd %s492, %s496
          %s498 = smul.addr %s41, 16
          %s499 = scalar_lea.hbm %s7, %s498
          %s501 = sshll.u32 %s494, 4
          %s502 = int_to_ptr.vmem [resolvable:$true] %s501
          %504 = dma.hbm_to_vmem [thread:$0]  %s499, 16, %s502, %s492
        $region48: #{diffusion_transformer_forward.8} parent=19 // pred_fallthru
          _
        // Predicated region
        $region49: #{diffusion_transformer_forward.8} parent=19 // pred_check
          %p505 = pneg %p275
        $region50: #{diffusion_transformer_forward.8} parent=19 // pred_check_branch
          %507 = sbr.rel (%p505) target = $region52
        $region51: #{diffusion_transformer_forward.8} parent=19 // pred_region
          %s508 = sand.u32 %s33, 1
          %s509 = scalar_lea.sflag [#allocation16], %s508
          %s510 = sand.u32 %s265, 1
          %s511 = smul.addr %s510, 64
          %s512 = scalar_lea.vmem [#allocation17], %s511
          %s514 = ssub.s32 1024, 1024
          %515 = vsyncadd %s509, %s514
          %s516 = smul.addr %s41, 16
          %s517 = smul.addr %s516, 64
          %s518 = scalar_lea.hbm %s8, %s517
          %s519 = sshll.u32 %s512, 4
          %s520 = int_to_ptr.vmem [resolvable:$true] %s519
          %525 = dma.hbm_to_vmem [thread:$0]  %s518, 1024, %s520, %s509, 64, 64, 4
        $region52: #{diffusion_transformer_forward.8} parent=19 // pred_fallthru
          _
        // Predicated region
        $region53: #{diffusion_transformer_forward.8} parent=19 // pred_check
          %p526 = pneg %p301
        $region54: #{diffusion_transformer_forward.8} parent=19 // pred_check_branch
          %528 = sbr.rel (%p526) target = $region56
        $region55: #{diffusion_transformer_forward.8} parent=19 // pred_region
          %s529 = sand.u32 %s291, 1
          %s530 = scalar_lea.sflag [#allocation19], %s529
          %s531 = sand.u32 %s291, 1
          %s532 = scalar_lea.vmem [#allocation18], %s531
          %s534 = ssub.s32 16, 16
          %535 = vsyncadd %s530, %s534
          %s536 = smul.addr %s41, 16
          %s537 = scalar_lea.hbm %s9, %s536
          %s539 = sshll.u32 %s532, 4
          %s540 = int_to_ptr.vmem [resolvable:$true] %s539
          %542 = dma.hbm_to_vmem [thread:$0]  %s537, 16, %s540, %s530
        $region56: #{diffusion_transformer_forward.8} parent=19 // pred_fallthru
          _
      $region20: #{diffusion_transformer_forward.8} parent=5 // pred_fallthru
        _
      %p543 = scmp.le.s32.totalorder 1, %s33
      %p544 = scmp.lt.s32.totalorder %s33, 3
      %p545 = pnand %p543, %p544
      %p546 = pneg %p545
      // Predicated region
      $region57: #{diffusion_transformer_forward.8} parent=5 // pred_check
        _
      $region58: #{diffusion_transformer_forward.8} parent=5 // pred_check_branch
        %548 = sbr.rel (%p545) target = $region60
      $region59: #{diffusion_transformer_forward.8} parent=5 // pred_region
        %s549 = ssub.s32 %s33, 1
        // Predicated region
        $region61: #{diffusion_transformer_forward.8} parent=59 // pred_check
          %p550 = pneg %p71
        $region62: #{diffusion_transformer_forward.8} parent=59 // pred_check_branch
          %552 = sbr.rel (%p550) target = $region64
        $region63: #{diffusion_transformer_forward.8} parent=59 // pred_region
          %553 = dma.done [#allocation4], 256
        $region64: #{diffusion_transformer_forward.8} parent=59 // pred_fallthru
          _
        %s554 = sand.u32 %s38, 1
        %s555 = scalar_lea.sflag [#allocation7], %s554
        %s556 = sand.u32 %s86, 1
        %s557 = smul.addr %s556, 16
        %s558 = scalar_lea.vmem [#allocation6], %s557
        // Predicated region
        $region65: #{diffusion_transformer_forward.8} parent=59 // pred_check
          %p559 = pneg %p99
        $region66: #{diffusion_transformer_forward.8} parent=59 // pred_check_branch
          %561 = sbr.rel (%p559) target = $region68
        $region67: #{diffusion_transformer_forward.8} parent=59 // pred_region
          %562 = dma.done %s555, 256
        $region68: #{diffusion_transformer_forward.8} parent=59 // pred_fallthru
          _
        %s563 = sand.u32 %s38, 1
        %s564 = scalar_lea.sflag [#allocation7], %s563
        %s565 = sand.u32 %s112, 1
        %s566 = smul.addr %s565, 16
        %s567 = scalar_lea.vmem [#allocation8], %s566
        // Predicated region
        $region69: #{diffusion_transformer_forward.8} parent=59 // pred_check
          %p568 = pneg %p125
        $region70: #{diffusion_transformer_forward.8} parent=59 // pred_check_branch
          %570 = sbr.rel (%p568) target = $region72
        $region71: #{diffusion_transformer_forward.8} parent=59 // pred_region
          %571 = dma.done %s564, 256
        $region72: #{diffusion_transformer_forward.8} parent=59 // pred_fallthru
          _
        %s572 = sand.u32 %s38, 1
        %s573 = scalar_lea.sflag [#allocation10], %s572
        %s574 = sand.u32 %s138, 1
        %s575 = scalar_lea.vmem [#allocation9], %s574
        // Predicated region
        $region73: #{diffusion_transformer_forward.8} parent=59 // pred_check
          %p576 = pneg %p151
        $region74: #{diffusion_transformer_forward.8} parent=59 // pred_check_branch
          %578 = sbr.rel (%p576) target = $region76
        $region75: #{diffusion_transformer_forward.8} parent=59 // pred_region
          %579 = dma.done %s573, 16
        $region76: #{diffusion_transformer_forward.8} parent=59 // pred_fallthru
          _
        %s580 = sand.u32 %s38, 1
        %s581 = scalar_lea.sflag [#allocation10], %s580
        %s582 = sand.u32 %s164, 1
        %s583 = smul.addr %s582, 16
        %s584 = scalar_lea.vmem [#allocation11], %s583
        // Predicated region
        $region77: #{diffusion_transformer_forward.8} parent=59 // pred_check
          %p585 = pneg %p177
        $region78: #{diffusion_transformer_forward.8} parent=59 // pred_check_branch
          %587 = sbr.rel (%p585) target = $region80
        $region79: #{diffusion_transformer_forward.8} parent=59 // pred_region
          %588 = dma.done %s581, 256
        $region80: #{diffusion_transformer_forward.8} parent=59 // pred_fallthru
          _
        %s589 = sand.u32 %s38, 1
        %s590 = scalar_lea.sflag [#allocation13], %s589
        %s591 = sand.u32 %s190, 1
        %s592 = scalar_lea.vmem [#allocation12], %s591
        // Predicated region
        $region81: #{diffusion_transformer_forward.8} parent=59 // pred_check
          %p593 = pneg %p203
        $region82: #{diffusion_transformer_forward.8} parent=59 // pred_check_branch
          %595 = sbr.rel (%p593) target = $region84
        $region83: #{diffusion_transformer_forward.8} parent=59 // pred_region
          %596 = dma.done %s590, 16
        $region84: #{diffusion_transformer_forward.8} parent=59 // pred_fallthru
          _
        %s597 = sand.u32 %s38, 1
        %s598 = scalar_lea.sflag [#allocation13], %s597
        %s599 = sand.u32 %s216, 1
        %s600 = smul.addr %s599, 16
        %s601 = scalar_lea.vmem [#allocation14], %s600
        // Predicated region
        $region85: #{diffusion_transformer_forward.8} parent=59 // pred_check
          %p602 = pneg %p229
        $region86: #{diffusion_transformer_forward.8} parent=59 // pred_check_branch
          %604 = sbr.rel (%p602) target = $region88
        $region87: #{diffusion_transformer_forward.8} parent=59 // pred_region
          %605 = dma.done %s598, 256
        $region88: #{diffusion_transformer_forward.8} parent=59 // pred_fallthru
          _
        %s606 = sand.u32 %s38, 1
        %s607 = scalar_lea.sflag [#allocation16], %s606
        %s608 = sand.u32 %s242, 1
        %s609 = scalar_lea.vmem [#allocation15], %s608
        // Predicated region
        $region89: #{diffusion_transformer_forward.8} parent=59 // pred_check
          %p610 = pneg %p255
        $region90: #{diffusion_transformer_forward.8} parent=59 // pred_check_branch
          %612 = sbr.rel (%p610) target = $region92
        $region91: #{diffusion_transformer_forward.8} parent=59 // pred_region
          %613 = dma.done %s607, 16
        $region92: #{diffusion_transformer_forward.8} parent=59 // pred_fallthru
          _
        %s614 = sand.u32 %s38, 1
        %s615 = scalar_lea.sflag [#allocation16], %s614
        %s616 = sand.u32 %s268, 1
        %s617 = smul.addr %s616, 64
        %s618 = scalar_lea.vmem [#allocation17], %s617
        // Predicated region
        $region93: #{diffusion_transformer_forward.8} parent=59 // pred_check
          %p619 = pneg %p281
        $region94: #{diffusion_transformer_forward.8} parent=59 // pred_check_branch
          %621 = sbr.rel (%p619) target = $region96
        $region95: #{diffusion_transformer_forward.8} parent=59 // pred_region
          %622 = dma.done %s615, 1024
        $region96: #{diffusion_transformer_forward.8} parent=59 // pred_fallthru
          _
        %s623 = sand.u32 %s294, 1
        %s624 = scalar_lea.sflag [#allocation19], %s623
        %s625 = sand.u32 %s294, 1
        %s626 = scalar_lea.vmem [#allocation18], %s625
        // Predicated region
        $region97: #{diffusion_transformer_forward.8} parent=59 // pred_check
          %p627 = pneg %p307
        $region98: #{diffusion_transformer_forward.8} parent=59 // pred_check_branch
          %629 = sbr.rel (%p627) target = $region100
        $region99: #{diffusion_transformer_forward.8} parent=59 // pred_region
          %630 = dma.done %s624, 16
        $region100: #{diffusion_transformer_forward.8} parent=59 // pred_fallthru
          _
        %p631 = pneg %p71
        %p632 = pneg %p68
        %s633 = sand.u32 %s38, 1
        %s634 = scalar_lea.sflag [#allocation7], %s633
        %s635 = sand.u32 %s86, 1
        %s636 = smul.addr %s635, 16
        %s637 = scalar_lea.vmem [#allocation6], %s636
        %p638 = pneg %p99
        %p639 = pneg %p96
        %s640 = sand.u32 %s38, 1
        %s641 = scalar_lea.sflag [#allocation7], %s640
        %s642 = sand.u32 %s112, 1
        %s643 = smul.addr %s642, 16
        %s644 = scalar_lea.vmem [#allocation8], %s643
        %p645 = pneg %p125
        %p646 = pneg %p122
        %s647 = sand.u32 %s38, 1
        %s648 = scalar_lea.sflag [#allocation10], %s647
        %s649 = sand.u32 %s138, 1
        %s650 = scalar_lea.vmem [#allocation9], %s649
        %p651 = pneg %p151
        %p652 = pneg %p148
        %s653 = sand.u32 %s38, 1
        %s654 = scalar_lea.sflag [#allocation10], %s653
        %s655 = sand.u32 %s164, 1
        %s656 = smul.addr %s655, 16
        %s657 = scalar_lea.vmem [#allocation11], %s656
        %p658 = pneg %p177
        %p659 = pneg %p174
        %s660 = sand.u32 %s38, 1
        %s661 = scalar_lea.sflag [#allocation13], %s660
        %s662 = sand.u32 %s190, 1
        %s663 = scalar_lea.vmem [#allocation12], %s662
        %p664 = pneg %p203
        %p665 = pneg %p200
        %s666 = sand.u32 %s38, 1
        %s667 = scalar_lea.sflag [#allocation13], %s666
        %s668 = sand.u32 %s216, 1
        %s669 = smul.addr %s668, 16
        %s670 = scalar_lea.vmem [#allocation14], %s669
        %p671 = pneg %p229
        %p672 = pneg %p226
        %s673 = sand.u32 %s38, 1
        %s674 = scalar_lea.sflag [#allocation16], %s673
        %s675 = sand.u32 %s242, 1
        %s676 = scalar_lea.vmem [#allocation15], %s675
        %p677 = pneg %p255
        %p678 = pneg %p252
        %s679 = sand.u32 %s38, 1
        %s680 = scalar_lea.sflag [#allocation16], %s679
        %s681 = sand.u32 %s268, 1
        %s682 = smul.addr %s681, 64
        %s683 = scalar_lea.vmem [#allocation17], %s682
        %p684 = pneg %p281
        %p685 = pneg %p278
        %s686 = sand.u32 %s294, 1
        %s687 = scalar_lea.sflag [#allocation19], %s686
        %s688 = sand.u32 %s294, 1
        %s689 = scalar_lea.vmem [#allocation18], %s688
        %p690 = pneg %p307
        %p691 = pneg %p304
        %p692 = pneg %p333
        %p693 = pneg %p330
        %s694 = smul.u32 2, %s42
        %s695 = smul.u32 2, %s42
        %s696 = smul.u32 2, %s42
        %p698 = scmp.eq.s32.totalorder %s43, 0
        // Predicated region
        $region101: #{diffusion_transformer_forward.8} parent=59 // pred_check
          %p699 = pneg %p698
        $region102: #{diffusion_transformer_forward.8} parent=59 // pred_check_branch
          %701 = sbr.rel (%p699) target = $region104
        $region103: #{diffusion_transformer_forward.8} parent=59 // pred_region
          %v702 = vld [vmem:[#allocation3] sm:$0xff]
          %v703 = vld [vmem:[#allocation3 + $0x8] sm:$0xff]
          %vm704 = vcmask 261120
          %705 = vst.msk [vmem:[#allocation2] sm:$0xff] %vm704, %v702
          %706 = vst.msk [vmem:[#allocation2 + $0x8] sm:$0xff] %vm704, %v703
        $region104: #{diffusion_transformer_forward.8} parent=59 // pred_fallthru
          _
        %v707 = vld [vmem:[#allocation2] sm:$0xff]
        %v708 = vld [vmem:[#allocation2 + $0x8] sm:$0xff]
        %v709 = vld [vmem:[%s558] sm:$0x3f]
        %v710 = vld [vmem:[%s558 + $0x8] sm:$0x3f]
        %vm711 = vcmask 261120
        %v712 = vsel %vm711, %v707, 0.0
        %713 = vadd.xlane.f32.xlu0 %v712
        %v714 = vpop.xlane.xlu0 %713
        %v715 = vsel %vm711, %v708, 0.0
        %716 = vadd.xlane.f32.xlu0 %v715
        %v717 = vpop.xlane.xlu0 %716
        %v718 = vrcp.pop 32.0
        %v719 = vmul.f32 %v714, %v718
        %v720 = vmul.f32 %v717, %v718
        %v721 = vsub.f32 %v707, %v719
        %v722 = vsub.f32 %v708, %v720
        %v723 = vmul.f32 %v721, %v721
        %v724 = vmul.f32 %v722, %v722
        %v725 = vsel %vm711, %v723, 0.0
        %726 = vadd.xlane.f32.xlu0 %v725
        %v727 = vpop.xlane.xlu0 %726
        %v728 = vsel %vm711, %v724, 0.0
        %729 = vadd.xlane.f32.xlu0 %v728
        %v730 = vpop.xlane.xlu0 %729
        %v731 = vmul.f32 %v727, %v718
        %v732 = vmul.f32 %v730, %v718
        %v733 = vadd.f32 %v731, 1e-05
        %v734 = vadd.f32 %v732, 1e-05
        %v735 = vrsqrt.pop %v733
        %v736 = vrsqrt.pop %v734
        %v737 = vmul.f32 %v721, %v735
        %v738 = vmul.f32 %v722, %v736
        %v739 = vadd.f32 %v709, 1.0
        %v740 = vadd.f32 %v710, 1.0
        %v741 = vlaneseq
        %v742 = vshrl.u32 %v741, 7
        %v743 = vsub.s32 1, %v742
        %v744 = vrot.slane %v739, %v743
        %v745 = vlaneseq
        %v746 = vshrl.u32 %v745, 7
        %v747 = vsub.s32 1, %v746
        %v748 = vrot.slane %v740, %v747
        %v749 = vmul.f32 %v737, %v744
        %v750 = vmul.f32 %v738, %v748
        %v751 = vlaneseq
        %v752 = vshrl.u32 %v751, 7
        %v753 = vsub.s32 0, %v752
        %v754 = vrot.slane %v709, %v753
        %v755 = vlaneseq
        %v756 = vshrl.u32 %v755, 7
        %v757 = vsub.s32 0, %v756
        %v758 = vrot.slane %v710, %v757
        %v759 = vadd.f32 %v749, %v754
        %v760 = vadd.f32 %v750, %v758
        %v761 = vpack.c.bf16 %v760, %v759
        %v762 = vld [vmem:[%s567] sm:$0xf]
        %v763 = vld [vmem:[%s567 + $0x4] sm:$0xf]
        %v764 = vld [vmem:[%s567 + $0x8] sm:$0xf]
        %v765 = vld [vmem:[%s567 + $0xc] sm:$0xf]
        %v766 = vld [vmem:[%s575] sm:$0x1]
        %v768 = vlaneseq
        %v769 = vshrl.u32 %v768, 7
        %v770 = vsub.s32 0, %v769
        %v771 = vrot.slane %v766, %v770
        %v777 = vunpack.c.l.b16 %v762
        %v778 = vunpack.c.l.b16 %v763
        %v779 = vunpack.c.l.b16 %v764
        %v780 = vunpack.c.l.b16 %v765
        %v781 = vpack.c.b16 %v778, %v777
        %v782 = vpack.c.b16 %v780, %v779
        %v786 = vsel %vm711, %v761, 0
        %788 = vmatprep.subr.bf16.mxu0 0
        %789 = vmatpush1.bf16.msra.mxu0 %v781
        %790 = vmatprep.subr.bf16.mxu0 0
        %791 = vmatpush1.bf16.msra.mxu0 %v782
        %792 = vmatprep.subr.bf16.mxu0 0
        %793 = vmatpush1.bf16.msra.mxu0 0
        %794 = vmatprep.subr.bf16.mxu0 0
        %795 = vmatpush1.bf16.msra.mxu0 0
        %796 = vmatprep.subr.bf16.mxu0 0
        %797 = vmatpush1.bf16.msra.mxu0 0
        %798 = vmatprep.subr.bf16.mxu0 0
        %799 = vmatpush1.bf16.msra.mxu0 0
        %800 = vmatprep.subr.bf16.mxu0 0
        %801 = vmatpush1.bf16.msra.mxu0 0
        %802 = vmatprep.subr.bf16.mxu0 0
        %803 = vmatpush1.bf16.msra.mxu0 0
        %804 = vmatprep.subr.bf16.mxu0 0
        %805 = vmatpush1.bf16.msra.mxu0 0
        %806 = vmatprep.subr.bf16.mxu0 0
        %807 = vmatpush1.bf16.msra.mxu0 0
        %808 = vmatprep.subr.bf16.mxu0 0
        %809 = vmatpush1.bf16.msra.mxu0 0
        %810 = vmatprep.subr.bf16.mxu0 0
        %811 = vmatpush1.bf16.msra.mxu0 0
        %812 = vmatprep.subr.bf16.mxu0 0
        %813 = vmatpush1.bf16.msra.mxu0 0
        %814 = vmatprep.subr.bf16.mxu0 0
        %815 = vmatpush1.bf16.msra.mxu0 0
        %816 = vmatprep.subr.bf16.mxu0 0
        %817 = vmatpush1.bf16.msra.mxu0 0
        %818 = vmatprep.subr.bf16.mxu0 0
        %819 = vmatpush1.bf16.msra.mxu0 0
        %820 = vmatprep.mubr.bf16.mxu0 0
        %821 = vmatmul.mubr.bf16.gmra.mrb[0].mxu0 %v786
        %v822 = vpop.f32.mrb[0].mxu0
        %v823 = vadd.f32 %v771, %v822
        %v824 = vpop.f32.mrb[0].mxu0
        %v825 = vpop.f32.mrb[0].mxu0
        %v826 = vadd.f32 %v771, %v825
        %v827 = vpop.f32.mrb[0].mxu0
        %828 = vdwg.mxu0
        %831 = vrot.lane.b32.xlu0 %v823, 120
        %v832 = vpop.permute.xlu0 %831
        %833 = vrot.lane.b32.xlu0 %v826, 120
        %v834 = vpop.permute.xlu0 %833
        %837 = vrot.lane.b32.xlu0 %v823, 112
        %v838 = vpop.permute.xlu0 %837
        %839 = vrot.lane.b32.xlu0 %v826, 112
        %v840 = vpop.permute.xlu0 %839
        %843 = vrot.lane.b32.xlu0 %v823, 104
        %v844 = vpop.permute.xlu0 %843
        %845 = vrot.lane.b32.xlu0 %v826, 104
        %v846 = vpop.permute.xlu0 %845
        %v849 = vcombine.low %v823, %v838
        %v850 = vcombine.high %v823, %v838
        %v852 = vunpack.c.l.s4 1983009808
        %v853 = vunpack.c.0.s8 %v852
        %v854 = vlaneseq
        %v855 = vshrl.u32 %v854, 7
        %v856 = vsub.s32 %v853, %v855
        %v857 = vrot.slane %v849, %v856
        %v859 = vunpack.c.l.s4 1983009808
        %v860 = vunpack.c.0.s8 %v859
        %v861 = vlaneseq
        %v862 = vshrl.u32 %v861, 7
        %v863 = vsub.s32 %v860, %v862
        %v864 = vrot.slane %v850, %v863
        %v865 = vcombine.low %v832, %v844
        %v866 = vcombine.high %v832, %v844
        %v868 = vunpack.c.l.s4 1983009808
        %v869 = vunpack.c.0.s8 %v868
        %v870 = vlaneseq
        %v871 = vshrl.u32 %v870, 7
        %v872 = vsub.s32 %v869, %v871
        %v873 = vrot.slane %v865, %v872
        %v875 = vunpack.c.l.s4 1983009808
        %v876 = vunpack.c.0.s8 %v875
        %v877 = vlaneseq
        %v878 = vshrl.u32 %v877, 7
        %v879 = vsub.s32 %v876, %v878
        %v880 = vrot.slane %v866, %v879
        %v881 = vcombine.low %v857, %v873
        %v882 = vcombine.high %v857, %v873
        %v884 = vunpack.c.l.s4 1934713408
        %v885 = vunpack.c.0.s8 %v884
        %v886 = vlaneseq
        %v887 = vshrl.u32 %v886, 7
        %v888 = vsub.s32 %v885, %v887
        %v889 = vrot.slane %v881, %v888
        %v891 = vunpack.c.l.s4 1934713408
        %v892 = vunpack.c.0.s8 %v891
        %v893 = vlaneseq
        %v894 = vshrl.u32 %v893, 7
        %v895 = vsub.s32 %v892, %v894
        %v896 = vrot.slane %v882, %v895
        %v897 = vcombine.low %v864, %v880
        %v898 = vcombine.high %v864, %v880
        %v900 = vunpack.c.l.s4 1934713408
        %v901 = vunpack.c.0.s8 %v900
        %v902 = vlaneseq
        %v903 = vshrl.u32 %v902, 7
        %v904 = vsub.s32 %v901, %v903
        %v905 = vrot.slane %v897, %v904
        %v907 = vunpack.c.l.s4 1934713408
        %v908 = vunpack.c.0.s8 %v907
        %v909 = vlaneseq
        %v910 = vshrl.u32 %v909, 7
        %v911 = vsub.s32 %v908, %v910
        %v912 = vrot.slane %v898, %v911
        %v913 = vcombine.high %v889, 0.0
        %v914 = vcombine.high %v896, 0.0
        %v915 = vcombine.high %v905, 0.0
        %v916 = vcombine.high %v912, 0.0
        %v917 = vcombine.low %v826, %v840
        %v918 = vcombine.high %v826, %v840
        %v920 = vunpack.c.l.s4 1983009808
        %v921 = vunpack.c.0.s8 %v920
        %v922 = vlaneseq
        %v923 = vshrl.u32 %v922, 7
        %v924 = vsub.s32 %v921, %v923
        %v925 = vrot.slane %v917, %v924
        %v927 = vunpack.c.l.s4 1983009808
        %v928 = vunpack.c.0.s8 %v927
        %v929 = vlaneseq
        %v930 = vshrl.u32 %v929, 7
        %v931 = vsub.s32 %v928, %v930
        %v932 = vrot.slane %v918, %v931
        %v933 = vcombine.low %v834, %v846
        %v934 = vcombine.high %v834, %v846
        %v936 = vunpack.c.l.s4 1983009808
        %v937 = vunpack.c.0.s8 %v936
        %v938 = vlaneseq
        %v939 = vshrl.u32 %v938, 7
        %v940 = vsub.s32 %v937, %v939
        %v941 = vrot.slane %v933, %v940
        %v943 = vunpack.c.l.s4 1983009808
        %v944 = vunpack.c.0.s8 %v943
        %v945 = vlaneseq
        %v946 = vshrl.u32 %v945, 7
        %v947 = vsub.s32 %v944, %v946
        %v948 = vrot.slane %v934, %v947
        %v949 = vcombine.low %v925, %v941
        %v950 = vcombine.high %v925, %v941
        %v952 = vunpack.c.l.s4 1934713408
        %v953 = vunpack.c.0.s8 %v952
        %v954 = vlaneseq
        %v955 = vshrl.u32 %v954, 7
        %v956 = vsub.s32 %v953, %v955
        %v957 = vrot.slane %v949, %v956
        %v959 = vunpack.c.l.s4 1934713408
        %v960 = vunpack.c.0.s8 %v959
        %v961 = vlaneseq
        %v962 = vshrl.u32 %v961, 7
        %v963 = vsub.s32 %v960, %v962
        %v964 = vrot.slane %v950, %v963
        %v965 = vcombine.low %v932, %v948
        %v966 = vcombine.high %v932, %v948
        %v968 = vunpack.c.l.s4 1934713408
        %v969 = vunpack.c.0.s8 %v968
        %v970 = vlaneseq
        %v971 = vshrl.u32 %v970, 7
        %v972 = vsub.s32 %v969, %v971
        %v973 = vrot.slane %v965, %v972
        %v975 = vunpack.c.l.s4 1934713408
        %v976 = vunpack.c.0.s8 %v975
        %v977 = vlaneseq
        %v978 = vshrl.u32 %v977, 7
        %v979 = vsub.s32 %v976, %v978
        %v980 = vrot.slane %v966, %v979
        %v981 = vcombine.high %v957, 0.0
        %v982 = vcombine.high %v964, 0.0
        %v983 = vcombine.high %v973, 0.0
        %v984 = vcombine.high %v980, 0.0
        %v985 = vcombine.low %v889, %v896
        %v987 = vunpack.c.l.s4 1983009808
        %v988 = vunpack.c.0.s8 %v987
        %v989 = vlaneseq
        %v990 = vshrl.u32 %v989, 7
        %v991 = vsub.s32 %v988, %v990
        %v992 = vrot.slane %v985, %v991
        %v993 = vcombine.low %v913, %v914
        %v995 = vunpack.c.l.s4 1983009808
        %v996 = vunpack.c.0.s8 %v995
        %v997 = vlaneseq
        %v998 = vshrl.u32 %v997, 7
        %v999 = vsub.s32 %v996, %v998
        %v1000 = vrot.slane %v993, %v999
        %v1001 = vcombine.low %v905, %v912
        %v1003 = vunpack.c.l.s4 1983009808
        %v1004 = vunpack.c.0.s8 %v1003
        %v1005 = vlaneseq
        %v1006 = vshrl.u32 %v1005, 7
        %v1007 = vsub.s32 %v1004, %v1006
        %v1008 = vrot.slane %v1001, %v1007
        %v1009 = vcombine.low %v915, %v916
        %v1011 = vunpack.c.l.s4 1983009808
        %v1012 = vunpack.c.0.s8 %v1011
        %v1013 = vlaneseq
        %v1014 = vshrl.u32 %v1013, 7
        %v1015 = vsub.s32 %v1012, %v1014
        %v1016 = vrot.slane %v1009, %v1015
        %v1017 = vcombine.low %v992, %v1000
        %v1018 = vcombine.high %v992, %v1000
        %v1020 = vunpack.c.l.s4 1934713408
        %v1021 = vunpack.c.0.s8 %v1020
        %v1022 = vlaneseq
        %v1023 = vshrl.u32 %v1022, 7
        %v1024 = vsub.s32 %v1021, %v1023
        %v1025 = vrot.slane %v1017, %v1024
        %v1027 = vunpack.c.l.s4 1934713408
        %v1028 = vunpack.c.0.s8 %v1027
        %v1029 = vlaneseq
        %v1030 = vshrl.u32 %v1029, 7
        %v1031 = vsub.s32 %v1028, %v1030
        %v1032 = vrot.slane %v1018, %v1031
        %v1033 = vcombine.low %v1008, %v1016
        %v1034 = vcombine.high %v1008, %v1016
        %v1036 = vunpack.c.l.s4 1934713408
        %v1037 = vunpack.c.0.s8 %v1036
        %v1038 = vlaneseq
        %v1039 = vshrl.u32 %v1038, 7
        %v1040 = vsub.s32 %v1037, %v1039
        %v1041 = vrot.slane %v1033, %v1040
        %v1043 = vunpack.c.l.s4 1934713408
        %v1044 = vunpack.c.0.s8 %v1043
        %v1045 = vlaneseq
        %v1046 = vshrl.u32 %v1045, 7
        %v1047 = vsub.s32 %v1044, %v1046
        %v1048 = vrot.slane %v1034, %v1047
        %v1049 = vcombine.low %v1025, %v1041
        %v1050 = vcombine.high %v1025, %v1041
        %v1051 = vcombine.low %v1032, %v1048
        %v1052 = vcombine.high %v1032, %v1048
        %v1053 = vcombine.low %v957, %v964
        %v1055 = vunpack.c.l.s4 1983009808
        %v1056 = vunpack.c.0.s8 %v1055
        %v1057 = vlaneseq
        %v1058 = vshrl.u32 %v1057, 7
        %v1059 = vsub.s32 %v1056, %v1058
        %v1060 = vrot.slane %v1053, %v1059
        %v1061 = vcombine.low %v981, %v982
        %v1063 = vunpack.c.l.s4 1983009808
        %v1064 = vunpack.c.0.s8 %v1063
        %v1065 = vlaneseq
        %v1066 = vshrl.u32 %v1065, 7
        %v1067 = vsub.s32 %v1064, %v1066
        %v1068 = vrot.slane %v1061, %v1067
        %v1069 = vcombine.low %v973, %v980
        %v1071 = vunpack.c.l.s4 1983009808
        %v1072 = vunpack.c.0.s8 %v1071
        %v1073 = vlaneseq
        %v1074 = vshrl.u32 %v1073, 7
        %v1075 = vsub.s32 %v1072, %v1074
        %v1076 = vrot.slane %v1069, %v1075
        %v1077 = vcombine.low %v983, %v984
        %v1079 = vunpack.c.l.s4 1983009808
        %v1080 = vunpack.c.0.s8 %v1079
        %v1081 = vlaneseq
        %v1082 = vshrl.u32 %v1081, 7
        %v1083 = vsub.s32 %v1080, %v1082
        %v1084 = vrot.slane %v1077, %v1083
        %v1085 = vcombine.low %v1060, %v1068
        %v1086 = vcombine.high %v1060, %v1068
        %v1088 = vunpack.c.l.s4 1934713408
        %v1089 = vunpack.c.0.s8 %v1088
        %v1090 = vlaneseq
        %v1091 = vshrl.u32 %v1090, 7
        %v1092 = vsub.s32 %v1089, %v1091
        %v1093 = vrot.slane %v1085, %v1092
        %v1095 = vunpack.c.l.s4 1934713408
        %v1096 = vunpack.c.0.s8 %v1095
        %v1097 = vlaneseq
        %v1098 = vshrl.u32 %v1097, 7
        %v1099 = vsub.s32 %v1096, %v1098
        %v1100 = vrot.slane %v1086, %v1099
        %v1101 = vcombine.low %v1076, %v1084
        %v1102 = vcombine.high %v1076, %v1084
        %v1104 = vunpack.c.l.s4 1934713408
        %v1105 = vunpack.c.0.s8 %v1104
        %v1106 = vlaneseq
        %v1107 = vshrl.u32 %v1106, 7
        %v1108 = vsub.s32 %v1105, %v1107
        %v1109 = vrot.slane %v1101, %v1108
        %v1111 = vunpack.c.l.s4 1934713408
        %v1112 = vunpack.c.0.s8 %v1111
        %v1113 = vlaneseq
        %v1114 = vshrl.u32 %v1113, 7
        %v1115 = vsub.s32 %v1112, %v1114
        %v1116 = vrot.slane %v1102, %v1115
        %v1117 = vcombine.low %v1093, %v1109
        %v1118 = vcombine.high %v1093, %v1109
        %v1119 = vcombine.low %v1100, %v1116
        %v1120 = vcombine.high %v1100, %v1116
        %v1121 = vpack.c.bf16 %v1049, %v1049
        %v1122 = vpack.c.bf16 %v1050, %v1050
        %v1123 = vpack.c.bf16 %v1051, %v1051
        %v1124 = vpack.c.bf16 %v1052, %v1052
        %v1125 = vpack.c.bf16 %v1117, %v1117
        %v1126 = vpack.c.bf16 %v1118, %v1118
        %v1127 = vpack.c.bf16 %v1119, %v1119
        %v1128 = vpack.c.bf16 %v1120, %v1120
        %1129 = vrot.lane.b32.xlu0 %v823, 96
        %v1130 = vpop.permute.xlu0 %1129
        %1131 = vrot.lane.b32.xlu0 %v832, 96
        %v1132 = vpop.permute.xlu0 %1131
        %1133 = vrot.lane.b32.xlu0 %v838, 96
        %v1134 = vpop.permute.xlu0 %1133
        %1135 = vrot.lane.b32.xlu0 %v844, 96
        %v1136 = vpop.permute.xlu0 %1135
        %1137 = vrot.lane.b32.xlu0 %v826, 96
        %v1138 = vpop.permute.xlu0 %1137
        %1139 = vrot.lane.b32.xlu0 %v834, 96
        %v1140 = vpop.permute.xlu0 %1139
        %1141 = vrot.lane.b32.xlu0 %v840, 96
        %v1142 = vpop.permute.xlu0 %1141
        %1143 = vrot.lane.b32.xlu0 %v846, 96
        %v1144 = vpop.permute.xlu0 %1143
        %v1153 = vcombine.low %v1130, %v1134
        %v1154 = vcombine.high %v1130, %v1134
        %v1156 = vunpack.c.l.s4 1983009808
        %v1157 = vunpack.c.0.s8 %v1156
        %v1158 = vlaneseq
        %v1159 = vshrl.u32 %v1158, 7
        %v1160 = vsub.s32 %v1157, %v1159
        %v1161 = vrot.slane %v1153, %v1160
        %v1163 = vunpack.c.l.s4 1983009808
        %v1164 = vunpack.c.0.s8 %v1163
        %v1165 = vlaneseq
        %v1166 = vshrl.u32 %v1165, 7
        %v1167 = vsub.s32 %v1164, %v1166
        %v1168 = vrot.slane %v1154, %v1167
        %v1169 = vcombine.low %v1132, %v1136
        %v1170 = vcombine.high %v1132, %v1136
        %v1172 = vunpack.c.l.s4 1983009808
        %v1173 = vunpack.c.0.s8 %v1172
        %v1174 = vlaneseq
        %v1175 = vshrl.u32 %v1174, 7
        %v1176 = vsub.s32 %v1173, %v1175
        %v1177 = vrot.slane %v1169, %v1176
        %v1179 = vunpack.c.l.s4 1983009808
        %v1180 = vunpack.c.0.s8 %v1179
        %v1181 = vlaneseq
        %v1182 = vshrl.u32 %v1181, 7
        %v1183 = vsub.s32 %v1180, %v1182
        %v1184 = vrot.slane %v1170, %v1183
        %v1185 = vcombine.low %v1161, %v1177
        %v1186 = vcombine.high %v1161, %v1177
        %v1188 = vunpack.c.l.s4 1934713408
        %v1189 = vunpack.c.0.s8 %v1188
        %v1190 = vlaneseq
        %v1191 = vshrl.u32 %v1190, 7
        %v1192 = vsub.s32 %v1189, %v1191
        %v1193 = vrot.slane %v1185, %v1192
        %v1195 = vunpack.c.l.s4 1934713408
        %v1196 = vunpack.c.0.s8 %v1195
        %v1197 = vlaneseq
        %v1198 = vshrl.u32 %v1197, 7
        %v1199 = vsub.s32 %v1196, %v1198
        %v1200 = vrot.slane %v1186, %v1199
        %v1201 = vcombine.low %v1168, %v1184
        %v1202 = vcombine.high %v1168, %v1184
        %v1204 = vunpack.c.l.s4 1934713408
        %v1205 = vunpack.c.0.s8 %v1204
        %v1206 = vlaneseq
        %v1207 = vshrl.u32 %v1206, 7
        %v1208 = vsub.s32 %v1205, %v1207
        %v1209 = vrot.slane %v1201, %v1208
        %v1211 = vunpack.c.l.s4 1934713408
        %v1212 = vunpack.c.0.s8 %v1211
        %v1213 = vlaneseq
        %v1214 = vshrl.u32 %v1213, 7
        %v1215 = vsub.s32 %v1212, %v1214
        %v1216 = vrot.slane %v1202, %v1215
        %v1217 = vcombine.high %v1193, 0.0
        %v1218 = vcombine.high %v1200, 0.0
        %v1219 = vcombine.high %v1209, 0.0
        %v1220 = vcombine.high %v1216, 0.0
        %v1221 = vcombine.low %v1138, %v1142
        %v1222 = vcombine.high %v1138, %v1142
        %v1224 = vunpack.c.l.s4 1983009808
        %v1225 = vunpack.c.0.s8 %v1224
        %v1226 = vlaneseq
        %v1227 = vshrl.u32 %v1226, 7
        %v1228 = vsub.s32 %v1225, %v1227
        %v1229 = vrot.slane %v1221, %v1228
        %v1231 = vunpack.c.l.s4 1983009808
        %v1232 = vunpack.c.0.s8 %v1231
        %v1233 = vlaneseq
        %v1234 = vshrl.u32 %v1233, 7
        %v1235 = vsub.s32 %v1232, %v1234
        %v1236 = vrot.slane %v1222, %v1235
        %v1237 = vcombine.low %v1140, %v1144
        %v1238 = vcombine.high %v1140, %v1144
        %v1240 = vunpack.c.l.s4 1983009808
        %v1241 = vunpack.c.0.s8 %v1240
        %v1242 = vlaneseq
        %v1243 = vshrl.u32 %v1242, 7
        %v1244 = vsub.s32 %v1241, %v1243
        %v1245 = vrot.slane %v1237, %v1244
        %v1247 = vunpack.c.l.s4 1983009808
        %v1248 = vunpack.c.0.s8 %v1247
        %v1249 = vlaneseq
        %v1250 = vshrl.u32 %v1249, 7
        %v1251 = vsub.s32 %v1248, %v1250
        %v1252 = vrot.slane %v1238, %v1251
        %v1253 = vcombine.low %v1229, %v1245
        %v1254 = vcombine.high %v1229, %v1245
        %v1256 = vunpack.c.l.s4 1934713408
        %v1257 = vunpack.c.0.s8 %v1256
        %v1258 = vlaneseq
        %v1259 = vshrl.u32 %v1258, 7
        %v1260 = vsub.s32 %v1257, %v1259
        %v1261 = vrot.slane %v1253, %v1260
        %v1263 = vunpack.c.l.s4 1934713408
        %v1264 = vunpack.c.0.s8 %v1263
        %v1265 = vlaneseq
        %v1266 = vshrl.u32 %v1265, 7
        %v1267 = vsub.s32 %v1264, %v1266
        %v1268 = vrot.slane %v1254, %v1267
        %v1269 = vcombine.low %v1236, %v1252
        %v1270 = vcombine.high %v1236, %v1252
        %v1272 = vunpack.c.l.s4 1934713408
        %v1273 = vunpack.c.0.s8 %v1272
        %v1274 = vlaneseq
        %v1275 = vshrl.u32 %v1274, 7
        %v1276 = vsub.s32 %v1273, %v1275
        %v1277 = vrot.slane %v1269, %v1276
        %v1279 = vunpack.c.l.s4 1934713408
        %v1280 = vunpack.c.0.s8 %v1279
        %v1281 = vlaneseq
        %v1282 = vshrl.u32 %v1281, 7
        %v1283 = vsub.s32 %v1280, %v1282
        %v1284 = vrot.slane %v1270, %v1283
        %v1285 = vcombine.high %v1261, 0.0
        %v1286 = vcombine.high %v1268, 0.0
        %v1287 = vcombine.high %v1277, 0.0
        %v1288 = vcombine.high %v1284, 0.0
        %v1289 = vcombine.low %v1193, %v1200
        %v1291 = vunpack.c.l.s4 1983009808
        %v1292 = vunpack.c.0.s8 %v1291
        %v1293 = vlaneseq
        %v1294 = vshrl.u32 %v1293, 7
        %v1295 = vsub.s32 %v1292, %v1294
        %v1296 = vrot.slane %v1289, %v1295
        %v1297 = vcombine.low %v1217, %v1218
        %v1299 = vunpack.c.l.s4 1983009808
        %v1300 = vunpack.c.0.s8 %v1299
        %v1301 = vlaneseq
        %v1302 = vshrl.u32 %v1301, 7
        %v1303 = vsub.s32 %v1300, %v1302
        %v1304 = vrot.slane %v1297, %v1303
        %v1305 = vcombine.low %v1209, %v1216
        %v1307 = vunpack.c.l.s4 1983009808
        %v1308 = vunpack.c.0.s8 %v1307
        %v1309 = vlaneseq
        %v1310 = vshrl.u32 %v1309, 7
        %v1311 = vsub.s32 %v1308, %v1310
        %v1312 = vrot.slane %v1305, %v1311
        %v1313 = vcombine.low %v1219, %v1220
        %v1315 = vunpack.c.l.s4 1983009808
        %v1316 = vunpack.c.0.s8 %v1315
        %v1317 = vlaneseq
        %v1318 = vshrl.u32 %v1317, 7
        %v1319 = vsub.s32 %v1316, %v1318
        %v1320 = vrot.slane %v1313, %v1319
        %v1321 = vcombine.low %v1296, %v1304
        %v1322 = vcombine.high %v1296, %v1304
        %v1324 = vunpack.c.l.s4 1934713408
        %v1325 = vunpack.c.0.s8 %v1324
        %v1326 = vlaneseq
        %v1327 = vshrl.u32 %v1326, 7
        %v1328 = vsub.s32 %v1325, %v1327
        %v1329 = vrot.slane %v1321, %v1328
        %v1331 = vunpack.c.l.s4 1934713408
        %v1332 = vunpack.c.0.s8 %v1331
        %v1333 = vlaneseq
        %v1334 = vshrl.u32 %v1333, 7
        %v1335 = vsub.s32 %v1332, %v1334
        %v1336 = vrot.slane %v1322, %v1335
        %v1337 = vcombine.low %v1312, %v1320
        %v1338 = vcombine.high %v1312, %v1320
        %v1340 = vunpack.c.l.s4 1934713408
        %v1341 = vunpack.c.0.s8 %v1340
        %v1342 = vlaneseq
        %v1343 = vshrl.u32 %v1342, 7
        %v1344 = vsub.s32 %v1341, %v1343
        %v1345 = vrot.slane %v1337, %v1344
        %v1347 = vunpack.c.l.s4 1934713408
        %v1348 = vunpack.c.0.s8 %v1347
        %v1349 = vlaneseq
        %v1350 = vshrl.u32 %v1349, 7
        %v1351 = vsub.s32 %v1348, %v1350
        %v1352 = vrot.slane %v1338, %v1351
        %v1353 = vcombine.low %v1329, %v1345
        %v1354 = vcombine.high %v1329, %v1345
        %v1355 = vcombine.low %v1336, %v1352
        %v1356 = vcombine.high %v1336, %v1352
        %v1357 = vcombine.low %v1261, %v1268
        %v1359 = vunpack.c.l.s4 1983009808
        %v1360 = vunpack.c.0.s8 %v1359
        %v1361 = vlaneseq
        %v1362 = vshrl.u32 %v1361, 7
        %v1363 = vsub.s32 %v1360, %v1362
        %v1364 = vrot.slane %v1357, %v1363
        %v1365 = vcombine.low %v1285, %v1286
        %v1367 = vunpack.c.l.s4 1983009808
        %v1368 = vunpack.c.0.s8 %v1367
        %v1369 = vlaneseq
        %v1370 = vshrl.u32 %v1369, 7
        %v1371 = vsub.s32 %v1368, %v1370
        %v1372 = vrot.slane %v1365, %v1371
        %v1373 = vcombine.low %v1277, %v1284
        %v1375 = vunpack.c.l.s4 1983009808
        %v1376 = vunpack.c.0.s8 %v1375
        %v1377 = vlaneseq
        %v1378 = vshrl.u32 %v1377, 7
        %v1379 = vsub.s32 %v1376, %v1378
        %v1380 = vrot.slane %v1373, %v1379
        %v1381 = vcombine.low %v1287, %v1288
        %v1383 = vunpack.c.l.s4 1983009808
        %v1384 = vunpack.c.0.s8 %v1383
        %v1385 = vlaneseq
        %v1386 = vshrl.u32 %v1385, 7
        %v1387 = vsub.s32 %v1384, %v1386
        %v1388 = vrot.slane %v1381, %v1387
        %v1389 = vcombine.low %v1364, %v1372
        %v1390 = vcombine.high %v1364, %v1372
        %v1392 = vunpack.c.l.s4 1934713408
        %v1393 = vunpack.c.0.s8 %v1392
        %v1394 = vlaneseq
        %v1395 = vshrl.u32 %v1394, 7
        %v1396 = vsub.s32 %v1393, %v1395
        %v1397 = vrot.slane %v1389, %v1396
        %v1399 = vunpack.c.l.s4 1934713408
        %v1400 = vunpack.c.0.s8 %v1399
        %v1401 = vlaneseq
        %v1402 = vshrl.u32 %v1401, 7
        %v1403 = vsub.s32 %v1400, %v1402
        %v1404 = vrot.slane %v1390, %v1403
        %v1405 = vcombine.low %v1380, %v1388
        %v1406 = vcombine.high %v1380, %v1388
        %v1408 = vunpack.c.l.s4 1934713408
        %v1409 = vunpack.c.0.s8 %v1408
        %v1410 = vlaneseq
        %v1411 = vshrl.u32 %v1410, 7
        %v1412 = vsub.s32 %v1409, %v1411
        %v1413 = vrot.slane %v1405, %v1412
        %v1415 = vunpack.c.l.s4 1934713408
        %v1416 = vunpack.c.0.s8 %v1415
        %v1417 = vlaneseq
        %v1418 = vshrl.u32 %v1417, 7
        %v1419 = vsub.s32 %v1416, %v1418
        %v1420 = vrot.slane %v1406, %v1419
        %v1421 = vcombine.low %v1397, %v1413
        %v1422 = vcombine.high %v1397, %v1413
        %v1423 = vcombine.low %v1404, %v1420
        %v1424 = vcombine.high %v1404, %v1420
        %v1425 = vpack.c.bf16 %v1353, %v1353
        %v1426 = vpack.c.bf16 %v1354, %v1354
        %v1427 = vpack.c.bf16 %v1355, %v1355
        %v1428 = vpack.c.bf16 %v1356, %v1356
        %v1429 = vpack.c.bf16 %v1421, %v1421
        %v1430 = vpack.c.bf16 %v1422, %v1422
        %v1431 = vpack.c.bf16 %v1423, %v1423
        %v1432 = vpack.c.bf16 %v1424, %v1424
        %1433 = vrot.lane.b32.xlu0 %v823, 64
        %v1434 = vpop.permute.xlu0 %1433
        %1435 = vrot.lane.b32.xlu0 %v832, 64
        %v1436 = vpop.permute.xlu0 %1435
        %1437 = vrot.lane.b32.xlu0 %v838, 64
        %v1438 = vpop.permute.xlu0 %1437
        %1439 = vrot.lane.b32.xlu0 %v844, 64
        %v1440 = vpop.permute.xlu0 %1439
        %1441 = vrot.lane.b32.xlu0 %v826, 64
        %v1442 = vpop.permute.xlu0 %1441
        %1443 = vrot.lane.b32.xlu0 %v834, 64
        %v1444 = vpop.permute.xlu0 %1443
        %1445 = vrot.lane.b32.xlu0 %v840, 64
        %v1446 = vpop.permute.xlu0 %1445
        %1447 = vrot.lane.b32.xlu0 %v846, 64
        %v1448 = vpop.permute.xlu0 %1447
        %v1457 = vcombine.low %v1434, %v1438
        %v1458 = vcombine.high %v1434, %v1438
        %v1460 = vunpack.c.l.s4 1983009808
        %v1461 = vunpack.c.0.s8 %v1460
        %v1462 = vlaneseq
        %v1463 = vshrl.u32 %v1462, 7
        %v1464 = vsub.s32 %v1461, %v1463
        %v1465 = vrot.slane %v1457, %v1464
        %v1467 = vunpack.c.l.s4 1983009808
        %v1468 = vunpack.c.0.s8 %v1467
        %v1469 = vlaneseq
        %v1470 = vshrl.u32 %v1469, 7
        %v1471 = vsub.s32 %v1468, %v1470
        %v1472 = vrot.slane %v1458, %v1471
        %v1473 = vcombine.low %v1436, %v1440
        %v1474 = vcombine.high %v1436, %v1440
        %v1476 = vunpack.c.l.s4 1983009808
        %v1477 = vunpack.c.0.s8 %v1476
        %v1478 = vlaneseq
        %v1479 = vshrl.u32 %v1478, 7
        %v1480 = vsub.s32 %v1477, %v1479
        %v1481 = vrot.slane %v1473, %v1480
        %v1483 = vunpack.c.l.s4 1983009808
        %v1484 = vunpack.c.0.s8 %v1483
        %v1485 = vlaneseq
        %v1486 = vshrl.u32 %v1485, 7
        %v1487 = vsub.s32 %v1484, %v1486
        %v1488 = vrot.slane %v1474, %v1487
        %v1489 = vcombine.low %v1465, %v1481
        %v1490 = vcombine.high %v1465, %v1481
        %v1492 = vunpack.c.l.s4 1934713408
        %v1493 = vunpack.c.0.s8 %v1492
        %v1494 = vlaneseq
        %v1495 = vshrl.u32 %v1494, 7
        %v1496 = vsub.s32 %v1493, %v1495
        %v1497 = vrot.slane %v1489, %v1496
        %v1499 = vunpack.c.l.s4 1934713408
        %v1500 = vunpack.c.0.s8 %v1499
        %v1501 = vlaneseq
        %v1502 = vshrl.u32 %v1501, 7
        %v1503 = vsub.s32 %v1500, %v1502
        %v1504 = vrot.slane %v1490, %v1503
        %v1505 = vcombine.low %v1472, %v1488
        %v1506 = vcombine.high %v1472, %v1488
        %v1508 = vunpack.c.l.s4 1934713408
        %v1509 = vunpack.c.0.s8 %v1508
        %v1510 = vlaneseq
        %v1511 = vshrl.u32 %v1510, 7
        %v1512 = vsub.s32 %v1509, %v1511
        %v1513 = vrot.slane %v1505, %v1512
        %v1515 = vunpack.c.l.s4 1934713408
        %v1516 = vunpack.c.0.s8 %v1515
        %v1517 = vlaneseq
        %v1518 = vshrl.u32 %v1517, 7
        %v1519 = vsub.s32 %v1516, %v1518
        %v1520 = vrot.slane %v1506, %v1519
        %v1521 = vcombine.high %v1497, 0.0
        %v1522 = vcombine.high %v1504, 0.0
        %v1523 = vcombine.high %v1513, 0.0
        %v1524 = vcombine.high %v1520, 0.0
        %v1525 = vcombine.low %v1442, %v1446
        %v1526 = vcombine.high %v1442, %v1446
        %v1528 = vunpack.c.l.s4 1983009808
        %v1529 = vunpack.c.0.s8 %v1528
        %v1530 = vlaneseq
        %v1531 = vshrl.u32 %v1530, 7
        %v1532 = vsub.s32 %v1529, %v1531
        %v1533 = vrot.slane %v1525, %v1532
        %v1535 = vunpack.c.l.s4 1983009808
        %v1536 = vunpack.c.0.s8 %v1535
        %v1537 = vlaneseq
        %v1538 = vshrl.u32 %v1537, 7
        %v1539 = vsub.s32 %v1536, %v1538
        %v1540 = vrot.slane %v1526, %v1539
        %v1541 = vcombine.low %v1444, %v1448
        %v1542 = vcombine.high %v1444, %v1448
        %v1544 = vunpack.c.l.s4 1983009808
        %v1545 = vunpack.c.0.s8 %v1544
        %v1546 = vlaneseq
        %v1547 = vshrl.u32 %v1546, 7
        %v1548 = vsub.s32 %v1545, %v1547
        %v1549 = vrot.slane %v1541, %v1548
        %v1551 = vunpack.c.l.s4 1983009808
        %v1552 = vunpack.c.0.s8 %v1551
        %v1553 = vlaneseq
        %v1554 = vshrl.u32 %v1553, 7
        %v1555 = vsub.s32 %v1552, %v1554
        %v1556 = vrot.slane %v1542, %v1555
        %v1557 = vcombine.low %v1533, %v1549
        %v1558 = vcombine.high %v1533, %v1549
        %v1560 = vunpack.c.l.s4 1934713408
        %v1561 = vunpack.c.0.s8 %v1560
        %v1562 = vlaneseq
        %v1563 = vshrl.u32 %v1562, 7
        %v1564 = vsub.s32 %v1561, %v1563
        %v1565 = vrot.slane %v1557, %v1564
        %v1567 = vunpack.c.l.s4 1934713408
        %v1568 = vunpack.c.0.s8 %v1567
        %v1569 = vlaneseq
        %v1570 = vshrl.u32 %v1569, 7
        %v1571 = vsub.s32 %v1568, %v1570
        %v1572 = vrot.slane %v1558, %v1571
        %v1573 = vcombine.low %v1540, %v1556
        %v1574 = vcombine.high %v1540, %v1556
        %v1576 = vunpack.c.l.s4 1934713408
        %v1577 = vunpack.c.0.s8 %v1576
        %v1578 = vlaneseq
        %v1579 = vshrl.u32 %v1578, 7
        %v1580 = vsub.s32 %v1577, %v1579
        %v1581 = vrot.slane %v1573, %v1580
        %v1583 = vunpack.c.l.s4 1934713408
        %v1584 = vunpack.c.0.s8 %v1583
        %v1585 = vlaneseq
        %v1586 = vshrl.u32 %v1585, 7
        %v1587 = vsub.s32 %v1584, %v1586
        %v1588 = vrot.slane %v1574, %v1587
        %v1589 = vcombine.high %v1565, 0.0
        %v1590 = vcombine.high %v1572, 0.0
        %v1591 = vcombine.high %v1581, 0.0
        %v1592 = vcombine.high %v1588, 0.0
        %v1593 = vcombine.low %v1497, %v1504
        %v1595 = vunpack.c.l.s4 1983009808
        %v1596 = vunpack.c.0.s8 %v1595
        %v1597 = vlaneseq
        %v1598 = vshrl.u32 %v1597, 7
        %v1599 = vsub.s32 %v1596, %v1598
        %v1600 = vrot.slane %v1593, %v1599
        %v1601 = vcombine.low %v1521, %v1522
        %v1603 = vunpack.c.l.s4 1983009808
        %v1604 = vunpack.c.0.s8 %v1603
        %v1605 = vlaneseq
        %v1606 = vshrl.u32 %v1605, 7
        %v1607 = vsub.s32 %v1604, %v1606
        %v1608 = vrot.slane %v1601, %v1607
        %v1609 = vcombine.low %v1513, %v1520
        %v1611 = vunpack.c.l.s4 1983009808
        %v1612 = vunpack.c.0.s8 %v1611
        %v1613 = vlaneseq
        %v1614 = vshrl.u32 %v1613, 7
        %v1615 = vsub.s32 %v1612, %v1614
        %v1616 = vrot.slane %v1609, %v1615
        %v1617 = vcombine.low %v1523, %v1524
        %v1619 = vunpack.c.l.s4 1983009808
        %v1620 = vunpack.c.0.s8 %v1619
        %v1621 = vlaneseq
        %v1622 = vshrl.u32 %v1621, 7
        %v1623 = vsub.s32 %v1620, %v1622
        %v1624 = vrot.slane %v1617, %v1623
        %v1625 = vcombine.low %v1600, %v1608
        %v1626 = vcombine.high %v1600, %v1608
        %v1628 = vunpack.c.l.s4 1934713408
        %v1629 = vunpack.c.0.s8 %v1628
        %v1630 = vlaneseq
        %v1631 = vshrl.u32 %v1630, 7
        %v1632 = vsub.s32 %v1629, %v1631
        %v1633 = vrot.slane %v1625, %v1632
        %v1635 = vunpack.c.l.s4 1934713408
        %v1636 = vunpack.c.0.s8 %v1635
        %v1637 = vlaneseq
        %v1638 = vshrl.u32 %v1637, 7
        %v1639 = vsub.s32 %v1636, %v1638
        %v1640 = vrot.slane %v1626, %v1639
        %v1641 = vcombine.low %v1616, %v1624
        %v1642 = vcombine.high %v1616, %v1624
        %v1644 = vunpack.c.l.s4 1934713408
        %v1645 = vunpack.c.0.s8 %v1644
        %v1646 = vlaneseq
        %v1647 = vshrl.u32 %v1646, 7
        %v1648 = vsub.s32 %v1645, %v1647
        %v1649 = vrot.slane %v1641, %v1648
        %v1651 = vunpack.c.l.s4 1934713408
        %v1652 = vunpack.c.0.s8 %v1651
        %v1653 = vlaneseq
        %v1654 = vshrl.u32 %v1653, 7
        %v1655 = vsub.s32 %v1652, %v1654
        %v1656 = vrot.slane %v1642, %v1655
        %v1657 = vcombine.low %v1633, %v1649
        %v1658 = vcombine.high %v1633, %v1649
        %v1659 = vcombine.low %v1640, %v1656
        %v1660 = vcombine.high %v1640, %v1656
        %v1661 = vcombine.low %v1565, %v1572
        %v1663 = vunpack.c.l.s4 1983009808
        %v1664 = vunpack.c.0.s8 %v1663
        %v1665 = vlaneseq
        %v1666 = vshrl.u32 %v1665, 7
        %v1667 = vsub.s32 %v1664, %v1666
        %v1668 = vrot.slane %v1661, %v1667
        %v1669 = vcombine.low %v1589, %v1590
        %v1671 = vunpack.c.l.s4 1983009808
        %v1672 = vunpack.c.0.s8 %v1671
        %v1673 = vlaneseq
        %v1674 = vshrl.u32 %v1673, 7
        %v1675 = vsub.s32 %v1672, %v1674
        %v1676 = vrot.slane %v1669, %v1675
        %v1677 = vcombine.low %v1581, %v1588
        %v1679 = vunpack.c.l.s4 1983009808
        %v1680 = vunpack.c.0.s8 %v1679
        %v1681 = vlaneseq
        %v1682 = vshrl.u32 %v1681, 7
        %v1683 = vsub.s32 %v1680, %v1682
        %v1684 = vrot.slane %v1677, %v1683
        %v1685 = vcombine.low %v1591, %v1592
        %v1687 = vunpack.c.l.s4 1983009808
        %v1688 = vunpack.c.0.s8 %v1687
        %v1689 = vlaneseq
        %v1690 = vshrl.u32 %v1689, 7
        %v1691 = vsub.s32 %v1688, %v1690
        %v1692 = vrot.slane %v1685, %v1691
        %v1693 = vcombine.low %v1668, %v1676
        %v1694 = vcombine.high %v1668, %v1676
        %v1696 = vunpack.c.l.s4 1934713408
        %v1697 = vunpack.c.0.s8 %v1696
        %v1698 = vlaneseq
        %v1699 = vshrl.u32 %v1698, 7
        %v1700 = vsub.s32 %v1697, %v1699
        %v1701 = vrot.slane %v1693, %v1700
        %v1703 = vunpack.c.l.s4 1934713408
        %v1704 = vunpack.c.0.s8 %v1703
        %v1705 = vlaneseq
        %v1706 = vshrl.u32 %v1705, 7
        %v1707 = vsub.s32 %v1704, %v1706
        %v1708 = vrot.slane %v1694, %v1707
        %v1709 = vcombine.low %v1684, %v1692
        %v1710 = vcombine.high %v1684, %v1692
        %v1712 = vunpack.c.l.s4 1934713408
        %v1713 = vunpack.c.0.s8 %v1712
        %v1714 = vlaneseq
        %v1715 = vshrl.u32 %v1714, 7
        %v1716 = vsub.s32 %v1713, %v1715
        %v1717 = vrot.slane %v1709, %v1716
        %v1719 = vunpack.c.l.s4 1934713408
        %v1720 = vunpack.c.0.s8 %v1719
        %v1721 = vlaneseq
        %v1722 = vshrl.u32 %v1721, 7
        %v1723 = vsub.s32 %v1720, %v1722
        %v1724 = vrot.slane %v1710, %v1723
        %v1725 = vcombine.low %v1701, %v1717
        %v1726 = vcombine.high %v1701, %v1717
        %v1727 = vcombine.low %v1708, %v1724
        %v1728 = vcombine.high %v1708, %v1724
        %v1729 = vpack.c.bf16 %v1657, %v1657
        %v1730 = vpack.c.bf16 %v1658, %v1658
        %v1731 = vpack.c.bf16 %v1659, %v1659
        %v1732 = vpack.c.bf16 %v1660, %v1660
        %v1733 = vpack.c.bf16 %v1725, %v1725
        %v1734 = vpack.c.bf16 %v1726, %v1726
        %v1735 = vpack.c.bf16 %v1727, %v1727
        %v1736 = vpack.c.bf16 %v1728, %v1728
        %vm1737 = vcmask 64512
        %v1739 = vsel %vm1737, %v1121, 0
        %v1742 = vsel %vm1737, %v1425, 0
        %1744 = vmatprep.subr.bf16.mxu0 0
        %1745 = vmatpush1.bf16.xpose.msra.mxu0 %v1742
        %1746 = vmatprep.subr.bf16.mxu0 0
        %1747 = vmatpush1.bf16.xpose.msra.mxu0 0
        %1748 = vmatprep.subr.bf16.mxu0 0
        %1749 = vmatpush1.bf16.xpose.msra.mxu0 0
        %1750 = vmatprep.subr.bf16.mxu0 0
        %1751 = vmatpush1.bf16.xpose.msra.mxu0 0
        %1752 = vmatprep.subr.bf16.mxu0 0
        %1753 = vmatpush1.bf16.xpose.msra.mxu0 0
        %1754 = vmatprep.subr.bf16.mxu0 0
        %1755 = vmatpush1.bf16.xpose.msra.mxu0 0
        %1756 = vmatprep.subr.bf16.mxu0 0
        %1757 = vmatpush1.bf16.xpose.msra.mxu0 0
        %1758 = vmatprep.subr.bf16.mxu0 0
        %1759 = vmatpush1.bf16.xpose.msra.mxu0 0
        %1760 = vmatprep.subr.bf16.mxu0 0
        %1761 = vmatpush1.bf16.xpose.msra.mxu0 0
        %1762 = vmatprep.subr.bf16.mxu0 0
        %1763 = vmatpush1.bf16.xpose.msra.mxu0 0
        %1764 = vmatprep.subr.bf16.mxu0 0
        %1765 = vmatpush1.bf16.xpose.msra.mxu0 0
        %1766 = vmatprep.subr.bf16.mxu0 0
        %1767 = vmatpush1.bf16.xpose.msra.mxu0 0
        %1768 = vmatprep.subr.bf16.mxu0 0
        %1769 = vmatpush1.bf16.xpose.msra.mxu0 0
        %1770 = vmatprep.subr.bf16.mxu0 0
        %1771 = vmatpush1.bf16.xpose.msra.mxu0 0
        %1772 = vmatprep.subr.bf16.mxu0 0
        %1773 = vmatpush1.bf16.xpose.msra.mxu0 0
        %1774 = vmatprep.subr.bf16.mxu0 0
        %1775 = vmatpush1.bf16.xpose.msra.mxu0 0
        %1776 = vmatprep.mubr.bf16.mxu0 0
        %1777 = vmatmul.mubr.bf16.gmra.mrb[0].mxu0 %v1739
        %v1778 = vpop.f32.mrb[0].mxu0
        %v1779 = vadd.f32 0.0, %v1778
        %v1780 = vpop.f32.mrb[0].mxu0
        %v1781 = vpop.f32.mrb[0].mxu0
        %v1782 = vpop.f32.mrb[0].mxu0
        %1783 = vdwg.mxu0
        %v1785 = vsel %vm1737, %v1122, 0
        %v1788 = vsel %vm1737, %v1426, 0
        %1790 = vmatprep.subr.bf16.mxu0 0
        %1791 = vmatpush1.bf16.xpose.msra.mxu0 %v1788
        %1792 = vmatprep.subr.bf16.mxu0 0
        %1793 = vmatpush1.bf16.xpose.msra.mxu0 0
        %1794 = vmatprep.subr.bf16.mxu0 0
        %1795 = vmatpush1.bf16.xpose.msra.mxu0 0
        %1796 = vmatprep.subr.bf16.mxu0 0
        %1797 = vmatpush1.bf16.xpose.msra.mxu0 0
        %1798 = vmatprep.subr.bf16.mxu0 0
        %1799 = vmatpush1.bf16.xpose.msra.mxu0 0
        %1800 = vmatprep.subr.bf16.mxu0 0
        %1801 = vmatpush1.bf16.xpose.msra.mxu0 0
        %1802 = vmatprep.subr.bf16.mxu0 0
        %1803 = vmatpush1.bf16.xpose.msra.mxu0 0
        %1804 = vmatprep.subr.bf16.mxu0 0
        %1805 = vmatpush1.bf16.xpose.msra.mxu0 0
        %1806 = vmatprep.subr.bf16.mxu0 0
        %1807 = vmatpush1.bf16.xpose.msra.mxu0 0
        %1808 = vmatprep.subr.bf16.mxu0 0
        %1809 = vmatpush1.bf16.xpose.msra.mxu0 0
        %1810 = vmatprep.subr.bf16.mxu0 0
        %1811 = vmatpush1.bf16.xpose.msra.mxu0 0
        %1812 = vmatprep.subr.bf16.mxu0 0
        %1813 = vmatpush1.bf16.xpose.msra.mxu0 0
        %1814 = vmatprep.subr.bf16.mxu0 0
        %1815 = vmatpush1.bf16.xpose.msra.mxu0 0
        %1816 = vmatprep.subr.bf16.mxu0 0
        %1817 = vmatpush1.bf16.xpose.msra.mxu0 0
        %1818 = vmatprep.subr.bf16.mxu0 0
        %1819 = vmatpush1.bf16.xpose.msra.mxu0 0
        %1820 = vmatprep.subr.bf16.mxu0 0
        %1821 = vmatpush1.bf16.xpose.msra.mxu0 0
        %1822 = vmatprep.mubr.bf16.mxu0 0
        %1823 = vmatmul.mubr.bf16.gmra.mrb[0].mxu0 %v1785
        %v1824 = vpop.f32.mrb[0].mxu0
        %v1825 = vadd.f32 0.0, %v1824
        %v1826 = vpop.f32.mrb[0].mxu0
        %v1827 = vpop.f32.mrb[0].mxu0
        %v1828 = vpop.f32.mrb[0].mxu0
        %1829 = vdwg.mxu0
        %v1831 = vsel %vm1737, %v1123, 0
        %v1834 = vsel %vm1737, %v1427, 0
        %1836 = vmatprep.subr.bf16.mxu0 0
        %1837 = vmatpush1.bf16.xpose.msra.mxu0 %v1834
        %1838 = vmatprep.subr.bf16.mxu0 0
        %1839 = vmatpush1.bf16.xpose.msra.mxu0 0
        %1840 = vmatprep.subr.bf16.mxu0 0
        %1841 = vmatpush1.bf16.xpose.msra.mxu0 0
        %1842 = vmatprep.subr.bf16.mxu0 0
        %1843 = vmatpush1.bf16.xpose.msra.mxu0 0
        %1844 = vmatprep.subr.bf16.mxu0 0
        %1845 = vmatpush1.bf16.xpose.msra.mxu0 0
        %1846 = vmatprep.subr.bf16.mxu0 0
        %1847 = vmatpush1.bf16.xpose.msra.mxu0 0
        %1848 = vmatprep.subr.bf16.mxu0 0
        %1849 = vmatpush1.bf16.xpose.msra.mxu0 0
        %1850 = vmatprep.subr.bf16.mxu0 0
        %1851 = vmatpush1.bf16.xpose.msra.mxu0 0
        %1852 = vmatprep.subr.bf16.mxu0 0
        %1853 = vmatpush1.bf16.xpose.msra.mxu0 0
        %1854 = vmatprep.subr.bf16.mxu0 0
        %1855 = vmatpush1.bf16.xpose.msra.mxu0 0
        %1856 = vmatprep.subr.bf16.mxu0 0
        %1857 = vmatpush1.bf16.xpose.msra.mxu0 0
        %1858 = vmatprep.subr.bf16.mxu0 0
        %1859 = vmatpush1.bf16.xpose.msra.mxu0 0
        %1860 = vmatprep.subr.bf16.mxu0 0
        %1861 = vmatpush1.bf16.xpose.msra.mxu0 0
        %1862 = vmatprep.subr.bf16.mxu0 0
        %1863 = vmatpush1.bf16.xpose.msra.mxu0 0
        %1864 = vmatprep.subr.bf16.mxu0 0
        %1865 = vmatpush1.bf16.xpose.msra.mxu0 0
        %1866 = vmatprep.subr.bf16.mxu0 0
        %1867 = vmatpush1.bf16.xpose.msra.mxu0 0
        %1868 = vmatprep.mubr.bf16.mxu0 0
        %1869 = vmatmul.mubr.bf16.gmra.mrb[0].mxu0 %v1831
        %v1870 = vpop.f32.mrb[0].mxu0
        %v1871 = vadd.f32 0.0, %v1870
        %v1872 = vpop.f32.mrb[0].mxu0
        %v1873 = vpop.f32.mrb[0].mxu0
        %v1874 = vpop.f32.mrb[0].mxu0
        %1875 = vdwg.mxu0
        %v1877 = vsel %vm1737, %v1124, 0
        %v1880 = vsel %vm1737, %v1428, 0
        %1882 = vmatprep.subr.bf16.mxu0 0
        %1883 = vmatpush1.bf16.xpose.msra.mxu0 %v1880
        %1884 = vmatprep.subr.bf16.mxu0 0
        %1885 = vmatpush1.bf16.xpose.msra.mxu0 0
        %1886 = vmatprep.subr.bf16.mxu0 0
        %1887 = vmatpush1.bf16.xpose.msra.mxu0 0
        %1888 = vmatprep.subr.bf16.mxu0 0
        %1889 = vmatpush1.bf16.xpose.msra.mxu0 0
        %1890 = vmatprep.subr.bf16.mxu0 0
        %1891 = vmatpush1.bf16.xpose.msra.mxu0 0
        %1892 = vmatprep.subr.bf16.mxu0 0
        %1893 = vmatpush1.bf16.xpose.msra.mxu0 0
        %1894 = vmatprep.subr.bf16.mxu0 0
        %1895 = vmatpush1.bf16.xpose.msra.mxu0 0
        %1896 = vmatprep.subr.bf16.mxu0 0
        %1897 = vmatpush1.bf16.xpose.msra.mxu0 0
        %1898 = vmatprep.subr.bf16.mxu0 0
        %1899 = vmatpush1.bf16.xpose.msra.mxu0 0
        %1900 = vmatprep.subr.bf16.mxu0 0
        %1901 = vmatpush1.bf16.xpose.msra.mxu0 0
        %1902 = vmatprep.subr.bf16.mxu0 0
        %1903 = vmatpush1.bf16.xpose.msra.mxu0 0
        %1904 = vmatprep.subr.bf16.mxu0 0
        %1905 = vmatpush1.bf16.xpose.msra.mxu0 0
        %1906 = vmatprep.subr.bf16.mxu0 0
        %1907 = vmatpush1.bf16.xpose.msra.mxu0 0
        %1908 = vmatprep.subr.bf16.mxu0 0
        %1909 = vmatpush1.bf16.xpose.msra.mxu0 0
        %1910 = vmatprep.subr.bf16.mxu0 0
        %1911 = vmatpush1.bf16.xpose.msra.mxu0 0
        %1912 = vmatprep.subr.bf16.mxu0 0
        %1913 = vmatpush1.bf16.xpose.msra.mxu0 0
        %1914 = vmatprep.mubr.bf16.mxu0 0
        %1915 = vmatmul.mubr.bf16.gmra.mrb[0].mxu0 %v1877
        %v1916 = vpop.f32.mrb[0].mxu0
        %v1917 = vadd.f32 0.0, %v1916
        %v1918 = vpop.f32.mrb[0].mxu0
        %v1919 = vpop.f32.mrb[0].mxu0
        %v1920 = vpop.f32.mrb[0].mxu0
        %1921 = vdwg.mxu0
        %v1923 = vsel %vm1737, %v1125, 0
        %v1926 = vsel %vm1737, %v1429, 0
        %1928 = vmatprep.subr.bf16.mxu0 0
        %1929 = vmatpush1.bf16.xpose.msra.mxu0 %v1926
        %1930 = vmatprep.subr.bf16.mxu0 0
        %1931 = vmatpush1.bf16.xpose.msra.mxu0 0
        %1932 = vmatprep.subr.bf16.mxu0 0
        %1933 = vmatpush1.bf16.xpose.msra.mxu0 0
        %1934 = vmatprep.subr.bf16.mxu0 0
        %1935 = vmatpush1.bf16.xpose.msra.mxu0 0
        %1936 = vmatprep.subr.bf16.mxu0 0
        %1937 = vmatpush1.bf16.xpose.msra.mxu0 0
        %1938 = vmatprep.subr.bf16.mxu0 0
        %1939 = vmatpush1.bf16.xpose.msra.mxu0 0
        %1940 = vmatprep.subr.bf16.mxu0 0
        %1941 = vmatpush1.bf16.xpose.msra.mxu0 0
        %1942 = vmatprep.subr.bf16.mxu0 0
        %1943 = vmatpush1.bf16.xpose.msra.mxu0 0
        %1944 = vmatprep.subr.bf16.mxu0 0
        %1945 = vmatpush1.bf16.xpose.msra.mxu0 0
        %1946 = vmatprep.subr.bf16.mxu0 0
        %1947 = vmatpush1.bf16.xpose.msra.mxu0 0
        %1948 = vmatprep.subr.bf16.mxu0 0
        %1949 = vmatpush1.bf16.xpose.msra.mxu0 0
        %1950 = vmatprep.subr.bf16.mxu0 0
        %1951 = vmatpush1.bf16.xpose.msra.mxu0 0
        %1952 = vmatprep.subr.bf16.mxu0 0
        %1953 = vmatpush1.bf16.xpose.msra.mxu0 0
        %1954 = vmatprep.subr.bf16.mxu0 0
        %1955 = vmatpush1.bf16.xpose.msra.mxu0 0
        %1956 = vmatprep.subr.bf16.mxu0 0
        %1957 = vmatpush1.bf16.xpose.msra.mxu0 0
        %1958 = vmatprep.subr.bf16.mxu0 0
        %1959 = vmatpush1.bf16.xpose.msra.mxu0 0
        %1960 = vmatprep.mubr.bf16.mxu0 0
        %1961 = vmatmul.mubr.bf16.gmra.mrb[0].mxu0 %v1923
        %v1962 = vpop.f32.mrb[0].mxu0
        %v1963 = vadd.f32 0.0, %v1962
        %v1964 = vpop.f32.mrb[0].mxu0
        %v1965 = vpop.f32.mrb[0].mxu0
        %v1966 = vpop.f32.mrb[0].mxu0
        %1967 = vdwg.mxu0
        %v1969 = vsel %vm1737, %v1126, 0
        %v1972 = vsel %vm1737, %v1430, 0
        %1974 = vmatprep.subr.bf16.mxu0 0
        %1975 = vmatpush1.bf16.xpose.msra.mxu0 %v1972
        %1976 = vmatprep.subr.bf16.mxu0 0
        %1977 = vmatpush1.bf16.xpose.msra.mxu0 0
        %1978 = vmatprep.subr.bf16.mxu0 0
        %1979 = vmatpush1.bf16.xpose.msra.mxu0 0
        %1980 = vmatprep.subr.bf16.mxu0 0
        %1981 = vmatpush1.bf16.xpose.msra.mxu0 0
        %1982 = vmatprep.subr.bf16.mxu0 0
        %1983 = vmatpush1.bf16.xpose.msra.mxu0 0
        %1984 = vmatprep.subr.bf16.mxu0 0
        %1985 = vmatpush1.bf16.xpose.msra.mxu0 0
        %1986 = vmatprep.subr.bf16.mxu0 0
        %1987 = vmatpush1.bf16.xpose.msra.mxu0 0
        %1988 = vmatprep.subr.bf16.mxu0 0
        %1989 = vmatpush1.bf16.xpose.msra.mxu0 0
        %1990 = vmatprep.subr.bf16.mxu0 0
        %1991 = vmatpush1.bf16.xpose.msra.mxu0 0
        %1992 = vmatprep.subr.bf16.mxu0 0
        %1993 = vmatpush1.bf16.xpose.msra.mxu0 0
        %1994 = vmatprep.subr.bf16.mxu0 0
        %1995 = vmatpush1.bf16.xpose.msra.mxu0 0
        %1996 = vmatprep.subr.bf16.mxu0 0
        %1997 = vmatpush1.bf16.xpose.msra.mxu0 0
        %1998 = vmatprep.subr.bf16.mxu0 0
        %1999 = vmatpush1.bf16.xpose.msra.mxu0 0
        %2000 = vmatprep.subr.bf16.mxu0 0
        %2001 = vmatpush1.bf16.xpose.msra.mxu0 0
        %2002 = vmatprep.subr.bf16.mxu0 0
        %2003 = vmatpush1.bf16.xpose.msra.mxu0 0
        %2004 = vmatprep.subr.bf16.mxu0 0
        %2005 = vmatpush1.bf16.xpose.msra.mxu0 0
        %2006 = vmatprep.mubr.bf16.mxu0 0
        %2007 = vmatmul.mubr.bf16.gmra.mrb[0].mxu0 %v1969
        %v2008 = vpop.f32.mrb[0].mxu0
        %v2009 = vadd.f32 0.0, %v2008
        %v2010 = vpop.f32.mrb[0].mxu0
        %v2011 = vpop.f32.mrb[0].mxu0
        %v2012 = vpop.f32.mrb[0].mxu0
        %2013 = vdwg.mxu0
        %v2015 = vsel %vm1737, %v1127, 0
        %v2018 = vsel %vm1737, %v1431, 0
        %2020 = vmatprep.subr.bf16.mxu0 0
        %2021 = vmatpush1.bf16.xpose.msra.mxu0 %v2018
        %2022 = vmatprep.subr.bf16.mxu0 0
        %2023 = vmatpush1.bf16.xpose.msra.mxu0 0
        %2024 = vmatprep.subr.bf16.mxu0 0
        %2025 = vmatpush1.bf16.xpose.msra.mxu0 0
        %2026 = vmatprep.subr.bf16.mxu0 0
        %2027 = vmatpush1.bf16.xpose.msra.mxu0 0
        %2028 = vmatprep.subr.bf16.mxu0 0
        %2029 = vmatpush1.bf16.xpose.msra.mxu0 0
        %2030 = vmatprep.subr.bf16.mxu0 0
        %2031 = vmatpush1.bf16.xpose.msra.mxu0 0
        %2032 = vmatprep.subr.bf16.mxu0 0
        %2033 = vmatpush1.bf16.xpose.msra.mxu0 0
        %2034 = vmatprep.subr.bf16.mxu0 0
        %2035 = vmatpush1.bf16.xpose.msra.mxu0 0
        %2036 = vmatprep.subr.bf16.mxu0 0
        %2037 = vmatpush1.bf16.xpose.msra.mxu0 0
        %2038 = vmatprep.subr.bf16.mxu0 0
        %2039 = vmatpush1.bf16.xpose.msra.mxu0 0
        %2040 = vmatprep.subr.bf16.mxu0 0
        %2041 = vmatpush1.bf16.xpose.msra.mxu0 0
        %2042 = vmatprep.subr.bf16.mxu0 0
        %2043 = vmatpush1.bf16.xpose.msra.mxu0 0
        %2044 = vmatprep.subr.bf16.mxu0 0
        %2045 = vmatpush1.bf16.xpose.msra.mxu0 0
        %2046 = vmatprep.subr.bf16.mxu0 0
        %2047 = vmatpush1.bf16.xpose.msra.mxu0 0
        %2048 = vmatprep.subr.bf16.mxu0 0
        %2049 = vmatpush1.bf16.xpose.msra.mxu0 0
        %2050 = vmatprep.subr.bf16.mxu0 0
        %2051 = vmatpush1.bf16.xpose.msra.mxu0 0
        %2052 = vmatprep.mubr.bf16.mxu0 0
        %2053 = vmatmul.mubr.bf16.gmra.mrb[0].mxu0 %v2015
        %v2054 = vpop.f32.mrb[0].mxu0
        %v2055 = vadd.f32 0.0, %v2054
        %v2056 = vpop.f32.mrb[0].mxu0
        %v2057 = vpop.f32.mrb[0].mxu0
        %v2058 = vpop.f32.mrb[0].mxu0
        %2059 = vdwg.mxu0
        %v2061 = vsel %vm1737, %v1128, 0
        %v2064 = vsel %vm1737, %v1432, 0
        %2066 = vmatprep.subr.bf16.mxu0 0
        %2067 = vmatpush1.bf16.xpose.msra.mxu0 %v2064
        %2068 = vmatprep.subr.bf16.mxu0 0
        %2069 = vmatpush1.bf16.xpose.msra.mxu0 0
        %2070 = vmatprep.subr.bf16.mxu0 0
        %2071 = vmatpush1.bf16.xpose.msra.mxu0 0
        %2072 = vmatprep.subr.bf16.mxu0 0
        %2073 = vmatpush1.bf16.xpose.msra.mxu0 0
        %2074 = vmatprep.subr.bf16.mxu0 0
        %2075 = vmatpush1.bf16.xpose.msra.mxu0 0
        %2076 = vmatprep.subr.bf16.mxu0 0
        %2077 = vmatpush1.bf16.xpose.msra.mxu0 0
        %2078 = vmatprep.subr.bf16.mxu0 0
        %2079 = vmatpush1.bf16.xpose.msra.mxu0 0
        %2080 = vmatprep.subr.bf16.mxu0 0
        %2081 = vmatpush1.bf16.xpose.msra.mxu0 0
        %2082 = vmatprep.subr.bf16.mxu0 0
        %2083 = vmatpush1.bf16.xpose.msra.mxu0 0
        %2084 = vmatprep.subr.bf16.mxu0 0
        %2085 = vmatpush1.bf16.xpose.msra.mxu0 0
        %2086 = vmatprep.subr.bf16.mxu0 0
        %2087 = vmatpush1.bf16.xpose.msra.mxu0 0
        %2088 = vmatprep.subr.bf16.mxu0 0
        %2089 = vmatpush1.bf16.xpose.msra.mxu0 0
        %2090 = vmatprep.subr.bf16.mxu0 0
        %2091 = vmatpush1.bf16.xpose.msra.mxu0 0
        %2092 = vmatprep.subr.bf16.mxu0 0
        %2093 = vmatpush1.bf16.xpose.msra.mxu0 0
        %2094 = vmatprep.subr.bf16.mxu0 0
        %2095 = vmatpush1.bf16.xpose.msra.mxu0 0
        %2096 = vmatprep.subr.bf16.mxu0 0
        %2097 = vmatpush1.bf16.xpose.msra.mxu0 0
        %2098 = vmatprep.mubr.bf16.mxu0 0
        %2099 = vmatmul.mubr.bf16.gmra.mrb[0].mxu0 %v2061
        %v2100 = vpop.f32.mrb[0].mxu0
        %v2101 = vadd.f32 0.0, %v2100
        %v2102 = vpop.f32.mrb[0].mxu0
        %v2103 = vpop.f32.mrb[0].mxu0
        %v2104 = vpop.f32.mrb[0].mxu0
        %2105 = vdwg.mxu0
        %v2106 = vmul.f32 %v1779, 0.35355338
        %v2107 = vmul.f32 %v1825, 0.35355338
        %v2108 = vmul.f32 %v1871, 0.35355338
        %v2109 = vmul.f32 %v1917, 0.35355338
        %v2110 = vmul.f32 %v1963, 0.35355338
        %v2111 = vmul.f32 %v2009, 0.35355338
        %v2112 = vmul.f32 %v2055, 0.35355338
        %v2113 = vmul.f32 %v2101, 0.35355338
        %v2114 = vsel %vm1737, %v2106, -inf
        %2115 = vmax.xlane.f32.xlu0 %v2114
        %v2116 = vpop.xlane.xlu0 %2115
        %v2117 = vsel %vm1737, %v2107, -inf
        %2118 = vmax.xlane.f32.xlu0 %v2117
        %v2119 = vpop.xlane.xlu0 %2118
        %v2120 = vsel %vm1737, %v2108, -inf
        %2121 = vmax.xlane.f32.xlu0 %v2120
        %v2122 = vpop.xlane.xlu0 %2121
        %v2123 = vsel %vm1737, %v2109, -inf
        %2124 = vmax.xlane.f32.xlu0 %v2123
        %v2125 = vpop.xlane.xlu0 %2124
        %v2126 = vsel %vm1737, %v2110, -inf
        %2127 = vmax.xlane.f32.xlu0 %v2126
        %v2128 = vpop.xlane.xlu0 %2127
        %v2129 = vsel %vm1737, %v2111, -inf
        %2130 = vmax.xlane.f32.xlu0 %v2129
        %v2131 = vpop.xlane.xlu0 %2130
        %v2132 = vsel %vm1737, %v2112, -inf
        %2133 = vmax.xlane.f32.xlu0 %v2132
        %v2134 = vpop.xlane.xlu0 %2133
        %v2135 = vsel %vm1737, %v2113, -inf
        %2136 = vmax.xlane.f32.xlu0 %v2135
        %v2137 = vpop.xlane.xlu0 %2136
        %v2138 = vsub.f32 %v2106, %v2116
        %v2139 = vsub.f32 %v2107, %v2119
        %v2140 = vsub.f32 %v2108, %v2122
        %v2141 = vsub.f32 %v2109, %v2125
        %v2142 = vsub.f32 %v2110, %v2128
        %v2143 = vsub.f32 %v2111, %v2131
        %v2144 = vsub.f32 %v2112, %v2134
        %v2145 = vsub.f32 %v2113, %v2137
        %v2146 = vmul.f32 %v2138, 1.442695
        %v2147 = vpow.pop %v2146
        %v2148 = vmul.f32 %v2139, 1.442695
        %v2149 = vpow.pop %v2148
        %v2150 = vmul.f32 %v2140, 1.442695
        %v2151 = vpow.pop %v2150
        %v2152 = vmul.f32 %v2141, 1.442695
        %v2153 = vpow.pop %v2152
        %v2154 = vmul.f32 %v2142, 1.442695
        %v2155 = vpow.pop %v2154
        %v2156 = vmul.f32 %v2143, 1.442695
        %v2157 = vpow.pop %v2156
        %v2158 = vmul.f32 %v2144, 1.442695
        %v2159 = vpow.pop %v2158
        %v2160 = vmul.f32 %v2145, 1.442695
        %v2161 = vpow.pop %v2160
        %v2162 = vsel %vm1737, %v2147, 0.0
        %2163 = vadd.xlane.f32.xlu0 %v2162
        %v2164 = vpop.xlane.xlu0 %2163
        %v2165 = vsel %vm1737, %v2149, 0.0
        %2166 = vadd.xlane.f32.xlu0 %v2165
        %v2167 = vpop.xlane.xlu0 %2166
        %v2168 = vsel %vm1737, %v2151, 0.0
        %2169 = vadd.xlane.f32.xlu0 %v2168
        %v2170 = vpop.xlane.xlu0 %2169
        %v2171 = vsel %vm1737, %v2153, 0.0
        %2172 = vadd.xlane.f32.xlu0 %v2171
        %v2173 = vpop.xlane.xlu0 %2172
        %v2174 = vsel %vm1737, %v2155, 0.0
        %2175 = vadd.xlane.f32.xlu0 %v2174
        %v2176 = vpop.xlane.xlu0 %2175
        %v2177 = vsel %vm1737, %v2157, 0.0
        %2178 = vadd.xlane.f32.xlu0 %v2177
        %v2179 = vpop.xlane.xlu0 %2178
        %v2180 = vsel %vm1737, %v2159, 0.0
        %2181 = vadd.xlane.f32.xlu0 %v2180
        %v2182 = vpop.xlane.xlu0 %2181
        %v2183 = vsel %vm1737, %v2161, 0.0
        %2184 = vadd.xlane.f32.xlu0 %v2183
        %v2185 = vpop.xlane.xlu0 %2184
        %v2186 = vrcp.pop %v2164
        %v2187 = vrcp.pop %v2167
        %v2188 = vrcp.pop %v2170
        %v2189 = vrcp.pop %v2173
        %v2190 = vrcp.pop %v2176
        %v2191 = vrcp.pop %v2179
        %v2192 = vrcp.pop %v2182
        %v2193 = vrcp.pop %v2185
        %v2194 = vmul.f32 %v2147, %v2186
        %v2195 = vmul.f32 %v2149, %v2187
        %v2196 = vmul.f32 %v2151, %v2188
        %v2197 = vmul.f32 %v2153, %v2189
        %v2198 = vmul.f32 %v2155, %v2190
        %v2199 = vmul.f32 %v2157, %v2191
        %v2200 = vmul.f32 %v2159, %v2192
        %v2201 = vmul.f32 %v2161, %v2193
        %v2202 = vpack.c.bf16 %v2194, %v2194
        %v2203 = vpack.c.bf16 %v2195, %v2195
        %v2204 = vpack.c.bf16 %v2196, %v2196
        %v2205 = vpack.c.bf16 %v2197, %v2197
        %v2206 = vpack.c.bf16 %v2198, %v2198
        %v2207 = vpack.c.bf16 %v2199, %v2199
        %v2208 = vpack.c.bf16 %v2200, %v2200
        %v2209 = vpack.c.bf16 %v2201, %v2201
        %v2211 = vsel %vm1737, %v2202, 0
        %vm2213 = vcmask 1043456
        %v2215 = vsel %vm2213, %v1729, 0
        %2217 = vmatprep.subr.bf16.mxu0 0
        %2218 = vmatpush1.bf16.msra.mxu0 %v2215
        %2219 = vmatprep.subr.bf16.mxu0 0
        %2220 = vmatpush1.bf16.msra.mxu0 0
        %2221 = vmatprep.subr.bf16.mxu0 0
        %2222 = vmatpush1.bf16.msra.mxu0 0
        %2223 = vmatprep.subr.bf16.mxu0 0
        %2224 = vmatpush1.bf16.msra.mxu0 0
        %2225 = vmatprep.subr.bf16.mxu0 0
        %2226 = vmatpush1.bf16.msra.mxu0 0
        %2227 = vmatprep.subr.bf16.mxu0 0
        %2228 = vmatpush1.bf16.msra.mxu0 0
        %2229 = vmatprep.subr.bf16.mxu0 0
        %2230 = vmatpush1.bf16.msra.mxu0 0
        %2231 = vmatprep.subr.bf16.mxu0 0
        %2232 = vmatpush1.bf16.msra.mxu0 0
        %2233 = vmatprep.subr.bf16.mxu0 0
        %2234 = vmatpush1.bf16.msra.mxu0 0
        %2235 = vmatprep.subr.bf16.mxu0 0
        %2236 = vmatpush1.bf16.msra.mxu0 0
        %2237 = vmatprep.subr.bf16.mxu0 0
        %2238 = vmatpush1.bf16.msra.mxu0 0
        %2239 = vmatprep.subr.bf16.mxu0 0
        %2240 = vmatpush1.bf16.msra.mxu0 0
        %2241 = vmatprep.subr.bf16.mxu0 0
        %2242 = vmatpush1.bf16.msra.mxu0 0
        %2243 = vmatprep.subr.bf16.mxu0 0
        %2244 = vmatpush1.bf16.msra.mxu0 0
        %2245 = vmatprep.subr.bf16.mxu0 0
        %2246 = vmatpush1.bf16.msra.mxu0 0
        %2247 = vmatprep.subr.bf16.mxu0 0
        %2248 = vmatpush1.bf16.msra.mxu0 0
        %2249 = vmatprep.mubr.bf16.mxu0 0
        %2250 = vmatmul.mubr.bf16.gmra.mrb[0].mxu0 %v2211
        %v2251 = vpop.f32.mrb[0].mxu0
        %v2252 = vadd.f32 0.0, %v2251
        %v2253 = vpop.f32.mrb[0].mxu0
        %v2254 = vpop.f32.mrb[0].mxu0
        %v2255 = vpop.f32.mrb[0].mxu0
        %2256 = vdwg.mxu0
        %v2258 = vsel %vm1737, %v2203, 0
        %v2261 = vsel %vm2213, %v1730, 0
        %2263 = vmatprep.subr.bf16.mxu0 0
        %2264 = vmatpush1.bf16.msra.mxu0 %v2261
        %2265 = vmatprep.subr.bf16.mxu0 0
        %2266 = vmatpush1.bf16.msra.mxu0 0
        %2267 = vmatprep.subr.bf16.mxu0 0
        %2268 = vmatpush1.bf16.msra.mxu0 0
        %2269 = vmatprep.subr.bf16.mxu0 0
        %2270 = vmatpush1.bf16.msra.mxu0 0
        %2271 = vmatprep.subr.bf16.mxu0 0
        %2272 = vmatpush1.bf16.msra.mxu0 0
        %2273 = vmatprep.subr.bf16.mxu0 0
        %2274 = vmatpush1.bf16.msra.mxu0 0
        %2275 = vmatprep.subr.bf16.mxu0 0
        %2276 = vmatpush1.bf16.msra.mxu0 0
        %2277 = vmatprep.subr.bf16.mxu0 0
        %2278 = vmatpush1.bf16.msra.mxu0 0
        %2279 = vmatprep.subr.bf16.mxu0 0
        %2280 = vmatpush1.bf16.msra.mxu0 0
        %2281 = vmatprep.subr.bf16.mxu0 0
        %2282 = vmatpush1.bf16.msra.mxu0 0
        %2283 = vmatprep.subr.bf16.mxu0 0
        %2284 = vmatpush1.bf16.msra.mxu0 0
        %2285 = vmatprep.subr.bf16.mxu0 0
        %2286 = vmatpush1.bf16.msra.mxu0 0
        %2287 = vmatprep.subr.bf16.mxu0 0
        %2288 = vmatpush1.bf16.msra.mxu0 0
        %2289 = vmatprep.subr.bf16.mxu0 0
        %2290 = vmatpush1.bf16.msra.mxu0 0
        %2291 = vmatprep.subr.bf16.mxu0 0
        %2292 = vmatpush1.bf16.msra.mxu0 0
        %2293 = vmatprep.subr.bf16.mxu0 0
        %2294 = vmatpush1.bf16.msra.mxu0 0
        %2295 = vmatprep.mubr.bf16.mxu0 0
        %2296 = vmatmul.mubr.bf16.gmra.mrb[0].mxu0 %v2258
        %v2297 = vpop.f32.mrb[0].mxu0
        %v2298 = vadd.f32 0.0, %v2297
        %v2299 = vpop.f32.mrb[0].mxu0
        %v2300 = vpop.f32.mrb[0].mxu0
        %v2301 = vpop.f32.mrb[0].mxu0
        %2302 = vdwg.mxu0
        %v2304 = vsel %vm1737, %v2204, 0
        %v2307 = vsel %vm2213, %v1731, 0
        %2309 = vmatprep.subr.bf16.mxu0 0
        %2310 = vmatpush1.bf16.msra.mxu0 %v2307
        %2311 = vmatprep.subr.bf16.mxu0 0
        %2312 = vmatpush1.bf16.msra.mxu0 0
        %2313 = vmatprep.subr.bf16.mxu0 0
        %2314 = vmatpush1.bf16.msra.mxu0 0
        %2315 = vmatprep.subr.bf16.mxu0 0
        %2316 = vmatpush1.bf16.msra.mxu0 0
        %2317 = vmatprep.subr.bf16.mxu0 0
        %2318 = vmatpush1.bf16.msra.mxu0 0
        %2319 = vmatprep.subr.bf16.mxu0 0
        %2320 = vmatpush1.bf16.msra.mxu0 0
        %2321 = vmatprep.subr.bf16.mxu0 0
        %2322 = vmatpush1.bf16.msra.mxu0 0
        %2323 = vmatprep.subr.bf16.mxu0 0
        %2324 = vmatpush1.bf16.msra.mxu0 0
        %2325 = vmatprep.subr.bf16.mxu0 0
        %2326 = vmatpush1.bf16.msra.mxu0 0
        %2327 = vmatprep.subr.bf16.mxu0 0
        %2328 = vmatpush1.bf16.msra.mxu0 0
        %2329 = vmatprep.subr.bf16.mxu0 0
        %2330 = vmatpush1.bf16.msra.mxu0 0
        %2331 = vmatprep.subr.bf16.mxu0 0
        %2332 = vmatpush1.bf16.msra.mxu0 0
        %2333 = vmatprep.subr.bf16.mxu0 0
        %2334 = vmatpush1.bf16.msra.mxu0 0
        %2335 = vmatprep.subr.bf16.mxu0 0
        %2336 = vmatpush1.bf16.msra.mxu0 0
        %2337 = vmatprep.subr.bf16.mxu0 0
        %2338 = vmatpush1.bf16.msra.mxu0 0
        %2339 = vmatprep.subr.bf16.mxu0 0
        %2340 = vmatpush1.bf16.msra.mxu0 0
        %2341 = vmatprep.mubr.bf16.mxu0 0
        %2342 = vmatmul.mubr.bf16.gmra.mrb[0].mxu0 %v2304
        %v2343 = vpop.f32.mrb[0].mxu0
        %v2344 = vadd.f32 0.0, %v2343
        %v2345 = vpop.f32.mrb[0].mxu0
        %v2346 = vpop.f32.mrb[0].mxu0
        %v2347 = vpop.f32.mrb[0].mxu0
        %2348 = vdwg.mxu0
        %v2350 = vsel %vm1737, %v2205, 0
        %v2353 = vsel %vm2213, %v1732, 0
        %2355 = vmatprep.subr.bf16.mxu0 0
        %2356 = vmatpush1.bf16.msra.mxu0 %v2353
        %2357 = vmatprep.subr.bf16.mxu0 0
        %2358 = vmatpush1.bf16.msra.mxu0 0
        %2359 = vmatprep.subr.bf16.mxu0 0
        %2360 = vmatpush1.bf16.msra.mxu0 0
        %2361 = vmatprep.subr.bf16.mxu0 0
        %2362 = vmatpush1.bf16.msra.mxu0 0
        %2363 = vmatprep.subr.bf16.mxu0 0
        %2364 = vmatpush1.bf16.msra.mxu0 0
        %2365 = vmatprep.subr.bf16.mxu0 0
        %2366 = vmatpush1.bf16.msra.mxu0 0
        %2367 = vmatprep.subr.bf16.mxu0 0
        %2368 = vmatpush1.bf16.msra.mxu0 0
        %2369 = vmatprep.subr.bf16.mxu0 0
        %2370 = vmatpush1.bf16.msra.mxu0 0
        %2371 = vmatprep.subr.bf16.mxu0 0
        %2372 = vmatpush1.bf16.msra.mxu0 0
        %2373 = vmatprep.subr.bf16.mxu0 0
        %2374 = vmatpush1.bf16.msra.mxu0 0
        %2375 = vmatprep.subr.bf16.mxu0 0
        %2376 = vmatpush1.bf16.msra.mxu0 0
        %2377 = vmatprep.subr.bf16.mxu0 0
        %2378 = vmatpush1.bf16.msra.mxu0 0
        %2379 = vmatprep.subr.bf16.mxu0 0
        %2380 = vmatpush1.bf16.msra.mxu0 0
        %2381 = vmatprep.subr.bf16.mxu0 0
        %2382 = vmatpush1.bf16.msra.mxu0 0
        %2383 = vmatprep.subr.bf16.mxu0 0
        %2384 = vmatpush1.bf16.msra.mxu0 0
        %2385 = vmatprep.subr.bf16.mxu0 0
        %2386 = vmatpush1.bf16.msra.mxu0 0
        %2387 = vmatprep.mubr.bf16.mxu0 0
        %2388 = vmatmul.mubr.bf16.gmra.mrb[0].mxu0 %v2350
        %v2389 = vpop.f32.mrb[0].mxu0
        %v2390 = vadd.f32 0.0, %v2389
        %v2391 = vpop.f32.mrb[0].mxu0
        %v2392 = vpop.f32.mrb[0].mxu0
        %v2393 = vpop.f32.mrb[0].mxu0
        %2394 = vdwg.mxu0
        %v2396 = vsel %vm1737, %v2206, 0
        %v2399 = vsel %vm2213, %v1733, 0
        %2401 = vmatprep.subr.bf16.mxu0 0
        %2402 = vmatpush1.bf16.msra.mxu0 %v2399
        %2403 = vmatprep.subr.bf16.mxu0 0
        %2404 = vmatpush1.bf16.msra.mxu0 0
        %2405 = vmatprep.subr.bf16.mxu0 0
        %2406 = vmatpush1.bf16.msra.mxu0 0
        %2407 = vmatprep.subr.bf16.mxu0 0
        %2408 = vmatpush1.bf16.msra.mxu0 0
        %2409 = vmatprep.subr.bf16.mxu0 0
        %2410 = vmatpush1.bf16.msra.mxu0 0
        %2411 = vmatprep.subr.bf16.mxu0 0
        %2412 = vmatpush1.bf16.msra.mxu0 0
        %2413 = vmatprep.subr.bf16.mxu0 0
        %2414 = vmatpush1.bf16.msra.mxu0 0
        %2415 = vmatprep.subr.bf16.mxu0 0
        %2416 = vmatpush1.bf16.msra.mxu0 0
        %2417 = vmatprep.subr.bf16.mxu0 0
        %2418 = vmatpush1.bf16.msra.mxu0 0
        %2419 = vmatprep.subr.bf16.mxu0 0
        %2420 = vmatpush1.bf16.msra.mxu0 0
        %2421 = vmatprep.subr.bf16.mxu0 0
        %2422 = vmatpush1.bf16.msra.mxu0 0
        %2423 = vmatprep.subr.bf16.mxu0 0
        %2424 = vmatpush1.bf16.msra.mxu0 0
        %2425 = vmatprep.subr.bf16.mxu0 0
        %2426 = vmatpush1.bf16.msra.mxu0 0
        %2427 = vmatprep.subr.bf16.mxu0 0
        %2428 = vmatpush1.bf16.msra.mxu0 0
        %2429 = vmatprep.subr.bf16.mxu0 0
        %2430 = vmatpush1.bf16.msra.mxu0 0
        %2431 = vmatprep.subr.bf16.mxu0 0
        %2432 = vmatpush1.bf16.msra.mxu0 0
        %2433 = vmatprep.mubr.bf16.mxu0 0
        %2434 = vmatmul.mubr.bf16.gmra.mrb[0].mxu0 %v2396
        %v2435 = vpop.f32.mrb[0].mxu0
        %v2436 = vadd.f32 0.0, %v2435
        %v2437 = vpop.f32.mrb[0].mxu0
        %v2438 = vpop.f32.mrb[0].mxu0
        %v2439 = vpop.f32.mrb[0].mxu0
        %2440 = vdwg.mxu0
        %v2442 = vsel %vm1737, %v2207, 0
        %v2445 = vsel %vm2213, %v1734, 0
        %2447 = vmatprep.subr.bf16.mxu0 0
        %2448 = vmatpush1.bf16.msra.mxu0 %v2445
        %2449 = vmatprep.subr.bf16.mxu0 0
        %2450 = vmatpush1.bf16.msra.mxu0 0
        %2451 = vmatprep.subr.bf16.mxu0 0
        %2452 = vmatpush1.bf16.msra.mxu0 0
        %2453 = vmatprep.subr.bf16.mxu0 0
        %2454 = vmatpush1.bf16.msra.mxu0 0
        %2455 = vmatprep.subr.bf16.mxu0 0
        %2456 = vmatpush1.bf16.msra.mxu0 0
        %2457 = vmatprep.subr.bf16.mxu0 0
        %2458 = vmatpush1.bf16.msra.mxu0 0
        %2459 = vmatprep.subr.bf16.mxu0 0
        %2460 = vmatpush1.bf16.msra.mxu0 0
        %2461 = vmatprep.subr.bf16.mxu0 0
        %2462 = vmatpush1.bf16.msra.mxu0 0
        %2463 = vmatprep.subr.bf16.mxu0 0
        %2464 = vmatpush1.bf16.msra.mxu0 0
        %2465 = vmatprep.subr.bf16.mxu0 0
        %2466 = vmatpush1.bf16.msra.mxu0 0
        %2467 = vmatprep.subr.bf16.mxu0 0
        %2468 = vmatpush1.bf16.msra.mxu0 0
        %2469 = vmatprep.subr.bf16.mxu0 0
        %2470 = vmatpush1.bf16.msra.mxu0 0
        %2471 = vmatprep.subr.bf16.mxu0 0
        %2472 = vmatpush1.bf16.msra.mxu0 0
        %2473 = vmatprep.subr.bf16.mxu0 0
        %2474 = vmatpush1.bf16.msra.mxu0 0
        %2475 = vmatprep.subr.bf16.mxu0 0
        %2476 = vmatpush1.bf16.msra.mxu0 0
        %2477 = vmatprep.subr.bf16.mxu0 0
        %2478 = vmatpush1.bf16.msra.mxu0 0
        %2479 = vmatprep.mubr.bf16.mxu0 0
        %2480 = vmatmul.mubr.bf16.gmra.mrb[0].mxu0 %v2442
        %v2481 = vpop.f32.mrb[0].mxu0
        %v2482 = vadd.f32 0.0, %v2481
        %v2483 = vpop.f32.mrb[0].mxu0
        %v2484 = vpop.f32.mrb[0].mxu0
        %v2485 = vpop.f32.mrb[0].mxu0
        %2486 = vdwg.mxu0
        %v2488 = vsel %vm1737, %v2208, 0
        %v2491 = vsel %vm2213, %v1735, 0
        %2493 = vmatprep.subr.bf16.mxu0 0
        %2494 = vmatpush1.bf16.msra.mxu0 %v2491
        %2495 = vmatprep.subr.bf16.mxu0 0
        %2496 = vmatpush1.bf16.msra.mxu0 0
        %2497 = vmatprep.subr.bf16.mxu0 0
        %2498 = vmatpush1.bf16.msra.mxu0 0
        %2499 = vmatprep.subr.bf16.mxu0 0
        %2500 = vmatpush1.bf16.msra.mxu0 0
        %2501 = vmatprep.subr.bf16.mxu0 0
        %2502 = vmatpush1.bf16.msra.mxu0 0
        %2503 = vmatprep.subr.bf16.mxu0 0
        %2504 = vmatpush1.bf16.msra.mxu0 0
        %2505 = vmatprep.subr.bf16.mxu0 0
        %2506 = vmatpush1.bf16.msra.mxu0 0
        %2507 = vmatprep.subr.bf16.mxu0 0
        %2508 = vmatpush1.bf16.msra.mxu0 0
        %2509 = vmatprep.subr.bf16.mxu0 0
        %2510 = vmatpush1.bf16.msra.mxu0 0
        %2511 = vmatprep.subr.bf16.mxu0 0
        %2512 = vmatpush1.bf16.msra.mxu0 0
        %2513 = vmatprep.subr.bf16.mxu0 0
        %2514 = vmatpush1.bf16.msra.mxu0 0
        %2515 = vmatprep.subr.bf16.mxu0 0
        %2516 = vmatpush1.bf16.msra.mxu0 0
        %2517 = vmatprep.subr.bf16.mxu0 0
        %2518 = vmatpush1.bf16.msra.mxu0 0
        %2519 = vmatprep.subr.bf16.mxu0 0
        %2520 = vmatpush1.bf16.msra.mxu0 0
        %2521 = vmatprep.subr.bf16.mxu0 0
        %2522 = vmatpush1.bf16.msra.mxu0 0
        %2523 = vmatprep.subr.bf16.mxu0 0
        %2524 = vmatpush1.bf16.msra.mxu0 0
        %2525 = vmatprep.mubr.bf16.mxu0 0
        %2526 = vmatmul.mubr.bf16.gmra.mrb[0].mxu0 %v2488
        %v2527 = vpop.f32.mrb[0].mxu0
        %v2528 = vadd.f32 0.0, %v2527
        %v2529 = vpop.f32.mrb[0].mxu0
        %v2530 = vpop.f32.mrb[0].mxu0
        %v2531 = vpop.f32.mrb[0].mxu0
        %2532 = vdwg.mxu0
        %v2534 = vsel %vm1737, %v2209, 0
        %v2537 = vsel %vm2213, %v1736, 0
        %2539 = vmatprep.subr.bf16.mxu0 0
        %2540 = vmatpush1.bf16.msra.mxu0 %v2537
        %2541 = vmatprep.subr.bf16.mxu0 0
        %2542 = vmatpush1.bf16.msra.mxu0 0
        %2543 = vmatprep.subr.bf16.mxu0 0
        %2544 = vmatpush1.bf16.msra.mxu0 0
        %2545 = vmatprep.subr.bf16.mxu0 0
        %2546 = vmatpush1.bf16.msra.mxu0 0
        %2547 = vmatprep.subr.bf16.mxu0 0
        %2548 = vmatpush1.bf16.msra.mxu0 0
        %2549 = vmatprep.subr.bf16.mxu0 0
        %2550 = vmatpush1.bf16.msra.mxu0 0
        %2551 = vmatprep.subr.bf16.mxu0 0
        %2552 = vmatpush1.bf16.msra.mxu0 0
        %2553 = vmatprep.subr.bf16.mxu0 0
        %2554 = vmatpush1.bf16.msra.mxu0 0
        %2555 = vmatprep.subr.bf16.mxu0 0
        %2556 = vmatpush1.bf16.msra.mxu0 0
        %2557 = vmatprep.subr.bf16.mxu0 0
        %2558 = vmatpush1.bf16.msra.mxu0 0
        %2559 = vmatprep.subr.bf16.mxu0 0
        %2560 = vmatpush1.bf16.msra.mxu0 0
        %2561 = vmatprep.subr.bf16.mxu0 0
        %2562 = vmatpush1.bf16.msra.mxu0 0
        %2563 = vmatprep.subr.bf16.mxu0 0
        %2564 = vmatpush1.bf16.msra.mxu0 0
        %2565 = vmatprep.subr.bf16.mxu0 0
        %2566 = vmatpush1.bf16.msra.mxu0 0
        %2567 = vmatprep.subr.bf16.mxu0 0
        %2568 = vmatpush1.bf16.msra.mxu0 0
        %2569 = vmatprep.subr.bf16.mxu0 0
        %2570 = vmatpush1.bf16.msra.mxu0 0
        %2571 = vmatprep.mubr.bf16.mxu0 0
        %2572 = vmatmul.mubr.bf16.gmra.mrb[0].mxu0 %v2534
        %v2573 = vpop.f32.mrb[0].mxu0
        %v2574 = vadd.f32 0.0, %v2573
        %v2575 = vpop.f32.mrb[0].mxu0
        %v2576 = vpop.f32.mrb[0].mxu0
        %v2577 = vpop.f32.mrb[0].mxu0
        %2578 = vdwg.mxu0
        %v2579 = vcombine.low %v2252, %v2344
        %v2580 = vcombine.high %v2252, %v2344
        %v2582 = vunpack.c.l.s4 1983009808
        %v2583 = vunpack.c.0.s8 %v2582
        %v2584 = vlaneseq
        %v2585 = vshrl.u32 %v2584, 7
        %v2586 = vsub.s32 %v2583, %v2585
        %v2587 = vrot.slane %v2579, %v2586
        %v2589 = vunpack.c.l.s4 1983009808
        %v2590 = vunpack.c.0.s8 %v2589
        %v2591 = vlaneseq
        %v2592 = vshrl.u32 %v2591, 7
        %v2593 = vsub.s32 %v2590, %v2592
        %v2594 = vrot.slane %v2580, %v2593
        %v2595 = vcombine.low %v2298, %v2390
        %v2596 = vcombine.high %v2298, %v2390
        %v2598 = vunpack.c.l.s4 1983009808
        %v2599 = vunpack.c.0.s8 %v2598
        %v2600 = vlaneseq
        %v2601 = vshrl.u32 %v2600, 7
        %v2602 = vsub.s32 %v2599, %v2601
        %v2603 = vrot.slane %v2595, %v2602
        %v2605 = vunpack.c.l.s4 1983009808
        %v2606 = vunpack.c.0.s8 %v2605
        %v2607 = vlaneseq
        %v2608 = vshrl.u32 %v2607, 7
        %v2609 = vsub.s32 %v2606, %v2608
        %v2610 = vrot.slane %v2596, %v2609
        %v2611 = vcombine.low %v2587, %v2603
        %v2612 = vcombine.high %v2587, %v2603
        %v2614 = vunpack.c.l.s4 1934713408
        %v2615 = vunpack.c.0.s8 %v2614
        %v2616 = vlaneseq
        %v2617 = vshrl.u32 %v2616, 7
        %v2618 = vsub.s32 %v2615, %v2617
        %v2619 = vrot.slane %v2611, %v2618
        %v2621 = vunpack.c.l.s4 1934713408
        %v2622 = vunpack.c.0.s8 %v2621
        %v2623 = vlaneseq
        %v2624 = vshrl.u32 %v2623, 7
        %v2625 = vsub.s32 %v2622, %v2624
        %v2626 = vrot.slane %v2612, %v2625
        %v2627 = vcombine.low %v2594, %v2610
        %v2628 = vcombine.high %v2594, %v2610
        %v2630 = vunpack.c.l.s4 1934713408
        %v2631 = vunpack.c.0.s8 %v2630
        %v2632 = vlaneseq
        %v2633 = vshrl.u32 %v2632, 7
        %v2634 = vsub.s32 %v2631, %v2633
        %v2635 = vrot.slane %v2627, %v2634
        %v2637 = vunpack.c.l.s4 1934713408
        %v2638 = vunpack.c.0.s8 %v2637
        %v2639 = vlaneseq
        %v2640 = vshrl.u32 %v2639, 7
        %v2641 = vsub.s32 %v2638, %v2640
        %v2642 = vrot.slane %v2628, %v2641
        %v2643 = vcombine.high %v2619, 0.0
        %v2644 = vcombine.high %v2626, 0.0
        %v2645 = vcombine.high %v2635, 0.0
        %v2646 = vcombine.high %v2642, 0.0
        %v2647 = vcombine.low %v2436, %v2528
        %v2648 = vcombine.high %v2436, %v2528
        %v2650 = vunpack.c.l.s4 1983009808
        %v2651 = vunpack.c.0.s8 %v2650
        %v2652 = vlaneseq
        %v2653 = vshrl.u32 %v2652, 7
        %v2654 = vsub.s32 %v2651, %v2653
        %v2655 = vrot.slane %v2647, %v2654
        %v2657 = vunpack.c.l.s4 1983009808
        %v2658 = vunpack.c.0.s8 %v2657
        %v2659 = vlaneseq
        %v2660 = vshrl.u32 %v2659, 7
        %v2661 = vsub.s32 %v2658, %v2660
        %v2662 = vrot.slane %v2648, %v2661
        %v2663 = vcombine.low %v2482, %v2574
        %v2664 = vcombine.high %v2482, %v2574
        %v2666 = vunpack.c.l.s4 1983009808
        %v2667 = vunpack.c.0.s8 %v2666
        %v2668 = vlaneseq
        %v2669 = vshrl.u32 %v2668, 7
        %v2670 = vsub.s32 %v2667, %v2669
        %v2671 = vrot.slane %v2663, %v2670
        %v2673 = vunpack.c.l.s4 1983009808
        %v2674 = vunpack.c.0.s8 %v2673
        %v2675 = vlaneseq
        %v2676 = vshrl.u32 %v2675, 7
        %v2677 = vsub.s32 %v2674, %v2676
        %v2678 = vrot.slane %v2664, %v2677
        %v2679 = vcombine.low %v2655, %v2671
        %v2680 = vcombine.high %v2655, %v2671
        %v2682 = vunpack.c.l.s4 1934713408
        %v2683 = vunpack.c.0.s8 %v2682
        %v2684 = vlaneseq
        %v2685 = vshrl.u32 %v2684, 7
        %v2686 = vsub.s32 %v2683, %v2685
        %v2687 = vrot.slane %v2679, %v2686
        %v2689 = vunpack.c.l.s4 1934713408
        %v2690 = vunpack.c.0.s8 %v2689
        %v2691 = vlaneseq
        %v2692 = vshrl.u32 %v2691, 7
        %v2693 = vsub.s32 %v2690, %v2692
        %v2694 = vrot.slane %v2680, %v2693
        %v2695 = vcombine.low %v2662, %v2678
        %v2696 = vcombine.high %v2662, %v2678
        %v2698 = vunpack.c.l.s4 1934713408
        %v2699 = vunpack.c.0.s8 %v2698
        %v2700 = vlaneseq
        %v2701 = vshrl.u32 %v2700, 7
        %v2702 = vsub.s32 %v2699, %v2701
        %v2703 = vrot.slane %v2695, %v2702
        %v2705 = vunpack.c.l.s4 1934713408
        %v2706 = vunpack.c.0.s8 %v2705
        %v2707 = vlaneseq
        %v2708 = vshrl.u32 %v2707, 7
        %v2709 = vsub.s32 %v2706, %v2708
        %v2710 = vrot.slane %v2696, %v2709
        %v2711 = vcombine.high %v2687, 0.0
        %v2712 = vcombine.high %v2694, 0.0
        %v2713 = vcombine.high %v2703, 0.0
        %v2714 = vcombine.high %v2710, 0.0
        %v2715 = vcombine.low %v2619, %v2626
        %v2717 = vunpack.c.l.s4 1983009808
        %v2718 = vunpack.c.0.s8 %v2717
        %v2719 = vlaneseq
        %v2720 = vshrl.u32 %v2719, 7
        %v2721 = vsub.s32 %v2718, %v2720
        %v2722 = vrot.slane %v2715, %v2721
        %v2723 = vcombine.low %v2643, %v2644
        %v2725 = vunpack.c.l.s4 1983009808
        %v2726 = vunpack.c.0.s8 %v2725
        %v2727 = vlaneseq
        %v2728 = vshrl.u32 %v2727, 7
        %v2729 = vsub.s32 %v2726, %v2728
        %v2730 = vrot.slane %v2723, %v2729
        %v2731 = vcombine.low %v2635, %v2642
        %v2733 = vunpack.c.l.s4 1983009808
        %v2734 = vunpack.c.0.s8 %v2733
        %v2735 = vlaneseq
        %v2736 = vshrl.u32 %v2735, 7
        %v2737 = vsub.s32 %v2734, %v2736
        %v2738 = vrot.slane %v2731, %v2737
        %v2739 = vcombine.low %v2645, %v2646
        %v2741 = vunpack.c.l.s4 1983009808
        %v2742 = vunpack.c.0.s8 %v2741
        %v2743 = vlaneseq
        %v2744 = vshrl.u32 %v2743, 7
        %v2745 = vsub.s32 %v2742, %v2744
        %v2746 = vrot.slane %v2739, %v2745
        %v2747 = vcombine.low %v2722, %v2730
        %v2748 = vcombine.high %v2722, %v2730
        %v2750 = vunpack.c.l.s4 1934713408
        %v2751 = vunpack.c.0.s8 %v2750
        %v2752 = vlaneseq
        %v2753 = vshrl.u32 %v2752, 7
        %v2754 = vsub.s32 %v2751, %v2753
        %v2755 = vrot.slane %v2747, %v2754
        %v2757 = vunpack.c.l.s4 1934713408
        %v2758 = vunpack.c.0.s8 %v2757
        %v2759 = vlaneseq
        %v2760 = vshrl.u32 %v2759, 7
        %v2761 = vsub.s32 %v2758, %v2760
        %v2762 = vrot.slane %v2748, %v2761
        %v2763 = vcombine.low %v2738, %v2746
        %v2764 = vcombine.high %v2738, %v2746
        %v2766 = vunpack.c.l.s4 1934713408
        %v2767 = vunpack.c.0.s8 %v2766
        %v2768 = vlaneseq
        %v2769 = vshrl.u32 %v2768, 7
        %v2770 = vsub.s32 %v2767, %v2769
        %v2771 = vrot.slane %v2763, %v2770
        %v2773 = vunpack.c.l.s4 1934713408
        %v2774 = vunpack.c.0.s8 %v2773
        %v2775 = vlaneseq
        %v2776 = vshrl.u32 %v2775, 7
        %v2777 = vsub.s32 %v2774, %v2776
        %v2778 = vrot.slane %v2764, %v2777
        %v2779 = vcombine.low %v2755, %v2771
        %v2780 = vcombine.high %v2755, %v2771
        %v2781 = vcombine.low %v2762, %v2778
        %v2782 = vcombine.high %v2762, %v2778
        %v2783 = vcombine.low %v2687, %v2694
        %v2785 = vunpack.c.l.s4 1983009808
        %v2786 = vunpack.c.0.s8 %v2785
        %v2787 = vlaneseq
        %v2788 = vshrl.u32 %v2787, 7
        %v2789 = vsub.s32 %v2786, %v2788
        %v2790 = vrot.slane %v2783, %v2789
        %v2791 = vcombine.low %v2711, %v2712
        %v2793 = vunpack.c.l.s4 1983009808
        %v2794 = vunpack.c.0.s8 %v2793
        %v2795 = vlaneseq
        %v2796 = vshrl.u32 %v2795, 7
        %v2797 = vsub.s32 %v2794, %v2796
        %v2798 = vrot.slane %v2791, %v2797
        %v2799 = vcombine.low %v2703, %v2710
        %v2801 = vunpack.c.l.s4 1983009808
        %v2802 = vunpack.c.0.s8 %v2801
        %v2803 = vlaneseq
        %v2804 = vshrl.u32 %v2803, 7
        %v2805 = vsub.s32 %v2802, %v2804
        %v2806 = vrot.slane %v2799, %v2805
        %v2807 = vcombine.low %v2713, %v2714
        %v2809 = vunpack.c.l.s4 1983009808
        %v2810 = vunpack.c.0.s8 %v2809
        %v2811 = vlaneseq
        %v2812 = vshrl.u32 %v2811, 7
        %v2813 = vsub.s32 %v2810, %v2812
        %v2814 = vrot.slane %v2807, %v2813
        %v2815 = vcombine.low %v2790, %v2798
        %v2816 = vcombine.high %v2790, %v2798
        %v2818 = vunpack.c.l.s4 1934713408
        %v2819 = vunpack.c.0.s8 %v2818
        %v2820 = vlaneseq
        %v2821 = vshrl.u32 %v2820, 7
        %v2822 = vsub.s32 %v2819, %v2821
        %v2823 = vrot.slane %v2815, %v2822
        %v2825 = vunpack.c.l.s4 1934713408
        %v2826 = vunpack.c.0.s8 %v2825
        %v2827 = vlaneseq
        %v2828 = vshrl.u32 %v2827, 7
        %v2829 = vsub.s32 %v2826, %v2828
        %v2830 = vrot.slane %v2816, %v2829
        %v2831 = vcombine.low %v2806, %v2814
        %v2832 = vcombine.high %v2806, %v2814
        %v2834 = vunpack.c.l.s4 1934713408
        %v2835 = vunpack.c.0.s8 %v2834
        %v2836 = vlaneseq
        %v2837 = vshrl.u32 %v2836, 7
        %v2838 = vsub.s32 %v2835, %v2837
        %v2839 = vrot.slane %v2831, %v2838
        %v2841 = vunpack.c.l.s4 1934713408
        %v2842 = vunpack.c.0.s8 %v2841
        %v2843 = vlaneseq
        %v2844 = vshrl.u32 %v2843, 7
        %v2845 = vsub.s32 %v2842, %v2844
        %v2846 = vrot.slane %v2832, %v2845
        %v2847 = vcombine.low %v2823, %v2839
        %v2848 = vcombine.high %v2823, %v2839
        %v2849 = vcombine.low %v2830, %v2846
        %v2850 = vcombine.high %v2830, %v2846
        %2853 = vrot.lane.b32.xlu0 %v2780, 8
        %v2854 = vpop.permute.xlu0 %2853
        %2855 = vrot.lane.b32.xlu0 %v2848, 8
        %v2856 = vpop.permute.xlu0 %2855
        %2861 = vrot.lane.b32.xlu0 %v2781, 16
        %v2862 = vpop.permute.xlu0 %2861
        %2863 = vrot.lane.b32.xlu0 %v2849, 16
        %v2864 = vpop.permute.xlu0 %2863
        %2869 = vrot.lane.b32.xlu0 %v2782, 24
        %v2870 = vpop.permute.xlu0 %2869
        %2871 = vrot.lane.b32.xlu0 %v2850, 24
        %v2872 = vpop.permute.xlu0 %2871
        %v2875 = vsel %vm1737, %v2779, %v2854
        %v2876 = vsel %vm1737, %v2847, %v2856
        %vm2877 = vcmask 130048
        %v2878 = vsel %vm2877, %v2875, %v2862
        %v2879 = vsel %vm2877, %v2876, %v2864
        %vm2880 = vcmask 195584
        %v2881 = vsel %vm2880, %v2878, %v2870
        %v2882 = vsel %vm2880, %v2879, %v2872
        %v2883 = vpack.c.bf16 %v2882, %v2881
        %v2884 = vld [vmem:[%s584] sm:$0xf]
        %v2885 = vld [vmem:[%s584 + $0x4] sm:$0xf]
        %v2886 = vld [vmem:[%s584 + $0x8] sm:$0xf]
        %v2887 = vld [vmem:[%s584 + $0xc] sm:$0xf]
        %v2888 = vld [vmem:[%s592] sm:$0x1]
        %v2890 = vlaneseq
        %v2891 = vshrl.u32 %v2890, 7
        %v2892 = vsub.s32 0, %v2891
        %v2893 = vrot.slane %v2888, %v2892
        %v2899 = vunpack.c.l.b16 %v2884
        %v2900 = vunpack.c.l.b16 %v2885
        %v2901 = vunpack.c.l.b16 %v2886
        %v2902 = vunpack.c.l.b16 %v2887
        %v2903 = vpack.c.b16 %v2900, %v2899
        %v2904 = vpack.c.b16 %v2902, %v2901
        %v2908 = vsel %vm711, %v2883, 0
        %2910 = vmatprep.subr.bf16.mxu0 0
        %2911 = vmatpush1.bf16.msra.mxu0 %v2903
        %2912 = vmatprep.subr.bf16.mxu0 0
        %2913 = vmatpush1.bf16.msra.mxu0 %v2904
        %2914 = vmatprep.subr.bf16.mxu0 0
        %2915 = vmatpush1.bf16.msra.mxu0 0
        %2916 = vmatprep.subr.bf16.mxu0 0
        %2917 = vmatpush1.bf16.msra.mxu0 0
        %2918 = vmatprep.subr.bf16.mxu0 0
        %2919 = vmatpush1.bf16.msra.mxu0 0
        %2920 = vmatprep.subr.bf16.mxu0 0
        %2921 = vmatpush1.bf16.msra.mxu0 0
        %2922 = vmatprep.subr.bf16.mxu0 0
        %2923 = vmatpush1.bf16.msra.mxu0 0
        %2924 = vmatprep.subr.bf16.mxu0 0
        %2925 = vmatpush1.bf16.msra.mxu0 0
        %2926 = vmatprep.subr.bf16.mxu0 0
        %2927 = vmatpush1.bf16.msra.mxu0 0
        %2928 = vmatprep.subr.bf16.mxu0 0
        %2929 = vmatpush1.bf16.msra.mxu0 0
        %2930 = vmatprep.subr.bf16.mxu0 0
        %2931 = vmatpush1.bf16.msra.mxu0 0
        %2932 = vmatprep.subr.bf16.mxu0 0
        %2933 = vmatpush1.bf16.msra.mxu0 0
        %2934 = vmatprep.subr.bf16.mxu0 0
        %2935 = vmatpush1.bf16.msra.mxu0 0
        %2936 = vmatprep.subr.bf16.mxu0 0
        %2937 = vmatpush1.bf16.msra.mxu0 0
        %2938 = vmatprep.subr.bf16.mxu0 0
        %2939 = vmatpush1.bf16.msra.mxu0 0
        %2940 = vmatprep.subr.bf16.mxu0 0
        %2941 = vmatpush1.bf16.msra.mxu0 0
        %2942 = vmatprep.mubr.bf16.mxu0 0
        %2943 = vmatmul.mubr.bf16.gmra.mrb[0].mxu0 %v2908
        %v2944 = vpop.f32.mrb[0].mxu0
        %v2945 = vadd.f32 %v2893, %v2944
        %v2946 = vpop.f32.mrb[0].mxu0
        %v2947 = vpop.f32.mrb[0].mxu0
        %v2948 = vadd.f32 %v2893, %v2947
        %v2949 = vpop.f32.mrb[0].mxu0
        %2950 = vdwg.mxu0
        %v2951 = vlaneseq
        %v2952 = vshrl.u32 %v2951, 7
        %v2953 = vsub.s32 2, %v2952
        %v2954 = vrot.slane %v709, %v2953
        %v2955 = vlaneseq
        %v2956 = vshrl.u32 %v2955, 7
        %v2957 = vsub.s32 2, %v2956
        %v2958 = vrot.slane %v710, %v2957
        %v2959 = vmul.f32 %v2954, %v2945
        %v2960 = vmul.f32 %v2958, %v2948
        %v2961 = vadd.f32 %v707, %v2959
        %v2962 = vadd.f32 %v708, %v2960
        %v2963 = vsel %vm711, %v2961, 0.0
        %2964 = vadd.xlane.f32.xlu0 %v2963
        %v2965 = vpop.xlane.xlu0 %2964
        %v2966 = vsel %vm711, %v2962, 0.0
        %2967 = vadd.xlane.f32.xlu0 %v2966
        %v2968 = vpop.xlane.xlu0 %2967
        %v2969 = vmul.f32 %v2965, %v718
        %v2970 = vmul.f32 %v2968, %v718
        %v2971 = vsub.f32 %v2961, %v2969
        %v2972 = vsub.f32 %v2962, %v2970
        %v2973 = vmul.f32 %v2971, %v2971
        %v2974 = vmul.f32 %v2972, %v2972
        %v2975 = vsel %vm711, %v2973, 0.0
        %2976 = vadd.xlane.f32.xlu0 %v2975
        %v2977 = vpop.xlane.xlu0 %2976
        %v2978 = vsel %vm711, %v2974, 0.0
        %2979 = vadd.xlane.f32.xlu0 %v2978
        %v2980 = vpop.xlane.xlu0 %2979
        %v2981 = vmul.f32 %v2977, %v718
        %v2982 = vmul.f32 %v2980, %v718
        %v2983 = vadd.f32 %v2981, 1e-05
        %v2984 = vadd.f32 %v2982, 1e-05
        %v2985 = vrsqrt.pop %v2983
        %v2986 = vrsqrt.pop %v2984
        %v2987 = vmul.f32 %v2971, %v2985
        %v2988 = vmul.f32 %v2972, %v2986
        %v2989 = vlaneseq
        %v2990 = vshrl.u32 %v2989, 7
        %v2991 = vsub.s32 4, %v2990
        %v2992 = vrot.slane %v739, %v2991
        %v2993 = vlaneseq
        %v2994 = vshrl.u32 %v2993, 7
        %v2995 = vsub.s32 4, %v2994
        %v2996 = vrot.slane %v740, %v2995
        %v2997 = vmul.f32 %v2987, %v2992
        %v2998 = vmul.f32 %v2988, %v2996
        %v2999 = vlaneseq
        %v3000 = vshrl.u32 %v2999, 7
        %v3001 = vsub.s32 3, %v3000
        %v3002 = vrot.slane %v709, %v3001
        %v3003 = vlaneseq
        %v3004 = vshrl.u32 %v3003, 7
        %v3005 = vsub.s32 3, %v3004
        %v3006 = vrot.slane %v710, %v3005
        %v3007 = vadd.f32 %v2997, %v3002
        %v3008 = vadd.f32 %v2998, %v3006
        %v3009 = vpack.c.bf16 %v3008, %v3007
        %v3010 = vld [vmem:[%s601] sm:$0xf]
        %v3011 = vld [vmem:[%s601 + $0x4] sm:$0xf]
        %v3012 = vld [vmem:[%s601 + $0x8] sm:$0xf]
        %v3013 = vld [vmem:[%s601 + $0xc] sm:$0xf]
        %v3014 = vld [vmem:[%s609] sm:$0x1]
        %v3016 = vlaneseq
        %v3017 = vshrl.u32 %v3016, 7
        %v3018 = vsub.s32 0, %v3017
        %v3019 = vrot.slane %v3014, %v3018
        %v3025 = vunpack.c.l.b16 %v3010
        %v3026 = vunpack.c.l.b16 %v3011
        %v3027 = vunpack.c.l.b16 %v3012
        %v3028 = vunpack.c.l.b16 %v3013
        %v3029 = vpack.c.b16 %v3026, %v3025
        %v3030 = vpack.c.b16 %v3028, %v3027
        %v3034 = vsel %vm711, %v3009, 0
        %3036 = vmatprep.subr.bf16.mxu0 0
        %3037 = vmatpush1.bf16.msra.mxu0 %v3029
        %3038 = vmatprep.subr.bf16.mxu0 0
        %3039 = vmatpush1.bf16.msra.mxu0 %v3030
        %3040 = vmatprep.subr.bf16.mxu0 0
        %3041 = vmatpush1.bf16.msra.mxu0 0
        %3042 = vmatprep.subr.bf16.mxu0 0
        %3043 = vmatpush1.bf16.msra.mxu0 0
        %3044 = vmatprep.subr.bf16.mxu0 0
        %3045 = vmatpush1.bf16.msra.mxu0 0
        %3046 = vmatprep.subr.bf16.mxu0 0
        %3047 = vmatpush1.bf16.msra.mxu0 0
        %3048 = vmatprep.subr.bf16.mxu0 0
        %3049 = vmatpush1.bf16.msra.mxu0 0
        %3050 = vmatprep.subr.bf16.mxu0 0
        %3051 = vmatpush1.bf16.msra.mxu0 0
        %3052 = vmatprep.subr.bf16.mxu0 0
        %3053 = vmatpush1.bf16.msra.mxu0 0
        %3054 = vmatprep.subr.bf16.mxu0 0
        %3055 = vmatpush1.bf16.msra.mxu0 0
        %3056 = vmatprep.subr.bf16.mxu0 0
        %3057 = vmatpush1.bf16.msra.mxu0 0
        %3058 = vmatprep.subr.bf16.mxu0 0
        %3059 = vmatpush1.bf16.msra.mxu0 0
        %3060 = vmatprep.subr.bf16.mxu0 0
        %3061 = vmatpush1.bf16.msra.mxu0 0
        %3062 = vmatprep.subr.bf16.mxu0 0
        %3063 = vmatpush1.bf16.msra.mxu0 0
        %3064 = vmatprep.subr.bf16.mxu0 0
        %3065 = vmatpush1.bf16.msra.mxu0 0
        %3066 = vmatprep.subr.bf16.mxu0 0
        %3067 = vmatpush1.bf16.msra.mxu0 0
        %3068 = vmatprep.mubr.bf16.mxu0 0
        %3069 = vmatmul.mubr.bf16.gmra.mrb[0].mxu0 %v3034
        %v3070 = vpop.f32.mrb[0].mxu0
        %v3071 = vadd.f32 %v3019, %v3070
        %v3072 = vpop.f32.mrb[0].mxu0
        %v3073 = vpop.f32.mrb[0].mxu0
        %v3074 = vadd.f32 %v3019, %v3073
        %v3075 = vpop.f32.mrb[0].mxu0
        %3076 = vdwg.mxu0
        %v3077 = vmul.f32 %v3071, %v3071
        %v3078 = vmul.f32 %v3074, %v3074
        %v3079 = vmul.f32 %v3071, %v3077
        %v3080 = vmul.f32 %v3074, %v3078
        %v3081 = vmul.f32 %v3079, 0.044715
        %v3082 = vmul.f32 %v3080, 0.044715
        %v3083 = vadd.f32 %v3071, %v3081
        %v3084 = vadd.f32 %v3074, %v3082
        %v3085 = vmul.f32 %v3083, 0.7978846
        %v3086 = vmul.f32 %v3084, 0.7978846
        %v3087 = vtanh.pop %v3085
        %v3088 = vtanh.pop %v3086
        %v3089 = vadd.f32 %v3087, 1.0
        %v3090 = vadd.f32 %v3088, 1.0
        %v3091 = vmul.f32 %v3089, 0.5
        %v3092 = vmul.f32 %v3090, 0.5
        %v3093 = vmul.f32 %v3071, %v3091
        %v3094 = vmul.f32 %v3074, %v3092
        %v3095 = vpack.c.bf16 %v3094, %v3093
        %v3096 = vld [vmem:[%s618] sm:$0xf]
        %v3097 = vld [vmem:[%s618 + $0x4] sm:$0xf]
        %v3098 = vld [vmem:[%s618 + $0x8] sm:$0xf]
        %v3099 = vld [vmem:[%s618 + $0xc] sm:$0xf]
        %v3100 = vld [vmem:[%s618 + $0x10] sm:$0xf]
        %v3101 = vld [vmem:[%s618 + $0x14] sm:$0xf]
        %v3102 = vld [vmem:[%s618 + $0x18] sm:$0xf]
        %v3103 = vld [vmem:[%s618 + $0x1c] sm:$0xf]
        %v3104 = vld [vmem:[%s618 + $0x20] sm:$0xf]
        %v3105 = vld [vmem:[%s618 + $0x24] sm:$0xf]
        %v3106 = vld [vmem:[%s618 + $0x28] sm:$0xf]
        %v3107 = vld [vmem:[%s618 + $0x2c] sm:$0xf]
        %v3108 = vld [vmem:[%s618 + $0x30] sm:$0xf]
        %v3109 = vld [vmem:[%s618 + $0x34] sm:$0xf]
        %v3110 = vld [vmem:[%s618 + $0x38] sm:$0xf]
        %v3111 = vld [vmem:[%s618 + $0x3c] sm:$0xf]
        %v3112 = vld [vmem:[%s626] sm:$0x1]
        %v3114 = vlaneseq
        %v3115 = vshrl.u32 %v3114, 7
        %v3116 = vsub.s32 0, %v3115
        %v3117 = vrot.slane %v3112, %v3116
        %v3135 = vunpack.c.l.b16 %v3096
        %v3136 = vunpack.c.l.b16 %v3097
        %v3137 = vunpack.c.l.b16 %v3098
        %v3138 = vunpack.c.l.b16 %v3099
        %v3139 = vunpack.c.l.b16 %v3100
        %v3140 = vunpack.c.l.b16 %v3101
        %v3141 = vunpack.c.l.b16 %v3102
        %v3142 = vunpack.c.l.b16 %v3103
        %v3143 = vunpack.c.l.b16 %v3104
        %v3144 = vunpack.c.l.b16 %v3105
        %v3145 = vunpack.c.l.b16 %v3106
        %v3146 = vunpack.c.l.b16 %v3107
        %v3147 = vunpack.c.l.b16 %v3108
        %v3148 = vunpack.c.l.b16 %v3109
        %v3149 = vunpack.c.l.b16 %v3110
        %v3150 = vunpack.c.l.b16 %v3111
        %v3151 = vpack.c.b16 %v3136, %v3135
        %v3152 = vpack.c.b16 %v3138, %v3137
        %v3153 = vpack.c.b16 %v3140, %v3139
        %v3154 = vpack.c.b16 %v3142, %v3141
        %v3155 = vpack.c.b16 %v3144, %v3143
        %v3156 = vpack.c.b16 %v3146, %v3145
        %v3157 = vpack.c.b16 %v3148, %v3147
        %v3158 = vpack.c.b16 %v3150, %v3149
        %3167 = vmatprep.subr.bf16.mxu0 0
        %3168 = vmatpush1.bf16.msra.mxu0 %v3151
        %3169 = vmatprep.subr.bf16.mxu0 0
        %3170 = vmatpush1.bf16.msra.mxu0 %v3152
        %3171 = vmatprep.subr.bf16.mxu0 0
        %3172 = vmatpush1.bf16.msra.mxu0 %v3153
        %3173 = vmatprep.subr.bf16.mxu0 0
        %3174 = vmatpush1.bf16.msra.mxu0 %v3154
        %3175 = vmatprep.subr.bf16.mxu0 0
        %3176 = vmatpush1.bf16.msra.mxu0 %v3155
        %3177 = vmatprep.subr.bf16.mxu0 0
        %3178 = vmatpush1.bf16.msra.mxu0 %v3156
        %3179 = vmatprep.subr.bf16.mxu0 0
        %3180 = vmatpush1.bf16.msra.mxu0 %v3157
        %3181 = vmatprep.subr.bf16.mxu0 0
        %3182 = vmatpush1.bf16.msra.mxu0 %v3158
        %3183 = vmatprep.subr.bf16.mxu0 0
        %3184 = vmatpush1.bf16.msra.mxu0 0
        %3185 = vmatprep.subr.bf16.mxu0 0
        %3186 = vmatpush1.bf16.msra.mxu0 0
        %3187 = vmatprep.subr.bf16.mxu0 0
        %3188 = vmatpush1.bf16.msra.mxu0 0
        %3189 = vmatprep.subr.bf16.mxu0 0
        %3190 = vmatpush1.bf16.msra.mxu0 0
        %3191 = vmatprep.subr.bf16.mxu0 0
        %3192 = vmatpush1.bf16.msra.mxu0 0
        %3193 = vmatprep.subr.bf16.mxu0 0
        %3194 = vmatpush1.bf16.msra.mxu0 0
        %3195 = vmatprep.subr.bf16.mxu0 0
        %3196 = vmatpush1.bf16.msra.mxu0 0
        %3197 = vmatprep.subr.bf16.mxu0 0
        %3198 = vmatpush1.bf16.msra.mxu0 0
        %3199 = vmatprep.mubr.bf16.mxu0 0
        %3200 = vmatmul.mubr.bf16.gmra.mrb[0].mxu0 %v3095
        %v3201 = vpop.f32.mrb[0].mxu0
        %v3202 = vadd.f32 %v3117, %v3201
        %v3203 = vpop.f32.mrb[0].mxu0
        %v3204 = vpop.f32.mrb[0].mxu0
        %v3205 = vadd.f32 %v3117, %v3204
        %v3206 = vpop.f32.mrb[0].mxu0
        %3207 = vdwg.mxu0
        %v3208 = vlaneseq
        %v3209 = vshrl.u32 %v3208, 7
        %v3210 = vsub.s32 5, %v3209
        %v3211 = vrot.slane %v709, %v3210
        %v3212 = vlaneseq
        %v3213 = vshrl.u32 %v3212, 7
        %v3214 = vsub.s32 5, %v3213
        %v3215 = vrot.slane %v710, %v3214
        %v3216 = vmul.f32 %v3211, %v3202
        %v3217 = vmul.f32 %v3215, %v3205
        %v3218 = vadd.f32 %v2961, %v3216
        %v3219 = vadd.f32 %v2962, %v3217
        %3220 = vst.msk [vmem:[#allocation2] sm:$0xff] %vm711, %v3218
        %3221 = vst.msk [vmem:[#allocation2 + $0x8] sm:$0xff] %vm711, %v3219
        %p3222 = scmp.eq.s32.totalorder %s43, 1
        // Predicated region
        $region105: #{diffusion_transformer_forward.8} parent=59 // pred_check
          %p3223 = pneg %p3222
        $region106: #{diffusion_transformer_forward.8} parent=59 // pred_check_branch
          %3225 = sbr.rel (%p3223) target = $region108
        $region107: #{diffusion_transformer_forward.8} parent=59 // pred_region
          %3226 = vst.msk [vmem:[#allocation20] sm:$0xff] %vm711, %v3218
          %3227 = vst.msk [vmem:[#allocation20 + $0x8] sm:$0xff] %vm711, %v3219
        $region108: #{diffusion_transformer_forward.8} parent=59 // pred_fallthru
          _
        // Predicated region
        $region109: #{diffusion_transformer_forward.8} parent=59 // pred_check
          %p3228 = pneg %p330
        $region110: #{diffusion_transformer_forward.8} parent=59 // pred_check_branch
          %3230 = sbr.rel (%p3228) target = $region112
        $region111: #{diffusion_transformer_forward.8} parent=59 // pred_region
          %s3231 = smul.u32 2, %s42
          %s3233 = ssub.s32 256, 256
          %3234 = vsyncadd [#allocation5], %s3233
          %s3235 = smul.addr %s3231, 128
          %s3236 = scalar_lea.hbm %s10, %s3235
          %s3237 = sshll.u32 [#allocation20], 4
          %s3238 = int_to_ptr.vmem [resolvable:$true] %s3237
          %3243 = dma.vmem_to_hbm [thread:$0]  %s3238, 256, %s3236, [#allocation5], 128, 128, 8
        $region112: #{diffusion_transformer_forward.8} parent=59 // pred_fallthru
          _
        // Predicated region
        $region113: #{diffusion_transformer_forward.8} parent=59 // pred_check
          %p3244 = pneg %p330
        $region114: #{diffusion_transformer_forward.8} parent=59 // pred_check_branch
          %3246 = sbr.rel (%p3244) target = $region116
        $region115: #{diffusion_transformer_forward.8} parent=59 // pred_region
          %3247 = dma.done [#allocation5], 256
        $region116: #{diffusion_transformer_forward.8} parent=59 // pred_fallthru
          _
      $region60: #{diffusion_transformer_forward.8} parent=5 // pred_fallthru
        _
      %p3248 = scmp.le.s32.totalorder 2, %s33
      // Predicated region
      $region117: #{diffusion_transformer_forward.8} parent=5 // pred_check
        %p3249 = pneg %p3248
      $region118: #{diffusion_transformer_forward.8} parent=5 // pred_check_branch
        %3251 = sbr.rel (%p3249) target = $region120
      $region119: #{diffusion_transformer_forward.8} parent=5 // pred_region
        %s3252 = ssub.s32 %s33, 2
      $region120: #{diffusion_transformer_forward.8} parent=5 // pred_fallthru
        _
    $region6: #{diffusion_transformer_forward.8} parent=1 // loop_footer
      %s37 = sadd.s32 1, %s33
    $region7: #{diffusion_transformer_forward.8} parent=1 // loop_footer_branch
      %32 = sbr.rel target = $region3
    $region8: #{diffusion_transformer_forward.8} parent=1 // loop_exit
      _
    %3253 = vsyncpa [#allocation4], 1
    %s3254 = scalar_lea.sflag [#allocation4], 1
    %3255 = vsyncpa %s3254, 1
    %3256 = vsyncpa [#allocation7], 1
    %s3257 = scalar_lea.sflag [#allocation7], 1
    %3258 = vsyncpa %s3257, 1
    %3259 = vsyncpa [#allocation10], 1
    %s3260 = scalar_lea.sflag [#allocation10], 1
    %3261 = vsyncpa %s3260, 1
    %3262 = vsyncpa [#allocation13], 1
    %s3263 = scalar_lea.sflag [#allocation13], 1
    %3264 = vsyncpa %s3263, 1
    %3265 = vsyncpa [#allocation16], 1
    %s3266 = scalar_lea.sflag [#allocation16], 1
    %3267 = vsyncpa %s3266, 1
    %3268 = vsyncpa [#allocation19], 1
    %s3269 = scalar_lea.sflag [#allocation19], 1
    %3270 = vsyncpa %s3269, 1
    %3271 = vsyncpa [#allocation5], 1
    %s3272 = scalar_lea.sflag [#allocation5], 1
    %3273 = vsyncpa %s3272, 1

</llo_original>
